<compile_context>
chip_gen: v5e
topology: v5e:2x2
jax: 0.10.0
libtpu: 0.0.40
codegen_flags: <defaults>
</compile_context>

<pallas_src>
import functools

import jax
import jax.numpy as jnp
from jax import lax
from jax.experimental import pallas as pl
from jax.experimental.pallas import tpu as pltpu


def _round_up(x, m):
    return (x + m - 1) // m * m


# --------------------------------------------------------------------------- kernel
def _lstm_block_kernel(ids_ref, tbl_ref, whh_ref,        # scalar-prefetch + inputs
                       out_ref, hn_ref, cn_ref,          # outputs
                       h_scr, c_scr,                     # scratch carries
                       *, seq_len, b_total, unroll):
    """One grid step == t_blk LSTM timesteps for one batch shard.

    ids_ref : SMEM (T_pad * b_total,) int32   token ids, time-major, flattened
    tbl_ref : VMEM (vocab, 1, 4*h_pad) f32    fused emb@W_ih^T + b_ih + b_hh table
    whh_ref : VMEM (h_pad, 4*h_pad) bf16      W_hh transposed, per-gate lane-padded
    out_ref : (t_blk, b_blk, h_pad) f32       h_t for this (time, batch) block
    hn/cn   : (1, b_blk, h_pad) f32           final states (written on last time block)
    h/c_scr : (b_blk, h_pad) f32              carried state; padded lanes stay exactly
                                              zero because the state starts at zero and
                                              padded gate pre-activations are zero.
    """
    bb = pl.program_id(0)                     # batch shard  ("parallel")
    tb = pl.program_id(1)                     # time block   ("arbitrary", serial)
    t_blk, b_blk, h_pad = out_ref.shape

    @pl.when(tb == 0)
    def _init():
        h_scr[...] = jnp.zeros_like(h_scr)
        c_scr[...] = jnp.zeros_like(c_scr)

    whh = whh_ref[...]                        # loop-invariant (h_pad, 4*h_pad) bf16
    b_base = bb * b_blk
    mask_tail = (seq_len % t_blk) != 0        # static: does the grid cover padded steps?

    def sigmoid(x):                           # one EUP op instead of exp + divide
        return 0.5 * (jnp.tanh(0.5 * x) + 1.0)

    def step(t, carry):
        h_prev, c_prev = carry
        gt = tb * t_blk + t                   # global timestep (traced scalar)

        # ---- input path: in-kernel gather from the resident fused table --------
        base = gt * b_total + b_base
        rows = [tbl_ref[ids_ref[base + b]] for b in range(b_blk)]   # (1, 4*h_pad) each
        g_x = jnp.concatenate(rows, axis=0)                         # (b_blk, 4*h_pad) f32

        # ---- recurrent path: bf16 operands on the MXU, f32 accumulation --------
        g_h = jnp.dot(h_prev.astype(jnp.bfloat16), whh,
                      preferred_element_type=jnp.float32)
        gates = g_x + g_h

        # PyTorch LSTM gate order: input, forget, cell(g), output.
        # Each slice is one lane-aligned h_pad = 128 block.
        i_g = sigmoid(gates[:, 0 * h_pad:1 * h_pad])
        f_g = sigmoid(gates[:, 1 * h_pad:2 * h_pad])
        g_g = jnp.tanh(gates[:, 2 * h_pad:3 * h_pad])
        o_g = sigmoid(gates[:, 3 * h_pad:4 * h_pad])

        c_new = f_g * c_prev + i_g * g_g
        h_new = o_g * jnp.tanh(c_new)
        out_ref[t] = h_new                    # lane-dense (b_blk, h_pad) store

        if mask_tail:
            # Padded timesteps are not identity for an LSTM (zero gates decay c);
            # freeze the carry so h_n / c_n are captured at the true last step.
            valid = gt < seq_len
            h_new = jnp.where(valid, h_new, h_prev)
            c_new = jnp.where(valid, c_new, c_prev)
        return h_new, c_new

    h_last, c_last = lax.fori_loop(0, t_blk, step, (h_scr[...], c_scr[...]),
                                   unroll=unroll)
    h_scr[...] = h_last
    c_scr[...] = c_last

    @pl.when(tb == pl.num_programs(1) - 1)
    def _final():
        hn_ref[0] = h_last
        cn_ref[0] = c_last


# --------------------------------------------------------------------------- wrapper
def lstm_pallas(token_ids, gates_table, whh_packed, hidden_size, *,
                max_t_blk=128, vmem_budget_bytes=32 * 1024 * 1024):
    """Run the LSTM recurrence over (T, B) int32 token ids.

    gates_table : (vocab, 1, 4*h_pad) f32 — fused embedding + input-projection table.
    whh_packed  : (h_pad, 4*h_pad) bf16   — W_hh transposed + per-gate lane-padded.
    Returns output (T, B, H) f32 and (h_n, c_n) each (1, B, H) f32 (unpadded).
    """
    T, B = token_ids.shape
    vocab = gates_table.shape[0]
    h_pad = whh_packed.shape[0]

    # ---- batch padding / batch-parallel split (uses v7x's second TensorCore) ----
    b_pad = _round_up(max(B, 8), 8)
    n_bblk = 2 if (b_pad >= 16 and b_pad % 16 == 0) else 1
    b_blk = b_pad // n_bblk

    # ---- time-block size from an explicit VMEM budget ----------------------------
    table_bytes = vocab * 8 * (4 * h_pad) * 4        # f32 table, sublane-padded rows
    whh_bytes = 2 * h_pad * (4 * h_pad) * 2          # bf16 weight, double-buffered
    state_bytes = 6 * b_blk * h_pad * 4              # hn/cn blocks + h/c carries
    fixed = table_bytes + whh_bytes + state_bytes
    per_t = 2 * b_blk * h_pad * 4                    # double-buffered f32 out slab / step
    avail = max(vmem_budget_bytes - fixed, 8 * per_t)
    t_blk = int(min(max_t_blk, max(8, avail // per_t)))
    t_blk -= t_blk % 8
    t_blk = max(8, min(t_blk, _round_up(T, 8)))

    T_pad = _round_up(T, t_blk)
    n_tblk = T_pad // t_blk

    # Pad only the cheap int32 ids (never a dense gates array).  Padded ids are 0
    # (a valid row); padded timesteps are masked inside the kernel.
    ids = jnp.pad(token_ids.astype(jnp.int32),
                  ((0, T_pad - T), (0, b_pad - B))).reshape(-1)

    kernel = functools.partial(_lstm_block_kernel, seq_len=T, b_total=b_pad,
                               unroll=min(8, t_blk))

    grid_spec = pltpu.PrefetchScalarGridSpec(
        num_scalar_prefetch=1,                       # token ids land in SMEM
        grid=(n_bblk, n_tblk),
        in_specs=[
            # Full fused table resident in VMEM; block index never changes.
            pl.BlockSpec((vocab, 1, 4 * h_pad), lambda bb, tb, ids: (0, 0, 0)),
            pl.BlockSpec((h_pad, 4 * h_pad), lambda bb, tb, ids: (0, 0)),
        ],
        out_specs=[
            pl.BlockSpec((t_blk, b_blk, h_pad), lambda bb, tb, ids: (tb, bb, 0)),
            pl.BlockSpec((1, b_blk, h_pad), lambda bb, tb, ids: (0, bb, 0)),
            pl.BlockSpec((1, b_blk, h_pad), lambda bb, tb, ids: (0, bb, 0)),
        ],
        scratch_shapes=[
            pltpu.VMEM((b_blk, h_pad), jnp.float32),   # h carry
            pltpu.VMEM((b_blk, h_pad), jnp.float32),   # c carry
        ],
    )

    vmem_limit = int(min(64 * 1024 * 1024,
                         max(32 * 1024 * 1024, 2 * (fixed + t_blk * per_t))))

    out_p, hn_p, cn_p = pl.pallas_call(
        kernel,
        out_shape=(
            jax.ShapeDtypeStruct((T_pad, b_pad, h_pad), jnp.float32),
            jax.ShapeDtypeStruct((1, b_pad, h_pad), jnp.float32),
            jax.ShapeDtypeStruct((1, b_pad, h_pad), jnp.float32),
        ),
        grid_spec=grid_spec,
        compiler_params=pltpu.CompilerParams(
            # Batch shards are independent -> "parallel"; the recurrence over time
            # blocks is serial -> "arbitrary".
            dimension_semantics=("parallel", "arbitrary"),
            vmem_limit_bytes=vmem_limit,
        ),
    )(ids, gates_table, whh_packed)

    H = hidden_size
    return out_p[:T, :B, :H], (hn_p[:, :B, :H], cn_p[:, :B, :H])


# --------------------------------------------------------------------------- packing
def _pack_whh(w_hh, h_pad):
    """PyTorch (4H, H) -> (H_pad, 4*H_pad) bf16, transposed, each gate lane-padded."""
    four_h, H = w_hh.shape
    whh = jnp.transpose(w_hh).reshape(H, 4, H)              # (H_in, gate, H_out)
    whh = jnp.pad(whh, ((0, h_pad - H), (0, 0), (0, h_pad - H)))
    return whh.reshape(h_pad, 4 * h_pad).astype(jnp.bfloat16)


def _pack_gates_table(embedding, w_ih, b_ih, b_hh, h_pad):
    """Fused embedding + input projection table: (vocab, 1, 4*H_pad) f32.

    emb(x) @ W_ih^T + b  ==  (emb @ W_ih^T + b)[x], so the whole non-recurrent input
    path becomes a single in-kernel row gather.  Each gate block is lane-padded.
    """
    vocab = embedding.shape[0]
    H = w_ih.shape[0] // 4
    tbl = jnp.dot(embedding, w_ih.T,
                  precision=lax.Precision.HIGHEST) + b_ih + b_hh       # (vocab, 4H)
    tbl = tbl.reshape(vocab, 4, H)
    tbl = jnp.pad(tbl, ((0, 0), (0, 0), (0, h_pad - H)))
    return tbl.reshape(vocab, 1, 4 * h_pad).astype(jnp.float32)


# --------------------------------------------------------------------------- module
class EncoderPallas:
    """Pallas port of the PyTorch Encoder (num_lstm_layers == 1 path)."""

    def __init__(self, vocabulary_size, embedding_dim, hidden_size,
                 num_lstm_layers, attention_units, key):
        if num_lstm_layers > 1:
            # TODO(synk): Combo(input_dim, hidden_size, attention_unit) is undefined
            # in the reference module, so the >1-layer attention path is omitted.
            raise NotImplementedError("num_lstm_layers > 1 needs the undefined Combo")
        self.hidden_size = hidden_size
        self.h_pad = _round_up(hidden_size, 128)

        k0, k1, k2, k3, k4 = jax.random.split(key, 5)
        bound = 1.0 / (hidden_size ** 0.5)
        self.embedding = jax.random.normal(
            k0, (vocabulary_size, embedding_dim), dtype=jnp.float32)
        self.w_ih = jax.random.uniform(
            k1, (4 * hidden_size, embedding_dim), jnp.float32, -bound, bound)
        self.w_hh = jax.random.uniform(
            k2, (4 * hidden_size, hidden_size), jnp.float32, -bound, bound)
        self.b_ih = jax.random.uniform(
            k3, (4 * hidden_size,), jnp.float32, -bound, bound)
        self.b_hh = jax.random.uniform(
            k4, (4 * hidden_size,), jnp.float32, -bound, bound)

        # One-time packing (no per-call transpose / bias add / projection GEMM).
        self.whh_packed = _pack_whh(self.w_hh, self.h_pad)
        self.gates_table = _pack_gates_table(
            self.embedding, self.w_ih, self.b_ih, self.b_hh, self.h_pad)

    @functools.partial(jax.jit, static_argnums=0)
    def __call__(self, x):
        # x: (T, B) int32 token ids (time-major, batch_first=False).
        return lstm_pallas(x, self.gates_table, self.whh_packed, self.hidden_size)


# --------------------------------------------------------------------------- reference
def _lstm_reference(tokens, gates_table, whh_packed, hidden_size):
    """Pure-JAX LSTM using the exact same packed / bf16-quantized parameters."""
    H = hidden_size
    vocab = gates_table.shape[0]
    h_pad = whh_packed.shape[0]
    tbl = gates_table.reshape(vocab, 4, h_pad)[:, :, :H].reshape(vocab, 4 * H)
    whh = whh_packed.astype(jnp.float32).reshape(h_pad, 4, h_pad)[:H, :, :H]
    whh = whh.reshape(H, 4 * H)
    gin = tbl[tokens]                                        # (T, B, 4H)
    B = tokens.shape[1]

    def step(carry, g_x):
        h, c = carry
        h_q = h.astype(jnp.bfloat16).astype(jnp.float32)     # kernel feeds bf16 h to MXU
        gates = g_x + jnp.dot(h_q, whh, precision=lax.Precision.HIGHEST)
        i = jax.nn.sigmoid(gates[:, 0 * H:1 * H])
        f = jax.nn.sigmoid(gates[:, 1 * H:2 * H])
        g = jnp.tanh(gates[:, 2 * H:3 * H])
        o = jax.nn.sigmoid(gates[:, 3 * H:4 * H])
        c = f * c + i * g
        h = o * jnp.tanh(c)
        return (h, c), h

    init = (jnp.zeros((B, H), jnp.float32), jnp.zeros((B, H), jnp.float32))
    (h, c), ys = lax.scan(step, init, gin)
    return ys, (h[None], c[None])


# --------------------------------------------------------------------------- main
if __name__ == "__main__":
    vocabulary_size = 50
    embedding_dim = 16
    hidden_size = 32
    num_lstm_layers = 1
    attention_units = ()

    key = jax.random.PRNGKey(0)
    k_params, k_tok1, k_tok2 = jax.random.split(key, 3)

    enc = EncoderPallas(vocabulary_size, embedding_dim, hidden_size,
                        num_lstm_layers, attention_units, k_params)

    def check(x):
        out, (h_n, c_n) = enc(x)
        jax.block_until_ready((out, h_n, c_n))
        T, B = x.shape
        assert out.shape == (T, B, hidden_size)
        assert h_n.shape == (1, B, hidden_size)
        assert c_n.shape == (1, B, hidden_size)
        out_r, (hn_r, cn_r) = _lstm_reference(x, enc.gates_table, enc.whh_packed,
                                              hidden_size)
        assert jnp.allclose(out, out_r, atol=5e-4, rtol=5e-4), \
            float(jnp.max(jnp.abs(out - out_r)))
        assert jnp.allclose(h_n, hn_r, atol=5e-4, rtol=5e-4)
        assert jnp.allclose(c_n, cn_r, atol=5e-4, rtol=5e-4)

    # Case 1: tiny batch, T a multiple of the time block (no tail masking).
    x1 = jax.random.randint(k_tok1, (8, 2), 0, vocabulary_size, dtype=jnp.int32)
    check(x1)

    # Case 2: prime T (exercises padded-tail masking) and B=16 (exercises the
    # batch-parallel grid axis that feeds v7x's second TensorCore).
    x2 = jax.random.randint(k_tok2, (13, 16), 0, vocabulary_size, dtype=jnp.int32)
    check(x2)

    print("KERNEL_OK")
</pallas_src>

<mosaic_0001>
module attributes {stable_mosaic.version = 11 : i64} {
  func.func @_lstm_block_kernel(%arg0: i32, %arg1: i32, %arg2: memref<64xi32, #tpu.memory_space<smem>>, %arg3: memref<50x1x512xf32, #tpu.memory_space<vmem>>, %arg4: memref<128x512xbf16, #tpu.memory_space<vmem>>, %arg5: memref<8x8x128xf32, #tpu.memory_space<vmem>>, %arg6: memref<1x8x128xf32, #tpu.memory_space<vmem>>, %arg7: memref<1x8x128xf32, #tpu.memory_space<vmem>>, %arg8: memref<8x128xf32, #tpu.memory_space<vmem>>, %arg9: memref<8x128xf32, #tpu.memory_space<vmem>>) attributes {dimension_semantics = [#tpu.dimension_semantics<parallel>, #tpu.dimension_semantics<arbitrary>], iteration_bounds = array<i64: 1, 1>, scalar_prefetch = 1 : i64, scratch_operands = 2 : i64, tpu.core_type = #tpu.core_type<tc>, window_params = [{pipeline_mode = #tpu.pipeline_mode<synchronous>, transform_indices = @transform_0, window_bounds = array<i64: 50, 1, 512>}, {pipeline_mode = #tpu.pipeline_mode<synchronous>, transform_indices = @transform_1, window_bounds = array<i64: 128, 512>}, {transform_indices = @transform_2, window_bounds = array<i64: 8, 8, 128>}, {transform_indices = @transform_3, window_bounds = array<i64: 1, 8, 128>}, {transform_indices = @transform_4, window_bounds = array<i64: 1, 8, 128>}]} {
    %c0_i32 = arith.constant 0 : i32
    %0 = arith.cmpi eq, %arg1, %c0_i32 : i32
    %1 = arith.extui %0 : i1 to i32
    %c0_i32_0 = arith.constant 0 : i32
    %2 = arith.cmpi ne, %1, %c0_i32_0 : i32
    scf.if %2 {
      %cst_317 = arith.constant 0.000000e+00 : f32
      %740 = vector.broadcast %cst_317 : f32 to vector<8x128xf32>
      %c0_318 = arith.constant 0 : index
      %c0_319 = arith.constant 0 : index
      %741 = vector.load %arg8[%c0_318, %c0_319] : memref<8x128xf32, #tpu.memory_space<vmem>>, vector<8x128xf32>
      tpu.vector_store %arg8[%c0_318, %c0_319], %740 {strides = array<i32>} : memref<8x128xf32, #tpu.memory_space<vmem>>, vector<8x128xf32>,
      %cst_320 = arith.constant 0.000000e+00 : f32
      %742 = vector.broadcast %cst_320 : f32 to vector<8x128xf32>
      %c0_321 = arith.constant 0 : index
      %c0_322 = arith.constant 0 : index
      %743 = vector.load %arg9[%c0_321, %c0_322] : memref<8x128xf32, #tpu.memory_space<vmem>>, vector<8x128xf32>
      tpu.vector_store %arg9[%c0_321, %c0_322], %742 {strides = array<i32>} : memref<8x128xf32, #tpu.memory_space<vmem>>, vector<8x128xf32>,
    } else {
    }
    %c0 = arith.constant 0 : index
    %c0_1 = arith.constant 0 : index
    %3 = vector.load %arg4[%c0, %c0_1] : memref<128x512xbf16, #tpu.memory_space<vmem>>, vector<128x512xbf16>
    %c8_i32 = arith.constant 8 : i32
    %4 = arith.muli %arg0, %c8_i32 : i32
    %c0_2 = arith.constant 0 : index
    %c0_3 = arith.constant 0 : index
    %5 = vector.load %arg8[%c0_2, %c0_3] : memref<8x128xf32, #tpu.memory_space<vmem>>, vector<8x128xf32>
    %c0_4 = arith.constant 0 : index
    %c0_5 = arith.constant 0 : index
    %6 = vector.load %arg9[%c0_4, %c0_5] : memref<8x128xf32, #tpu.memory_space<vmem>>, vector<8x128xf32>
    %c0_i32_6 = arith.constant 0 : i32
    %c8_i32_7 = arith.constant 8 : i32
    %7 = arith.muli %arg1, %c8_i32_7 : i32
    %8 = arith.addi %7, %c0_i32_6 : i32
    %c8_i32_8 = arith.constant 8 : i32
    %9 = arith.muli %8, %c8_i32_8 : i32
    %10 = arith.addi %9, %4 : i32
    %c0_i32_9 = arith.constant 0 : i32
    %11 = arith.addi %10, %c0_i32_9 : i32
    %12 = arith.index_cast %11 : i32 to index
    %13 = memref.load %arg2[%12] : memref<64xi32, #tpu.memory_space<smem>>
    %14 = arith.index_cast %13 : i32 to index
    %c0_10 = arith.constant 0 : index
    %c0_11 = arith.constant 0 : index
    %15 = vector.load %arg3[%14, %c0_10, %c0_11] : memref<50x1x512xf32, #tpu.memory_space<vmem>>, vector<1x1x512xf32>
    %16 = vector.shape_cast %15 : vector<1x1x512xf32> to vector<1x512xf32>
    %c1_i32 = arith.constant 1 : i32
    %17 = arith.addi %10, %c1_i32 : i32
    %18 = arith.index_cast %17 : i32 to index
    %19 = memref.load %arg2[%18] : memref<64xi32, #tpu.memory_space<smem>>
    %20 = arith.index_cast %19 : i32 to index
    %c0_12 = arith.constant 0 : index
    %c0_13 = arith.constant 0 : index
    %21 = vector.load %arg3[%20, %c0_12, %c0_13] : memref<50x1x512xf32, #tpu.memory_space<vmem>>, vector<1x1x512xf32>
    %22 = vector.shape_cast %21 : vector<1x1x512xf32> to vector<1x512xf32>
    %c2_i32 = arith.constant 2 : i32
    %23 = arith.addi %10, %c2_i32 : i32
    %24 = arith.index_cast %23 : i32 to index
    %25 = memref.load %arg2[%24] : memref<64xi32, #tpu.memory_space<smem>>
    %26 = arith.index_cast %25 : i32 to index
    %c0_14 = arith.constant 0 : index
    %c0_15 = arith.constant 0 : index
    %27 = vector.load %arg3[%26, %c0_14, %c0_15] : memref<50x1x512xf32, #tpu.memory_space<vmem>>, vector<1x1x512xf32>
    %28 = vector.shape_cast %27 : vector<1x1x512xf32> to vector<1x512xf32>
    %c3_i32 = arith.constant 3 : i32
    %29 = arith.addi %10, %c3_i32 : i32
    %30 = arith.index_cast %29 : i32 to index
    %31 = memref.load %arg2[%30] : memref<64xi32, #tpu.memory_space<smem>>
    %32 = arith.index_cast %31 : i32 to index
    %c0_16 = arith.constant 0 : index
    %c0_17 = arith.constant 0 : index
    %33 = vector.load %arg3[%32, %c0_16, %c0_17] : memref<50x1x512xf32, #tpu.memory_space<vmem>>, vector<1x1x512xf32>
    %34 = vector.shape_cast %33 : vector<1x1x512xf32> to vector<1x512xf32>
    %c4_i32 = arith.constant 4 : i32
    %35 = arith.addi %10, %c4_i32 : i32
    %36 = arith.index_cast %35 : i32 to index
    %37 = memref.load %arg2[%36] : memref<64xi32, #tpu.memory_space<smem>>
    %38 = arith.index_cast %37 : i32 to index
    %c0_18 = arith.constant 0 : index
    %c0_19 = arith.constant 0 : index
    %39 = vector.load %arg3[%38, %c0_18, %c0_19] : memref<50x1x512xf32, #tpu.memory_space<vmem>>, vector<1x1x512xf32>
    %40 = vector.shape_cast %39 : vector<1x1x512xf32> to vector<1x512xf32>
    %c5_i32 = arith.constant 5 : i32
    %41 = arith.addi %10, %c5_i32 : i32
    %42 = arith.index_cast %41 : i32 to index
    %43 = memref.load %arg2[%42] : memref<64xi32, #tpu.memory_space<smem>>
    %44 = arith.index_cast %43 : i32 to index
    %c0_20 = arith.constant 0 : index
    %c0_21 = arith.constant 0 : index
    %45 = vector.load %arg3[%44, %c0_20, %c0_21] : memref<50x1x512xf32, #tpu.memory_space<vmem>>, vector<1x1x512xf32>
    %46 = vector.shape_cast %45 : vector<1x1x512xf32> to vector<1x512xf32>
    %c6_i32 = arith.constant 6 : i32
    %47 = arith.addi %10, %c6_i32 : i32
    %48 = arith.index_cast %47 : i32 to index
    %49 = memref.load %arg2[%48] : memref<64xi32, #tpu.memory_space<smem>>
    %50 = arith.index_cast %49 : i32 to index
    %c0_22 = arith.constant 0 : index
    %c0_23 = arith.constant 0 : index
    %51 = vector.load %arg3[%50, %c0_22, %c0_23] : memref<50x1x512xf32, #tpu.memory_space<vmem>>, vector<1x1x512xf32>
    %52 = vector.shape_cast %51 : vector<1x1x512xf32> to vector<1x512xf32>
    %c7_i32 = arith.constant 7 : i32
    %53 = arith.addi %10, %c7_i32 : i32
    %54 = arith.index_cast %53 : i32 to index
    %55 = memref.load %arg2[%54] : memref<64xi32, #tpu.memory_space<smem>>
    %56 = arith.index_cast %55 : i32 to index
    %c0_24 = arith.constant 0 : index
    %c0_25 = arith.constant 0 : index
    %57 = vector.load %arg3[%56, %c0_24, %c0_25] : memref<50x1x512xf32, #tpu.memory_space<vmem>>, vector<1x1x512xf32>
    %58 = vector.shape_cast %57 : vector<1x1x512xf32> to vector<1x512xf32>
    %59 = tpu.concatenate %16, %22, %28, %34, %40, %46, %52, %58 in 0 : vector<1x512xf32>, vector<1x512xf32>, vector<1x512xf32>, vector<1x512xf32>, vector<1x512xf32>, vector<1x512xf32>, vector<1x512xf32>, vector<1x512xf32> -> vector<8x512xf32>
    %60 = arith.truncf %5 : vector<8x128xf32> to vector<8x128xbf16>
    %cst = arith.constant dense<0.000000e+00> : vector<8x512xf32>
    %61 = tpu.matmul %60, %3, %cst {dimension_numbers = #tpu.dot_dimension_numbers<[1], [0], [0], [1], [0, 0, 1, 1], [], []>} : vector<8x128xbf16>, vector<128x512xbf16>, vector<8x512xf32> -> vector<8x512xf32>
    %62 = arith.addf %59, %61 : vector<8x512xf32>
    %63 = vector.extract_strided_slice %62 {offsets = [0, 0], sizes = [8, 128], strides = [1, 1]} : vector<8x512xf32> to vector<8x128xf32>
    %cst_26 = arith.constant 5.000000e-01 : f32
    %64 = vector.broadcast %cst_26 : f32 to vector<8x128xf32>
    %65 = arith.mulf %64, %63 : vector<8x128xf32>
    %66 = math.tanh %65 : vector<8x128xf32>
    %cst_27 = arith.constant 1.000000e+00 : f32
    %67 = vector.broadcast %cst_27 : f32 to vector<8x128xf32>
    %68 = arith.addf %66, %67 : vector<8x128xf32>
    %cst_28 = arith.constant 5.000000e-01 : f32
    %69 = vector.broadcast %cst_28 : f32 to vector<8x128xf32>
    %70 = arith.mulf %69, %68 : vector<8x128xf32>
    %71 = vector.extract_strided_slice %62 {offsets = [0, 128], sizes = [8, 128], strides = [1, 1]} : vector<8x512xf32> to vector<8x128xf32>
    %cst_29 = arith.constant 5.000000e-01 : f32
    %72 = vector.broadcast %cst_29 : f32 to vector<8x128xf32>
    %73 = arith.mulf %72, %71 : vector<8x128xf32>
    %74 = math.tanh %73 : vector<8x128xf32>
    %cst_30 = arith.constant 1.000000e+00 : f32
    %75 = vector.broadcast %cst_30 : f32 to vector<8x128xf32>
    %76 = arith.addf %74, %75 : vector<8x128xf32>
    %cst_31 = arith.constant 5.000000e-01 : f32
    %77 = vector.broadcast %cst_31 : f32 to vector<8x128xf32>
    %78 = arith.mulf %77, %76 : vector<8x128xf32>
    %79 = vector.extract_strided_slice %62 {offsets = [0, 256], sizes = [8, 128], strides = [1, 1]} : vector<8x512xf32> to vector<8x128xf32>
    %80 = math.tanh %79 : vector<8x128xf32>
    %81 = vector.extract_strided_slice %62 {offsets = [0, 384], sizes = [8, 128], strides = [1, 1]} : vector<8x512xf32> to vector<8x128xf32>
    %cst_32 = arith.constant 5.000000e-01 : f32
    %82 = vector.broadcast %cst_32 : f32 to vector<8x128xf32>
    %83 = arith.mulf %82, %81 : vector<8x128xf32>
    %84 = math.tanh %83 : vector<8x128xf32>
    %cst_33 = arith.constant 1.000000e+00 : f32
    %85 = vector.broadcast %cst_33 : f32 to vector<8x128xf32>
    %86 = arith.addf %84, %85 : vector<8x128xf32>
    %cst_34 = arith.constant 5.000000e-01 : f32
    %87 = vector.broadcast %cst_34 : f32 to vector<8x128xf32>
    %88 = arith.mulf %87, %86 : vector<8x128xf32>
    %89 = arith.mulf %78, %6 : vector<8x128xf32>
    %90 = arith.mulf %70, %80 : vector<8x128xf32>
    %91 = arith.addf %89, %90 : vector<8x128xf32>
    %92 = math.tanh %91 : vector<8x128xf32>
    %93 = arith.mulf %88, %92 : vector<8x128xf32>
    %94 = arith.index_cast %c0_i32_6 : i32 to index
    %c0_35 = arith.constant 0 : index
    %c0_36 = arith.constant 0 : index
    %95 = vector.load %arg5[%94, %c0_35, %c0_36] : memref<8x8x128xf32, #tpu.memory_space<vmem>>, vector<1x8x128xf32>
    %96 = vector.shape_cast %95 : vector<1x8x128xf32> to vector<8x128xf32>
    %97 = vector.shape_cast %93 : vector<8x128xf32> to vector<1x8x128xf32>
    tpu.vector_store %arg5[%94, %c0_35, %c0_36], %97 {strides = array<i32>} : memref<8x8x128xf32, #tpu.memory_space<vmem>>, vector<1x8x128xf32>,
    %c1_i32_37 = arith.constant 1 : i32
    %c8_i32_38 = arith.constant 8 : i32
    %98 = arith.muli %arg1, %c8_i32_38 : i32
    %99 = arith.addi %98, %c1_i32_37 : i32
    %c8_i32_39 = arith.constant 8 : i32
    %100 = arith.muli %99, %c8_i32_39 : i32
    %101 = arith.addi %100, %4 : i32
    %c0_i32_40 = arith.constant 0 : i32
    %102 = arith.addi %101, %c0_i32_40 : i32
    %103 = arith.index_cast %102 : i32 to index
    %104 = memref.load %arg2[%103] : memref<64xi32, #tpu.memory_space<smem>>
    %105 = arith.index_cast %104 : i32 to index
    %c0_41 = arith.constant 0 : index
    %c0_42 = arith.constant 0 : index
    %106 = vector.load %arg3[%105, %c0_41, %c0_42] : memref<50x1x512xf32, #tpu.memory_space<vmem>>, vector<1x1x512xf32>
    %107 = vector.shape_cast %106 : vector<1x1x512xf32> to vector<1x512xf32>
    %c1_i32_43 = arith.constant 1 : i32
    %108 = arith.addi %101, %c1_i32_43 : i32
    %109 = arith.index_cast %108 : i32 to index
    %110 = memref.load %arg2[%109] : memref<64xi32, #tpu.memory_space<smem>>
    %111 = arith.index_cast %110 : i32 to index
    %c0_44 = arith.constant 0 : index
    %c0_45 = arith.constant 0 : index
    %112 = vector.load %arg3[%111, %c0_44, %c0_45] : memref<50x1x512xf32, #tpu.memory_space<vmem>>, vector<1x1x512xf32>
    %113 = vector.shape_cast %112 : vector<1x1x512xf32> to vector<1x512xf32>
    %c2_i32_46 = arith.constant 2 : i32
    %114 = arith.addi %101, %c2_i32_46 : i32
    %115 = arith.index_cast %114 : i32 to index
    %116 = memref.load %arg2[%115] : memref<64xi32, #tpu.memory_space<smem>>
    %117 = arith.index_cast %116 : i32 to index
    %c0_47 = arith.constant 0 : index
    %c0_48 = arith.constant 0 : index
    %118 = vector.load %arg3[%117, %c0_47, %c0_48] : memref<50x1x512xf32, #tpu.memory_space<vmem>>, vector<1x1x512xf32>
    %119 = vector.shape_cast %118 : vector<1x1x512xf32> to vector<1x512xf32>
    %c3_i32_49 = arith.constant 3 : i32
    %120 = arith.addi %101, %c3_i32_49 : i32
    %121 = arith.index_cast %120 : i32 to index
    %122 = memref.load %arg2[%121] : memref<64xi32, #tpu.memory_space<smem>>
    %123 = arith.index_cast %122 : i32 to index
    %c0_50 = arith.constant 0 : index
    %c0_51 = arith.constant 0 : index
    %124 = vector.load %arg3[%123, %c0_50, %c0_51] : memref<50x1x512xf32, #tpu.memory_space<vmem>>, vector<1x1x512xf32>
    %125 = vector.shape_cast %124 : vector<1x1x512xf32> to vector<1x512xf32>
    %c4_i32_52 = arith.constant 4 : i32
    %126 = arith.addi %101, %c4_i32_52 : i32
    %127 = arith.index_cast %126 : i32 to index
    %128 = memref.load %arg2[%127] : memref<64xi32, #tpu.memory_space<smem>>
    %129 = arith.index_cast %128 : i32 to index
    %c0_53 = arith.constant 0 : index
    %c0_54 = arith.constant 0 : index
    %130 = vector.load %arg3[%129, %c0_53, %c0_54] : memref<50x1x512xf32, #tpu.memory_space<vmem>>, vector<1x1x512xf32>
    %131 = vector.shape_cast %130 : vector<1x1x512xf32> to vector<1x512xf32>
    %c5_i32_55 = arith.constant 5 : i32
    %132 = arith.addi %101, %c5_i32_55 : i32
    %133 = arith.index_cast %132 : i32 to index
    %134 = memref.load %arg2[%133] : memref<64xi32, #tpu.memory_space<smem>>
    %135 = arith.index_cast %134 : i32 to index
    %c0_56 = arith.constant 0 : index
    %c0_57 = arith.constant 0 : index
    %136 = vector.load %arg3[%135, %c0_56, %c0_57] : memref<50x1x512xf32, #tpu.memory_space<vmem>>, vector<1x1x512xf32>
    %137 = vector.shape_cast %136 : vector<1x1x512xf32> to vector<1x512xf32>
    %c6_i32_58 = arith.constant 6 : i32
    %138 = arith.addi %101, %c6_i32_58 : i32
    %139 = arith.index_cast %138 : i32 to index
    %140 = memref.load %arg2[%139] : memref<64xi32, #tpu.memory_space<smem>>
    %141 = arith.index_cast %140 : i32 to index
    %c0_59 = arith.constant 0 : index
    %c0_60 = arith.constant 0 : index
    %142 = vector.load %arg3[%141, %c0_59, %c0_60] : memref<50x1x512xf32, #tpu.memory_space<vmem>>, vector<1x1x512xf32>
    %143 = vector.shape_cast %142 : vector<1x1x512xf32> to vector<1x512xf32>
    %c7_i32_61 = arith.constant 7 : i32
    %144 = arith.addi %101, %c7_i32_61 : i32
    %145 = arith.index_cast %144 : i32 to index
    %146 = memref.load %arg2[%145] : memref<64xi32, #tpu.memory_space<smem>>
    %147 = arith.index_cast %146 : i32 to index
    %c0_62 = arith.constant 0 : index
    %c0_63 = arith.constant 0 : index
    %148 = vector.load %arg3[%147, %c0_62, %c0_63] : memref<50x1x512xf32, #tpu.memory_space<vmem>>, vector<1x1x512xf32>
    %149 = vector.shape_cast %148 : vector<1x1x512xf32> to vector<1x512xf32>
    %150 = tpu.concatenate %107, %113, %119, %125, %131, %137, %143, %149 in 0 : vector<1x512xf32>, vector<1x512xf32>, vector<1x512xf32>, vector<1x512xf32>, vector<1x512xf32>, vector<1x512xf32>, vector<1x512xf32>, vector<1x512xf32> -> vector<8x512xf32>
    %151 = arith.truncf %93 : vector<8x128xf32> to vector<8x128xbf16>
    %cst_64 = arith.constant dense<0.000000e+00> : vector<8x512xf32>
    %152 = tpu.matmul %151, %3, %cst_64 {dimension_numbers = #tpu.dot_dimension_numbers<[1], [0], [0], [1], [0, 0, 1, 1], [], []>} : vector<8x128xbf16>, vector<128x512xbf16>, vector<8x512xf32> -> vector<8x512xf32>
    %153 = arith.addf %150, %152 : vector<8x512xf32>
    %154 = vector.extract_strided_slice %153 {offsets = [0, 0], sizes = [8, 128], strides = [1, 1]} : vector<8x512xf32> to vector<8x128xf32>
    %cst_65 = arith.constant 5.000000e-01 : f32
    %155 = vector.broadcast %cst_65 : f32 to vector<8x128xf32>
    %156 = arith.mulf %155, %154 : vector<8x128xf32>
    %157 = math.tanh %156 : vector<8x128xf32>
    %cst_66 = arith.constant 1.000000e+00 : f32
    %158 = vector.broadcast %cst_66 : f32 to vector<8x128xf32>
    %159 = arith.addf %157, %158 : vector<8x128xf32>
    %cst_67 = arith.constant 5.000000e-01 : f32
    %160 = vector.broadcast %cst_67 : f32 to vector<8x128xf32>
    %161 = arith.mulf %160, %159 : vector<8x128xf32>
    %162 = vector.extract_strided_slice %153 {offsets = [0, 128], sizes = [8, 128], strides = [1, 1]} : vector<8x512xf32> to vector<8x128xf32>
    %cst_68 = arith.constant 5.000000e-01 : f32
    %163 = vector.broadcast %cst_68 : f32 to vector<8x128xf32>
    %164 = arith.mulf %163, %162 : vector<8x128xf32>
    %165 = math.tanh %164 : vector<8x128xf32>
    %cst_69 = arith.constant 1.000000e+00 : f32
    %166 = vector.broadcast %cst_69 : f32 to vector<8x128xf32>
    %167 = arith.addf %165, %166 : vector<8x128xf32>
    %cst_70 = arith.constant 5.000000e-01 : f32
    %168 = vector.broadcast %cst_70 : f32 to vector<8x128xf32>
    %169 = arith.mulf %168, %167 : vector<8x128xf32>
    %170 = vector.extract_strided_slice %153 {offsets = [0, 256], sizes = [8, 128], strides = [1, 1]} : vector<8x512xf32> to vector<8x128xf32>
    %171 = math.tanh %170 : vector<8x128xf32>
    %172 = vector.extract_strided_slice %153 {offsets = [0, 384], sizes = [8, 128], strides = [1, 1]} : vector<8x512xf32> to vector<8x128xf32>
    %cst_71 = arith.constant 5.000000e-01 : f32
    %173 = vector.broadcast %cst_71 : f32 to vector<8x128xf32>
    %174 = arith.mulf %173, %172 : vector<8x128xf32>
    %175 = math.tanh %174 : vector<8x128xf32>
    %cst_72 = arith.constant 1.000000e+00 : f32
    %176 = vector.broadcast %cst_72 : f32 to vector<8x128xf32>
    %177 = arith.addf %175, %176 : vector<8x128xf32>
    %cst_73 = arith.constant 5.000000e-01 : f32
    %178 = vector.broadcast %cst_73 : f32 to vector<8x128xf32>
    %179 = arith.mulf %178, %177 : vector<8x128xf32>
    %180 = arith.mulf %169, %91 : vector<8x128xf32>
    %181 = arith.mulf %161, %171 : vector<8x128xf32>
    %182 = arith.addf %180, %181 : vector<8x128xf32>
    %183 = math.tanh %182 : vector<8x128xf32>
    %184 = arith.mulf %179, %183 : vector<8x128xf32>
    %185 = arith.index_cast %c1_i32_37 : i32 to index
    %c0_74 = arith.constant 0 : index
    %c0_75 = arith.constant 0 : index
    %186 = vector.load %arg5[%185, %c0_74, %c0_75] : memref<8x8x128xf32, #tpu.memory_space<vmem>>, vector<1x8x128xf32>
    %187 = vector.shape_cast %186 : vector<1x8x128xf32> to vector<8x128xf32>
    %188 = vector.shape_cast %184 : vector<8x128xf32> to vector<1x8x128xf32>
    tpu.vector_store %arg5[%185, %c0_74, %c0_75], %188 {strides = array<i32>} : memref<8x8x128xf32, #tpu.memory_space<vmem>>, vector<1x8x128xf32>,
    %c2_i32_76 = arith.constant 2 : i32
    %c8_i32_77 = arith.constant 8 : i32
    %189 = arith.muli %arg1, %c8_i32_77 : i32
    %190 = arith.addi %189, %c2_i32_76 : i32
    %c8_i32_78 = arith.constant 8 : i32
    %191 = arith.muli %190, %c8_i32_78 : i32
    %192 = arith.addi %191, %4 : i32
    %c0_i32_79 = arith.constant 0 : i32
    %193 = arith.addi %192, %c0_i32_79 : i32
    %194 = arith.index_cast %193 : i32 to index
    %195 = memref.load %arg2[%194] : memref<64xi32, #tpu.memory_space<smem>>
    %196 = arith.index_cast %195 : i32 to index
    %c0_80 = arith.constant 0 : index
    %c0_81 = arith.constant 0 : index
    %197 = vector.load %arg3[%196, %c0_80, %c0_81] : memref<50x1x512xf32, #tpu.memory_space<vmem>>, vector<1x1x512xf32>
    %198 = vector.shape_cast %197 : vector<1x1x512xf32> to vector<1x512xf32>
    %c1_i32_82 = arith.constant 1 : i32
    %199 = arith.addi %192, %c1_i32_82 : i32
    %200 = arith.index_cast %199 : i32 to index
    %201 = memref.load %arg2[%200] : memref<64xi32, #tpu.memory_space<smem>>
    %202 = arith.index_cast %201 : i32 to index
    %c0_83 = arith.constant 0 : index
    %c0_84 = arith.constant 0 : index
    %203 = vector.load %arg3[%202, %c0_83, %c0_84] : memref<50x1x512xf32, #tpu.memory_space<vmem>>, vector<1x1x512xf32>
    %204 = vector.shape_cast %203 : vector<1x1x512xf32> to vector<1x512xf32>
    %c2_i32_85 = arith.constant 2 : i32
    %205 = arith.addi %192, %c2_i32_85 : i32
    %206 = arith.index_cast %205 : i32 to index
    %207 = memref.load %arg2[%206] : memref<64xi32, #tpu.memory_space<smem>>
    %208 = arith.index_cast %207 : i32 to index
    %c0_86 = arith.constant 0 : index
    %c0_87 = arith.constant 0 : index
    %209 = vector.load %arg3[%208, %c0_86, %c0_87] : memref<50x1x512xf32, #tpu.memory_space<vmem>>, vector<1x1x512xf32>
    %210 = vector.shape_cast %209 : vector<1x1x512xf32> to vector<1x512xf32>
    %c3_i32_88 = arith.constant 3 : i32
    %211 = arith.addi %192, %c3_i32_88 : i32
    %212 = arith.index_cast %211 : i32 to index
    %213 = memref.load %arg2[%212] : memref<64xi32, #tpu.memory_space<smem>>
    %214 = arith.index_cast %213 : i32 to index
    %c0_89 = arith.constant 0 : index
    %c0_90 = arith.constant 0 : index
    %215 = vector.load %arg3[%214, %c0_89, %c0_90] : memref<50x1x512xf32, #tpu.memory_space<vmem>>, vector<1x1x512xf32>
    %216 = vector.shape_cast %215 : vector<1x1x512xf32> to vector<1x512xf32>
    %c4_i32_91 = arith.constant 4 : i32
    %217 = arith.addi %192, %c4_i32_91 : i32
    %218 = arith.index_cast %217 : i32 to index
    %219 = memref.load %arg2[%218] : memref<64xi32, #tpu.memory_space<smem>>
    %220 = arith.index_cast %219 : i32 to index
    %c0_92 = arith.constant 0 : index
    %c0_93 = arith.constant 0 : index
    %221 = vector.load %arg3[%220, %c0_92, %c0_93] : memref<50x1x512xf32, #tpu.memory_space<vmem>>, vector<1x1x512xf32>
    %222 = vector.shape_cast %221 : vector<1x1x512xf32> to vector<1x512xf32>
    %c5_i32_94 = arith.constant 5 : i32
    %223 = arith.addi %192, %c5_i32_94 : i32
    %224 = arith.index_cast %223 : i32 to index
    %225 = memref.load %arg2[%224] : memref<64xi32, #tpu.memory_space<smem>>
    %226 = arith.index_cast %225 : i32 to index
    %c0_95 = arith.constant 0 : index
    %c0_96 = arith.constant 0 : index
    %227 = vector.load %arg3[%226, %c0_95, %c0_96] : memref<50x1x512xf32, #tpu.memory_space<vmem>>, vector<1x1x512xf32>
    %228 = vector.shape_cast %227 : vector<1x1x512xf32> to vector<1x512xf32>
    %c6_i32_97 = arith.constant 6 : i32
    %229 = arith.addi %192, %c6_i32_97 : i32
    %230 = arith.index_cast %229 : i32 to index
    %231 = memref.load %arg2[%230] : memref<64xi32, #tpu.memory_space<smem>>
    %232 = arith.index_cast %231 : i32 to index
    %c0_98 = arith.constant 0 : index
    %c0_99 = arith.constant 0 : index
    %233 = vector.load %arg3[%232, %c0_98, %c0_99] : memref<50x1x512xf32, #tpu.memory_space<vmem>>, vector<1x1x512xf32>
    %234 = vector.shape_cast %233 : vector<1x1x512xf32> to vector<1x512xf32>
    %c7_i32_100 = arith.constant 7 : i32
    %235 = arith.addi %192, %c7_i32_100 : i32
    %236 = arith.index_cast %235 : i32 to index
    %237 = memref.load %arg2[%236] : memref<64xi32, #tpu.memory_space<smem>>
    %238 = arith.index_cast %237 : i32 to index
    %c0_101 = arith.constant 0 : index
    %c0_102 = arith.constant 0 : index
    %239 = vector.load %arg3[%238, %c0_101, %c0_102] : memref<50x1x512xf32, #tpu.memory_space<vmem>>, vector<1x1x512xf32>
    %240 = vector.shape_cast %239 : vector<1x1x512xf32> to vector<1x512xf32>
    %241 = tpu.concatenate %198, %204, %210, %216, %222, %228, %234, %240 in 0 : vector<1x512xf32>, vector<1x512xf32>, vector<1x512xf32>, vector<1x512xf32>, vector<1x512xf32>, vector<1x512xf32>, vector<1x512xf32>, vector<1x512xf32> -> vector<8x512xf32>
    %242 = arith.truncf %184 : vector<8x128xf32> to vector<8x128xbf16>
    %cst_103 = arith.constant dense<0.000000e+00> : vector<8x512xf32>
    %243 = tpu.matmul %242, %3, %cst_103 {dimension_numbers = #tpu.dot_dimension_numbers<[1], [0], [0], [1], [0, 0, 1, 1], [], []>} : vector<8x128xbf16>, vector<128x512xbf16>, vector<8x512xf32> -> vector<8x512xf32>
    %244 = arith.addf %241, %243 : vector<8x512xf32>
    %245 = vector.extract_strided_slice %244 {offsets = [0, 0], sizes = [8, 128], strides = [1, 1]} : vector<8x512xf32> to vector<8x128xf32>
    %cst_104 = arith.constant 5.000000e-01 : f32
    %246 = vector.broadcast %cst_104 : f32 to vector<8x128xf32>
    %247 = arith.mulf %246, %245 : vector<8x128xf32>
    %248 = math.tanh %247 : vector<8x128xf32>
    %cst_105 = arith.constant 1.000000e+00 : f32
    %249 = vector.broadcast %cst_105 : f32 to vector<8x128xf32>
    %250 = arith.addf %248, %249 : vector<8x128xf32>
    %cst_106 = arith.constant 5.000000e-01 : f32
    %251 = vector.broadcast %cst_106 : f32 to vector<8x128xf32>
    %252 = arith.mulf %251, %250 : vector<8x128xf32>
    %253 = vector.extract_strided_slice %244 {offsets = [0, 128], sizes = [8, 128], strides = [1, 1]} : vector<8x512xf32> to vector<8x128xf32>
    %cst_107 = arith.constant 5.000000e-01 : f32
    %254 = vector.broadcast %cst_107 : f32 to vector<8x128xf32>
    %255 = arith.mulf %254, %253 : vector<8x128xf32>
    %256 = math.tanh %255 : vector<8x128xf32>
    %cst_108 = arith.constant 1.000000e+00 : f32
    %257 = vector.broadcast %cst_108 : f32 to vector<8x128xf32>
    %258 = arith.addf %256, %257 : vector<8x128xf32>
    %cst_109 = arith.constant 5.000000e-01 : f32
    %259 = vector.broadcast %cst_109 : f32 to vector<8x128xf32>
    %260 = arith.mulf %259, %258 : vector<8x128xf32>
    %261 = vector.extract_strided_slice %244 {offsets = [0, 256], sizes = [8, 128], strides = [1, 1]} : vector<8x512xf32> to vector<8x128xf32>
    %262 = math.tanh %261 : vector<8x128xf32>
    %263 = vector.extract_strided_slice %244 {offsets = [0, 384], sizes = [8, 128], strides = [1, 1]} : vector<8x512xf32> to vector<8x128xf32>
    %cst_110 = arith.constant 5.000000e-01 : f32
    %264 = vector.broadcast %cst_110 : f32 to vector<8x128xf32>
    %265 = arith.mulf %264, %263 : vector<8x128xf32>
    %266 = math.tanh %265 : vector<8x128xf32>
    %cst_111 = arith.constant 1.000000e+00 : f32
    %267 = vector.broadcast %cst_111 : f32 to vector<8x128xf32>
    %268 = arith.addf %266, %267 : vector<8x128xf32>
    %cst_112 = arith.constant 5.000000e-01 : f32
    %269 = vector.broadcast %cst_112 : f32 to vector<8x128xf32>
    %270 = arith.mulf %269, %268 : vector<8x128xf32>
    %271 = arith.mulf %260, %182 : vector<8x128xf32>
    %272 = arith.mulf %252, %262 : vector<8x128xf32>
    %273 = arith.addf %271, %272 : vector<8x128xf32>
    %274 = math.tanh %273 : vector<8x128xf32>
    %275 = arith.mulf %270, %274 : vector<8x128xf32>
    %276 = arith.index_cast %c2_i32_76 : i32 to index
    %c0_113 = arith.constant 0 : index
    %c0_114 = arith.constant 0 : index
    %277 = vector.load %arg5[%276, %c0_113, %c0_114] : memref<8x8x128xf32, #tpu.memory_space<vmem>>, vector<1x8x128xf32>
    %278 = vector.shape_cast %277 : vector<1x8x128xf32> to vector<8x128xf32>
    %279 = vector.shape_cast %275 : vector<8x128xf32> to vector<1x8x128xf32>
    tpu.vector_store %arg5[%276, %c0_113, %c0_114], %279 {strides = array<i32>} : memref<8x8x128xf32, #tpu.memory_space<vmem>>, vector<1x8x128xf32>,
    %c3_i32_115 = arith.constant 3 : i32
    %c8_i32_116 = arith.constant 8 : i32
    %280 = arith.muli %arg1, %c8_i32_116 : i32
    %281 = arith.addi %280, %c3_i32_115 : i32
    %c8_i32_117 = arith.constant 8 : i32
    %282 = arith.muli %281, %c8_i32_117 : i32
    %283 = arith.addi %282, %4 : i32
    %c0_i32_118 = arith.constant 0 : i32
    %284 = arith.addi %283, %c0_i32_118 : i32
    %285 = arith.index_cast %284 : i32 to index
    %286 = memref.load %arg2[%285] : memref<64xi32, #tpu.memory_space<smem>>
    %287 = arith.index_cast %286 : i32 to index
    %c0_119 = arith.constant 0 : index
    %c0_120 = arith.constant 0 : index
    %288 = vector.load %arg3[%287, %c0_119, %c0_120] : memref<50x1x512xf32, #tpu.memory_space<vmem>>, vector<1x1x512xf32>
    %289 = vector.shape_cast %288 : vector<1x1x512xf32> to vector<1x512xf32>
    %c1_i32_121 = arith.constant 1 : i32
    %290 = arith.addi %283, %c1_i32_121 : i32
    %291 = arith.index_cast %290 : i32 to index
    %292 = memref.load %arg2[%291] : memref<64xi32, #tpu.memory_space<smem>>
    %293 = arith.index_cast %292 : i32 to index
    %c0_122 = arith.constant 0 : index
    %c0_123 = arith.constant 0 : index
    %294 = vector.load %arg3[%293, %c0_122, %c0_123] : memref<50x1x512xf32, #tpu.memory_space<vmem>>, vector<1x1x512xf32>
    %295 = vector.shape_cast %294 : vector<1x1x512xf32> to vector<1x512xf32>
    %c2_i32_124 = arith.constant 2 : i32
    %296 = arith.addi %283, %c2_i32_124 : i32
    %297 = arith.index_cast %296 : i32 to index
    %298 = memref.load %arg2[%297] : memref<64xi32, #tpu.memory_space<smem>>
    %299 = arith.index_cast %298 : i32 to index
    %c0_125 = arith.constant 0 : index
    %c0_126 = arith.constant 0 : index
    %300 = vector.load %arg3[%299, %c0_125, %c0_126] : memref<50x1x512xf32, #tpu.memory_space<vmem>>, vector<1x1x512xf32>
    %301 = vector.shape_cast %300 : vector<1x1x512xf32> to vector<1x512xf32>
    %c3_i32_127 = arith.constant 3 : i32
    %302 = arith.addi %283, %c3_i32_127 : i32
    %303 = arith.index_cast %302 : i32 to index
    %304 = memref.load %arg2[%303] : memref<64xi32, #tpu.memory_space<smem>>
    %305 = arith.index_cast %304 : i32 to index
    %c0_128 = arith.constant 0 : index
    %c0_129 = arith.constant 0 : index
    %306 = vector.load %arg3[%305, %c0_128, %c0_129] : memref<50x1x512xf32, #tpu.memory_space<vmem>>, vector<1x1x512xf32>
    %307 = vector.shape_cast %306 : vector<1x1x512xf32> to vector<1x512xf32>
    %c4_i32_130 = arith.constant 4 : i32
    %308 = arith.addi %283, %c4_i32_130 : i32
    %309 = arith.index_cast %308 : i32 to index
    %310 = memref.load %arg2[%309] : memref<64xi32, #tpu.memory_space<smem>>
    %311 = arith.index_cast %310 : i32 to index
    %c0_131 = arith.constant 0 : index
    %c0_132 = arith.constant 0 : index
    %312 = vector.load %arg3[%311, %c0_131, %c0_132] : memref<50x1x512xf32, #tpu.memory_space<vmem>>, vector<1x1x512xf32>
    %313 = vector.shape_cast %312 : vector<1x1x512xf32> to vector<1x512xf32>
    %c5_i32_133 = arith.constant 5 : i32
    %314 = arith.addi %283, %c5_i32_133 : i32
    %315 = arith.index_cast %314 : i32 to index
    %316 = memref.load %arg2[%315] : memref<64xi32, #tpu.memory_space<smem>>
    %317 = arith.index_cast %316 : i32 to index
    %c0_134 = arith.constant 0 : index
    %c0_135 = arith.constant 0 : index
    %318 = vector.load %arg3[%317, %c0_134, %c0_135] : memref<50x1x512xf32, #tpu.memory_space<vmem>>, vector<1x1x512xf32>
    %319 = vector.shape_cast %318 : vector<1x1x512xf32> to vector<1x512xf32>
    %c6_i32_136 = arith.constant 6 : i32
    %320 = arith.addi %283, %c6_i32_136 : i32
    %321 = arith.index_cast %320 : i32 to index
    %322 = memref.load %arg2[%321] : memref<64xi32, #tpu.memory_space<smem>>
    %323 = arith.index_cast %322 : i32 to index
    %c0_137 = arith.constant 0 : index
    %c0_138 = arith.constant 0 : index
    %324 = vector.load %arg3[%323, %c0_137, %c0_138] : memref<50x1x512xf32, #tpu.memory_space<vmem>>, vector<1x1x512xf32>
    %325 = vector.shape_cast %324 : vector<1x1x512xf32> to vector<1x512xf32>
    %c7_i32_139 = arith.constant 7 : i32
    %326 = arith.addi %283, %c7_i32_139 : i32
    %327 = arith.index_cast %326 : i32 to index
    %328 = memref.load %arg2[%327] : memref<64xi32, #tpu.memory_space<smem>>
    %329 = arith.index_cast %328 : i32 to index
    %c0_140 = arith.constant 0 : index
    %c0_141 = arith.constant 0 : index
    %330 = vector.load %arg3[%329, %c0_140, %c0_141] : memref<50x1x512xf32, #tpu.memory_space<vmem>>, vector<1x1x512xf32>
    %331 = vector.shape_cast %330 : vector<1x1x512xf32> to vector<1x512xf32>
    %332 = tpu.concatenate %289, %295, %301, %307, %313, %319, %325, %331 in 0 : vector<1x512xf32>, vector<1x512xf32>, vector<1x512xf32>, vector<1x512xf32>, vector<1x512xf32>, vector<1x512xf32>, vector<1x512xf32>, vector<1x512xf32> -> vector<8x512xf32>
    %333 = arith.truncf %275 : vector<8x128xf32> to vector<8x128xbf16>
    %cst_142 = arith.constant dense<0.000000e+00> : vector<8x512xf32>
    %334 = tpu.matmul %333, %3, %cst_142 {dimension_numbers = #tpu.dot_dimension_numbers<[1], [0], [0], [1], [0, 0, 1, 1], [], []>} : vector<8x128xbf16>, vector<128x512xbf16>, vector<8x512xf32> -> vector<8x512xf32>
    %335 = arith.addf %332, %334 : vector<8x512xf32>
    %336 = vector.extract_strided_slice %335 {offsets = [0, 0], sizes = [8, 128], strides = [1, 1]} : vector<8x512xf32> to vector<8x128xf32>
    %cst_143 = arith.constant 5.000000e-01 : f32
    %337 = vector.broadcast %cst_143 : f32 to vector<8x128xf32>
    %338 = arith.mulf %337, %336 : vector<8x128xf32>
    %339 = math.tanh %338 : vector<8x128xf32>
    %cst_144 = arith.constant 1.000000e+00 : f32
    %340 = vector.broadcast %cst_144 : f32 to vector<8x128xf32>
    %341 = arith.addf %339, %340 : vector<8x128xf32>
    %cst_145 = arith.constant 5.000000e-01 : f32
    %342 = vector.broadcast %cst_145 : f32 to vector<8x128xf32>
    %343 = arith.mulf %342, %341 : vector<8x128xf32>
    %344 = vector.extract_strided_slice %335 {offsets = [0, 128], sizes = [8, 128], strides = [1, 1]} : vector<8x512xf32> to vector<8x128xf32>
    %cst_146 = arith.constant 5.000000e-01 : f32
    %345 = vector.broadcast %cst_146 : f32 to vector<8x128xf32>
    %346 = arith.mulf %345, %344 : vector<8x128xf32>
    %347 = math.tanh %346 : vector<8x128xf32>
    %cst_147 = arith.constant 1.000000e+00 : f32
    %348 = vector.broadcast %cst_147 : f32 to vector<8x128xf32>
    %349 = arith.addf %347, %348 : vector<8x128xf32>
    %cst_148 = arith.constant 5.000000e-01 : f32
    %350 = vector.broadcast %cst_148 : f32 to vector<8x128xf32>
    %351 = arith.mulf %350, %349 : vector<8x128xf32>
    %352 = vector.extract_strided_slice %335 {offsets = [0, 256], sizes = [8, 128], strides = [1, 1]} : vector<8x512xf32> to vector<8x128xf32>
    %353 = math.tanh %352 : vector<8x128xf32>
    %354 = vector.extract_strided_slice %335 {offsets = [0, 384], sizes = [8, 128], strides = [1, 1]} : vector<8x512xf32> to vector<8x128xf32>
    %cst_149 = arith.constant 5.000000e-01 : f32
    %355 = vector.broadcast %cst_149 : f32 to vector<8x128xf32>
    %356 = arith.mulf %355, %354 : vector<8x128xf32>
    %357 = math.tanh %356 : vector<8x128xf32>
    %cst_150 = arith.constant 1.000000e+00 : f32
    %358 = vector.broadcast %cst_150 : f32 to vector<8x128xf32>
    %359 = arith.addf %357, %358 : vector<8x128xf32>
    %cst_151 = arith.constant 5.000000e-01 : f32
    %360 = vector.broadcast %cst_151 : f32 to vector<8x128xf32>
    %361 = arith.mulf %360, %359 : vector<8x128xf32>
    %362 = arith.mulf %351, %273 : vector<8x128xf32>
    %363 = arith.mulf %343, %353 : vector<8x128xf32>
    %364 = arith.addf %362, %363 : vector<8x128xf32>
    %365 = math.tanh %364 : vector<8x128xf32>
    %366 = arith.mulf %361, %365 : vector<8x128xf32>
    %367 = arith.index_cast %c3_i32_115 : i32 to index
    %c0_152 = arith.constant 0 : index
    %c0_153 = arith.constant 0 : index
    %368 = vector.load %arg5[%367, %c0_152, %c0_153] : memref<8x8x128xf32, #tpu.memory_space<vmem>>, vector<1x8x128xf32>
    %369 = vector.shape_cast %368 : vector<1x8x128xf32> to vector<8x128xf32>
    %370 = vector.shape_cast %366 : vector<8x128xf32> to vector<1x8x128xf32>
    tpu.vector_store %arg5[%367, %c0_152, %c0_153], %370 {strides = array<i32>} : memref<8x8x128xf32, #tpu.memory_space<vmem>>, vector<1x8x128xf32>,
    %c4_i32_154 = arith.constant 4 : i32
    %c8_i32_155 = arith.constant 8 : i32
    %371 = arith.muli %arg1, %c8_i32_155 : i32
    %372 = arith.addi %371, %c4_i32_154 : i32
    %c8_i32_156 = arith.constant 8 : i32
    %373 = arith.muli %372, %c8_i32_156 : i32
    %374 = arith.addi %373, %4 : i32
    %c0_i32_157 = arith.constant 0 : i32
    %375 = arith.addi %374, %c0_i32_157 : i32
    %376 = arith.index_cast %375 : i32 to index
    %377 = memref.load %arg2[%376] : memref<64xi32, #tpu.memory_space<smem>>
    %378 = arith.index_cast %377 : i32 to index
    %c0_158 = arith.constant 0 : index
    %c0_159 = arith.constant 0 : index
    %379 = vector.load %arg3[%378, %c0_158, %c0_159] : memref<50x1x512xf32, #tpu.memory_space<vmem>>, vector<1x1x512xf32>
    %380 = vector.shape_cast %379 : vector<1x1x512xf32> to vector<1x512xf32>
    %c1_i32_160 = arith.constant 1 : i32
    %381 = arith.addi %374, %c1_i32_160 : i32
    %382 = arith.index_cast %381 : i32 to index
    %383 = memref.load %arg2[%382] : memref<64xi32, #tpu.memory_space<smem>>
    %384 = arith.index_cast %383 : i32 to index
    %c0_161 = arith.constant 0 : index
    %c0_162 = arith.constant 0 : index
    %385 = vector.load %arg3[%384, %c0_161, %c0_162] : memref<50x1x512xf32, #tpu.memory_space<vmem>>, vector<1x1x512xf32>
    %386 = vector.shape_cast %385 : vector<1x1x512xf32> to vector<1x512xf32>
    %c2_i32_163 = arith.constant 2 : i32
    %387 = arith.addi %374, %c2_i32_163 : i32
    %388 = arith.index_cast %387 : i32 to index
    %389 = memref.load %arg2[%388] : memref<64xi32, #tpu.memory_space<smem>>
    %390 = arith.index_cast %389 : i32 to index
    %c0_164 = arith.constant 0 : index
    %c0_165 = arith.constant 0 : index
    %391 = vector.load %arg3[%390, %c0_164, %c0_165] : memref<50x1x512xf32, #tpu.memory_space<vmem>>, vector<1x1x512xf32>
    %392 = vector.shape_cast %391 : vector<1x1x512xf32> to vector<1x512xf32>
    %c3_i32_166 = arith.constant 3 : i32
    %393 = arith.addi %374, %c3_i32_166 : i32
    %394 = arith.index_cast %393 : i32 to index
    %395 = memref.load %arg2[%394] : memref<64xi32, #tpu.memory_space<smem>>
    %396 = arith.index_cast %395 : i32 to index
    %c0_167 = arith.constant 0 : index
    %c0_168 = arith.constant 0 : index
    %397 = vector.load %arg3[%396, %c0_167, %c0_168] : memref<50x1x512xf32, #tpu.memory_space<vmem>>, vector<1x1x512xf32>
    %398 = vector.shape_cast %397 : vector<1x1x512xf32> to vector<1x512xf32>
    %c4_i32_169 = arith.constant 4 : i32
    %399 = arith.addi %374, %c4_i32_169 : i32
    %400 = arith.index_cast %399 : i32 to index
    %401 = memref.load %arg2[%400] : memref<64xi32, #tpu.memory_space<smem>>
    %402 = arith.index_cast %401 : i32 to index
    %c0_170 = arith.constant 0 : index
    %c0_171 = arith.constant 0 : index
    %403 = vector.load %arg3[%402, %c0_170, %c0_171] : memref<50x1x512xf32, #tpu.memory_space<vmem>>, vector<1x1x512xf32>
    %404 = vector.shape_cast %403 : vector<1x1x512xf32> to vector<1x512xf32>
    %c5_i32_172 = arith.constant 5 : i32
    %405 = arith.addi %374, %c5_i32_172 : i32
    %406 = arith.index_cast %405 : i32 to index
    %407 = memref.load %arg2[%406] : memref<64xi32, #tpu.memory_space<smem>>
    %408 = arith.index_cast %407 : i32 to index
    %c0_173 = arith.constant 0 : index
    %c0_174 = arith.constant 0 : index
    %409 = vector.load %arg3[%408, %c0_173, %c0_174] : memref<50x1x512xf32, #tpu.memory_space<vmem>>, vector<1x1x512xf32>
    %410 = vector.shape_cast %409 : vector<1x1x512xf32> to vector<1x512xf32>
    %c6_i32_175 = arith.constant 6 : i32
    %411 = arith.addi %374, %c6_i32_175 : i32
    %412 = arith.index_cast %411 : i32 to index
    %413 = memref.load %arg2[%412] : memref<64xi32, #tpu.memory_space<smem>>
    %414 = arith.index_cast %413 : i32 to index
    %c0_176 = arith.constant 0 : index
    %c0_177 = arith.constant 0 : index
    %415 = vector.load %arg3[%414, %c0_176, %c0_177] : memref<50x1x512xf32, #tpu.memory_space<vmem>>, vector<1x1x512xf32>
    %416 = vector.shape_cast %415 : vector<1x1x512xf32> to vector<1x512xf32>
    %c7_i32_178 = arith.constant 7 : i32
    %417 = arith.addi %374, %c7_i32_178 : i32
    %418 = arith.index_cast %417 : i32 to index
    %419 = memref.load %arg2[%418] : memref<64xi32, #tpu.memory_space<smem>>
    %420 = arith.index_cast %419 : i32 to index
    %c0_179 = arith.constant 0 : index
    %c0_180 = arith.constant 0 : index
    %421 = vector.load %arg3[%420, %c0_179, %c0_180] : memref<50x1x512xf32, #tpu.memory_space<vmem>>, vector<1x1x512xf32>
    %422 = vector.shape_cast %421 : vector<1x1x512xf32> to vector<1x512xf32>
    %423 = tpu.concatenate %380, %386, %392, %398, %404, %410, %416, %422 in 0 : vector<1x512xf32>, vector<1x512xf32>, vector<1x512xf32>, vector<1x512xf32>, vector<1x512xf32>, vector<1x512xf32>, vector<1x512xf32>, vector<1x512xf32> -> vector<8x512xf32>
    %424 = arith.truncf %366 : vector<8x128xf32> to vector<8x128xbf16>
    %cst_181 = arith.constant dense<0.000000e+00> : vector<8x512xf32>
    %425 = tpu.matmul %424, %3, %cst_181 {dimension_numbers = #tpu.dot_dimension_numbers<[1], [0], [0], [1], [0, 0, 1, 1], [], []>} : vector<8x128xbf16>, vector<128x512xbf16>, vector<8x512xf32> -> vector<8x512xf32>
    %426 = arith.addf %423, %425 : vector<8x512xf32>
    %427 = vector.extract_strided_slice %426 {offsets = [0, 0], sizes = [8, 128], strides = [1, 1]} : vector<8x512xf32> to vector<8x128xf32>
    %cst_182 = arith.constant 5.000000e-01 : f32
    %428 = vector.broadcast %cst_182 : f32 to vector<8x128xf32>
    %429 = arith.mulf %428, %427 : vector<8x128xf32>
    %430 = math.tanh %429 : vector<8x128xf32>
    %cst_183 = arith.constant 1.000000e+00 : f32
    %431 = vector.broadcast %cst_183 : f32 to vector<8x128xf32>
    %432 = arith.addf %430, %431 : vector<8x128xf32>
    %cst_184 = arith.constant 5.000000e-01 : f32
    %433 = vector.broadcast %cst_184 : f32 to vector<8x128xf32>
    %434 = arith.mulf %433, %432 : vector<8x128xf32>
    %435 = vector.extract_strided_slice %426 {offsets = [0, 128], sizes = [8, 128], strides = [1, 1]} : vector<8x512xf32> to vector<8x128xf32>
    %cst_185 = arith.constant 5.000000e-01 : f32
    %436 = vector.broadcast %cst_185 : f32 to vector<8x128xf32>
    %437 = arith.mulf %436, %435 : vector<8x128xf32>
    %438 = math.tanh %437 : vector<8x128xf32>
    %cst_186 = arith.constant 1.000000e+00 : f32
    %439 = vector.broadcast %cst_186 : f32 to vector<8x128xf32>
    %440 = arith.addf %438, %439 : vector<8x128xf32>
    %cst_187 = arith.constant 5.000000e-01 : f32
    %441 = vector.broadcast %cst_187 : f32 to vector<8x128xf32>
    %442 = arith.mulf %441, %440 : vector<8x128xf32>
    %443 = vector.extract_strided_slice %426 {offsets = [0, 256], sizes = [8, 128], strides = [1, 1]} : vector<8x512xf32> to vector<8x128xf32>
    %444 = math.tanh %443 : vector<8x128xf32>
    %445 = vector.extract_strided_slice %426 {offsets = [0, 384], sizes = [8, 128], strides = [1, 1]} : vector<8x512xf32> to vector<8x128xf32>
    %cst_188 = arith.constant 5.000000e-01 : f32
    %446 = vector.broadcast %cst_188 : f32 to vector<8x128xf32>
    %447 = arith.mulf %446, %445 : vector<8x128xf32>
    %448 = math.tanh %447 : vector<8x128xf32>
    %cst_189 = arith.constant 1.000000e+00 : f32
    %449 = vector.broadcast %cst_189 : f32 to vector<8x128xf32>
    %450 = arith.addf %448, %449 : vector<8x128xf32>
    %cst_190 = arith.constant 5.000000e-01 : f32
    %451 = vector.broadcast %cst_190 : f32 to vector<8x128xf32>
    %452 = arith.mulf %451, %450 : vector<8x128xf32>
    %453 = arith.mulf %442, %364 : vector<8x128xf32>
    %454 = arith.mulf %434, %444 : vector<8x128xf32>
    %455 = arith.addf %453, %454 : vector<8x128xf32>
    %456 = math.tanh %455 : vector<8x128xf32>
    %457 = arith.mulf %452, %456 : vector<8x128xf32>
    %458 = arith.index_cast %c4_i32_154 : i32 to index
    %c0_191 = arith.constant 0 : index
    %c0_192 = arith.constant 0 : index
    %459 = vector.load %arg5[%458, %c0_191, %c0_192] : memref<8x8x128xf32, #tpu.memory_space<vmem>>, vector<1x8x128xf32>
    %460 = vector.shape_cast %459 : vector<1x8x128xf32> to vector<8x128xf32>
    %461 = vector.shape_cast %457 : vector<8x128xf32> to vector<1x8x128xf32>
    tpu.vector_store %arg5[%458, %c0_191, %c0_192], %461 {strides = array<i32>} : memref<8x8x128xf32, #tpu.memory_space<vmem>>, vector<1x8x128xf32>,
    %c5_i32_193 = arith.constant 5 : i32
    %c8_i32_194 = arith.constant 8 : i32
    %462 = arith.muli %arg1, %c8_i32_194 : i32
    %463 = arith.addi %462, %c5_i32_193 : i32
    %c8_i32_195 = arith.constant 8 : i32
    %464 = arith.muli %463, %c8_i32_195 : i32
    %465 = arith.addi %464, %4 : i32
    %c0_i32_196 = arith.constant 0 : i32
    %466 = arith.addi %465, %c0_i32_196 : i32
    %467 = arith.index_cast %466 : i32 to index
    %468 = memref.load %arg2[%467] : memref<64xi32, #tpu.memory_space<smem>>
    %469 = arith.index_cast %468 : i32 to index
    %c0_197 = arith.constant 0 : index
    %c0_198 = arith.constant 0 : index
    %470 = vector.load %arg3[%469, %c0_197, %c0_198] : memref<50x1x512xf32, #tpu.memory_space<vmem>>, vector<1x1x512xf32>
    %471 = vector.shape_cast %470 : vector<1x1x512xf32> to vector<1x512xf32>
    %c1_i32_199 = arith.constant 1 : i32
    %472 = arith.addi %465, %c1_i32_199 : i32
    %473 = arith.index_cast %472 : i32 to index
    %474 = memref.load %arg2[%473] : memref<64xi32, #tpu.memory_space<smem>>
    %475 = arith.index_cast %474 : i32 to index
    %c0_200 = arith.constant 0 : index
    %c0_201 = arith.constant 0 : index
    %476 = vector.load %arg3[%475, %c0_200, %c0_201] : memref<50x1x512xf32, #tpu.memory_space<vmem>>, vector<1x1x512xf32>
    %477 = vector.shape_cast %476 : vector<1x1x512xf32> to vector<1x512xf32>
    %c2_i32_202 = arith.constant 2 : i32
    %478 = arith.addi %465, %c2_i32_202 : i32
    %479 = arith.index_cast %478 : i32 to index
    %480 = memref.load %arg2[%479] : memref<64xi32, #tpu.memory_space<smem>>
    %481 = arith.index_cast %480 : i32 to index
    %c0_203 = arith.constant 0 : index
    %c0_204 = arith.constant 0 : index
    %482 = vector.load %arg3[%481, %c0_203, %c0_204] : memref<50x1x512xf32, #tpu.memory_space<vmem>>, vector<1x1x512xf32>
    %483 = vector.shape_cast %482 : vector<1x1x512xf32> to vector<1x512xf32>
    %c3_i32_205 = arith.constant 3 : i32
    %484 = arith.addi %465, %c3_i32_205 : i32
    %485 = arith.index_cast %484 : i32 to index
    %486 = memref.load %arg2[%485] : memref<64xi32, #tpu.memory_space<smem>>
    %487 = arith.index_cast %486 : i32 to index
    %c0_206 = arith.constant 0 : index
    %c0_207 = arith.constant 0 : index
    %488 = vector.load %arg3[%487, %c0_206, %c0_207] : memref<50x1x512xf32, #tpu.memory_space<vmem>>, vector<1x1x512xf32>
    %489 = vector.shape_cast %488 : vector<1x1x512xf32> to vector<1x512xf32>
    %c4_i32_208 = arith.constant 4 : i32
    %490 = arith.addi %465, %c4_i32_208 : i32
    %491 = arith.index_cast %490 : i32 to index
    %492 = memref.load %arg2[%491] : memref<64xi32, #tpu.memory_space<smem>>
    %493 = arith.index_cast %492 : i32 to index
    %c0_209 = arith.constant 0 : index
    %c0_210 = arith.constant 0 : index
    %494 = vector.load %arg3[%493, %c0_209, %c0_210] : memref<50x1x512xf32, #tpu.memory_space<vmem>>, vector<1x1x512xf32>
    %495 = vector.shape_cast %494 : vector<1x1x512xf32> to vector<1x512xf32>
    %c5_i32_211 = arith.constant 5 : i32
    %496 = arith.addi %465, %c5_i32_211 : i32
    %497 = arith.index_cast %496 : i32 to index
    %498 = memref.load %arg2[%497] : memref<64xi32, #tpu.memory_space<smem>>
    %499 = arith.index_cast %498 : i32 to index
    %c0_212 = arith.constant 0 : index
    %c0_213 = arith.constant 0 : index
    %500 = vector.load %arg3[%499, %c0_212, %c0_213] : memref<50x1x512xf32, #tpu.memory_space<vmem>>, vector<1x1x512xf32>
    %501 = vector.shape_cast %500 : vector<1x1x512xf32> to vector<1x512xf32>
    %c6_i32_214 = arith.constant 6 : i32
    %502 = arith.addi %465, %c6_i32_214 : i32
    %503 = arith.index_cast %502 : i32 to index
    %504 = memref.load %arg2[%503] : memref<64xi32, #tpu.memory_space<smem>>
    %505 = arith.index_cast %504 : i32 to index
    %c0_215 = arith.constant 0 : index
    %c0_216 = arith.constant 0 : index
    %506 = vector.load %arg3[%505, %c0_215, %c0_216] : memref<50x1x512xf32, #tpu.memory_space<vmem>>, vector<1x1x512xf32>
    %507 = vector.shape_cast %506 : vector<1x1x512xf32> to vector<1x512xf32>
    %c7_i32_217 = arith.constant 7 : i32
    %508 = arith.addi %465, %c7_i32_217 : i32
    %509 = arith.index_cast %508 : i32 to index
    %510 = memref.load %arg2[%509] : memref<64xi32, #tpu.memory_space<smem>>
    %511 = arith.index_cast %510 : i32 to index
    %c0_218 = arith.constant 0 : index
    %c0_219 = arith.constant 0 : index
    %512 = vector.load %arg3[%511, %c0_218, %c0_219] : memref<50x1x512xf32, #tpu.memory_space<vmem>>, vector<1x1x512xf32>
    %513 = vector.shape_cast %512 : vector<1x1x512xf32> to vector<1x512xf32>
    %514 = tpu.concatenate %471, %477, %483, %489, %495, %501, %507, %513 in 0 : vector<1x512xf32>, vector<1x512xf32>, vector<1x512xf32>, vector<1x512xf32>, vector<1x512xf32>, vector<1x512xf32>, vector<1x512xf32>, vector<1x512xf32> -> vector<8x512xf32>
    %515 = arith.truncf %457 : vector<8x128xf32> to vector<8x128xbf16>
    %cst_220 = arith.constant dense<0.000000e+00> : vector<8x512xf32>
    %516 = tpu.matmul %515, %3, %cst_220 {dimension_numbers = #tpu.dot_dimension_numbers<[1], [0], [0], [1], [0, 0, 1, 1], [], []>} : vector<8x128xbf16>, vector<128x512xbf16>, vector<8x512xf32> -> vector<8x512xf32>
    %517 = arith.addf %514, %516 : vector<8x512xf32>
    %518 = vector.extract_strided_slice %517 {offsets = [0, 0], sizes = [8, 128], strides = [1, 1]} : vector<8x512xf32> to vector<8x128xf32>
    %cst_221 = arith.constant 5.000000e-01 : f32
    %519 = vector.broadcast %cst_221 : f32 to vector<8x128xf32>
    %520 = arith.mulf %519, %518 : vector<8x128xf32>
    %521 = math.tanh %520 : vector<8x128xf32>
    %cst_222 = arith.constant 1.000000e+00 : f32
    %522 = vector.broadcast %cst_222 : f32 to vector<8x128xf32>
    %523 = arith.addf %521, %522 : vector<8x128xf32>
    %cst_223 = arith.constant 5.000000e-01 : f32
    %524 = vector.broadcast %cst_223 : f32 to vector<8x128xf32>
    %525 = arith.mulf %524, %523 : vector<8x128xf32>
    %526 = vector.extract_strided_slice %517 {offsets = [0, 128], sizes = [8, 128], strides = [1, 1]} : vector<8x512xf32> to vector<8x128xf32>
    %cst_224 = arith.constant 5.000000e-01 : f32
    %527 = vector.broadcast %cst_224 : f32 to vector<8x128xf32>
    %528 = arith.mulf %527, %526 : vector<8x128xf32>
    %529 = math.tanh %528 : vector<8x128xf32>
    %cst_225 = arith.constant 1.000000e+00 : f32
    %530 = vector.broadcast %cst_225 : f32 to vector<8x128xf32>
    %531 = arith.addf %529, %530 : vector<8x128xf32>
    %cst_226 = arith.constant 5.000000e-01 : f32
    %532 = vector.broadcast %cst_226 : f32 to vector<8x128xf32>
    %533 = arith.mulf %532, %531 : vector<8x128xf32>
    %534 = vector.extract_strided_slice %517 {offsets = [0, 256], sizes = [8, 128], strides = [1, 1]} : vector<8x512xf32> to vector<8x128xf32>
    %535 = math.tanh %534 : vector<8x128xf32>
    %536 = vector.extract_strided_slice %517 {offsets = [0, 384], sizes = [8, 128], strides = [1, 1]} : vector<8x512xf32> to vector<8x128xf32>
    %cst_227 = arith.constant 5.000000e-01 : f32
    %537 = vector.broadcast %cst_227 : f32 to vector<8x128xf32>
    %538 = arith.mulf %537, %536 : vector<8x128xf32>
    %539 = math.tanh %538 : vector<8x128xf32>
    %cst_228 = arith.constant 1.000000e+00 : f32
    %540 = vector.broadcast %cst_228 : f32 to vector<8x128xf32>
    %541 = arith.addf %539, %540 : vector<8x128xf32>
    %cst_229 = arith.constant 5.000000e-01 : f32
    %542 = vector.broadcast %cst_229 : f32 to vector<8x128xf32>
    %543 = arith.mulf %542, %541 : vector<8x128xf32>
    %544 = arith.mulf %533, %455 : vector<8x128xf32>
    %545 = arith.mulf %525, %535 : vector<8x128xf32>
    %546 = arith.addf %544, %545 : vector<8x128xf32>
    %547 = math.tanh %546 : vector<8x128xf32>
    %548 = arith.mulf %543, %547 : vector<8x128xf32>
    %549 = arith.index_cast %c5_i32_193 : i32 to index
    %c0_230 = arith.constant 0 : index
    %c0_231 = arith.constant 0 : index
    %550 = vector.load %arg5[%549, %c0_230, %c0_231] : memref<8x8x128xf32, #tpu.memory_space<vmem>>, vector<1x8x128xf32>
    %551 = vector.shape_cast %550 : vector<1x8x128xf32> to vector<8x128xf32>
    %552 = vector.shape_cast %548 : vector<8x128xf32> to vector<1x8x128xf32>
    tpu.vector_store %arg5[%549, %c0_230, %c0_231], %552 {strides = array<i32>} : memref<8x8x128xf32, #tpu.memory_space<vmem>>, vector<1x8x128xf32>,
    %c6_i32_232 = arith.constant 6 : i32
    %c8_i32_233 = arith.constant 8 : i32
    %553 = arith.muli %arg1, %c8_i32_233 : i32
    %554 = arith.addi %553, %c6_i32_232 : i32
    %c8_i32_234 = arith.constant 8 : i32
    %555 = arith.muli %554, %c8_i32_234 : i32
    %556 = arith.addi %555, %4 : i32
    %c0_i32_235 = arith.constant 0 : i32
    %557 = arith.addi %556, %c0_i32_235 : i32
    %558 = arith.index_cast %557 : i32 to index
    %559 = memref.load %arg2[%558] : memref<64xi32, #tpu.memory_space<smem>>
    %560 = arith.index_cast %559 : i32 to index
    %c0_236 = arith.constant 0 : index
    %c0_237 = arith.constant 0 : index
    %561 = vector.load %arg3[%560, %c0_236, %c0_237] : memref<50x1x512xf32, #tpu.memory_space<vmem>>, vector<1x1x512xf32>
    %562 = vector.shape_cast %561 : vector<1x1x512xf32> to vector<1x512xf32>
    %c1_i32_238 = arith.constant 1 : i32
    %563 = arith.addi %556, %c1_i32_238 : i32
    %564 = arith.index_cast %563 : i32 to index
    %565 = memref.load %arg2[%564] : memref<64xi32, #tpu.memory_space<smem>>
    %566 = arith.index_cast %565 : i32 to index
    %c0_239 = arith.constant 0 : index
    %c0_240 = arith.constant 0 : index
    %567 = vector.load %arg3[%566, %c0_239, %c0_240] : memref<50x1x512xf32, #tpu.memory_space<vmem>>, vector<1x1x512xf32>
    %568 = vector.shape_cast %567 : vector<1x1x512xf32> to vector<1x512xf32>
    %c2_i32_241 = arith.constant 2 : i32
    %569 = arith.addi %556, %c2_i32_241 : i32
    %570 = arith.index_cast %569 : i32 to index
    %571 = memref.load %arg2[%570] : memref<64xi32, #tpu.memory_space<smem>>
    %572 = arith.index_cast %571 : i32 to index
    %c0_242 = arith.constant 0 : index
    %c0_243 = arith.constant 0 : index
    %573 = vector.load %arg3[%572, %c0_242, %c0_243] : memref<50x1x512xf32, #tpu.memory_space<vmem>>, vector<1x1x512xf32>
    %574 = vector.shape_cast %573 : vector<1x1x512xf32> to vector<1x512xf32>
    %c3_i32_244 = arith.constant 3 : i32
    %575 = arith.addi %556, %c3_i32_244 : i32
    %576 = arith.index_cast %575 : i32 to index
    %577 = memref.load %arg2[%576] : memref<64xi32, #tpu.memory_space<smem>>
    %578 = arith.index_cast %577 : i32 to index
    %c0_245 = arith.constant 0 : index
    %c0_246 = arith.constant 0 : index
    %579 = vector.load %arg3[%578, %c0_245, %c0_246] : memref<50x1x512xf32, #tpu.memory_space<vmem>>, vector<1x1x512xf32>
    %580 = vector.shape_cast %579 : vector<1x1x512xf32> to vector<1x512xf32>
    %c4_i32_247 = arith.constant 4 : i32
    %581 = arith.addi %556, %c4_i32_247 : i32
    %582 = arith.index_cast %581 : i32 to index
    %583 = memref.load %arg2[%582] : memref<64xi32, #tpu.memory_space<smem>>
    %584 = arith.index_cast %583 : i32 to index
    %c0_248 = arith.constant 0 : index
    %c0_249 = arith.constant 0 : index
    %585 = vector.load %arg3[%584, %c0_248, %c0_249] : memref<50x1x512xf32, #tpu.memory_space<vmem>>, vector<1x1x512xf32>
    %586 = vector.shape_cast %585 : vector<1x1x512xf32> to vector<1x512xf32>
    %c5_i32_250 = arith.constant 5 : i32
    %587 = arith.addi %556, %c5_i32_250 : i32
    %588 = arith.index_cast %587 : i32 to index
    %589 = memref.load %arg2[%588] : memref<64xi32, #tpu.memory_space<smem>>
    %590 = arith.index_cast %589 : i32 to index
    %c0_251 = arith.constant 0 : index
    %c0_252 = arith.constant 0 : index
    %591 = vector.load %arg3[%590, %c0_251, %c0_252] : memref<50x1x512xf32, #tpu.memory_space<vmem>>, vector<1x1x512xf32>
    %592 = vector.shape_cast %591 : vector<1x1x512xf32> to vector<1x512xf32>
    %c6_i32_253 = arith.constant 6 : i32
    %593 = arith.addi %556, %c6_i32_253 : i32
    %594 = arith.index_cast %593 : i32 to index
    %595 = memref.load %arg2[%594] : memref<64xi32, #tpu.memory_space<smem>>
    %596 = arith.index_cast %595 : i32 to index
    %c0_254 = arith.constant 0 : index
    %c0_255 = arith.constant 0 : index
    %597 = vector.load %arg3[%596, %c0_254, %c0_255] : memref<50x1x512xf32, #tpu.memory_space<vmem>>, vector<1x1x512xf32>
    %598 = vector.shape_cast %597 : vector<1x1x512xf32> to vector<1x512xf32>
    %c7_i32_256 = arith.constant 7 : i32
    %599 = arith.addi %556, %c7_i32_256 : i32
    %600 = arith.index_cast %599 : i32 to index
    %601 = memref.load %arg2[%600] : memref<64xi32, #tpu.memory_space<smem>>
    %602 = arith.index_cast %601 : i32 to index
    %c0_257 = arith.constant 0 : index
    %c0_258 = arith.constant 0 : index
    %603 = vector.load %arg3[%602, %c0_257, %c0_258] : memref<50x1x512xf32, #tpu.memory_space<vmem>>, vector<1x1x512xf32>
    %604 = vector.shape_cast %603 : vector<1x1x512xf32> to vector<1x512xf32>
    %605 = tpu.concatenate %562, %568, %574, %580, %586, %592, %598, %604 in 0 : vector<1x512xf32>, vector<1x512xf32>, vector<1x512xf32>, vector<1x512xf32>, vector<1x512xf32>, vector<1x512xf32>, vector<1x512xf32>, vector<1x512xf32> -> vector<8x512xf32>
    %606 = arith.truncf %548 : vector<8x128xf32> to vector<8x128xbf16>
    %cst_259 = arith.constant dense<0.000000e+00> : vector<8x512xf32>
    %607 = tpu.matmul %606, %3, %cst_259 {dimension_numbers = #tpu.dot_dimension_numbers<[1], [0], [0], [1], [0, 0, 1, 1], [], []>} : vector<8x128xbf16>, vector<128x512xbf16>, vector<8x512xf32> -> vector<8x512xf32>
    %608 = arith.addf %605, %607 : vector<8x512xf32>
    %609 = vector.extract_strided_slice %608 {offsets = [0, 0], sizes = [8, 128], strides = [1, 1]} : vector<8x512xf32> to vector<8x128xf32>
    %cst_260 = arith.constant 5.000000e-01 : f32
    %610 = vector.broadcast %cst_260 : f32 to vector<8x128xf32>
    %611 = arith.mulf %610, %609 : vector<8x128xf32>
    %612 = math.tanh %611 : vector<8x128xf32>
    %cst_261 = arith.constant 1.000000e+00 : f32
    %613 = vector.broadcast %cst_261 : f32 to vector<8x128xf32>
    %614 = arith.addf %612, %613 : vector<8x128xf32>
    %cst_262 = arith.constant 5.000000e-01 : f32
    %615 = vector.broadcast %cst_262 : f32 to vector<8x128xf32>
    %616 = arith.mulf %615, %614 : vector<8x128xf32>
    %617 = vector.extract_strided_slice %608 {offsets = [0, 128], sizes = [8, 128], strides = [1, 1]} : vector<8x512xf32> to vector<8x128xf32>
    %cst_263 = arith.constant 5.000000e-01 : f32
    %618 = vector.broadcast %cst_263 : f32 to vector<8x128xf32>
    %619 = arith.mulf %618, %617 : vector<8x128xf32>
    %620 = math.tanh %619 : vector<8x128xf32>
    %cst_264 = arith.constant 1.000000e+00 : f32
    %621 = vector.broadcast %cst_264 : f32 to vector<8x128xf32>
    %622 = arith.addf %620, %621 : vector<8x128xf32>
    %cst_265 = arith.constant 5.000000e-01 : f32
    %623 = vector.broadcast %cst_265 : f32 to vector<8x128xf32>
    %624 = arith.mulf %623, %622 : vector<8x128xf32>
    %625 = vector.extract_strided_slice %608 {offsets = [0, 256], sizes = [8, 128], strides = [1, 1]} : vector<8x512xf32> to vector<8x128xf32>
    %626 = math.tanh %625 : vector<8x128xf32>
    %627 = vector.extract_strided_slice %608 {offsets = [0, 384], sizes = [8, 128], strides = [1, 1]} : vector<8x512xf32> to vector<8x128xf32>
    %cst_266 = arith.constant 5.000000e-01 : f32
    %628 = vector.broadcast %cst_266 : f32 to vector<8x128xf32>
    %629 = arith.mulf %628, %627 : vector<8x128xf32>
    %630 = math.tanh %629 : vector<8x128xf32>
    %cst_267 = arith.constant 1.000000e+00 : f32
    %631 = vector.broadcast %cst_267 : f32 to vector<8x128xf32>
    %632 = arith.addf %630, %631 : vector<8x128xf32>
    %cst_268 = arith.constant 5.000000e-01 : f32
    %633 = vector.broadcast %cst_268 : f32 to vector<8x128xf32>
    %634 = arith.mulf %633, %632 : vector<8x128xf32>
    %635 = arith.mulf %624, %546 : vector<8x128xf32>
    %636 = arith.mulf %616, %626 : vector<8x128xf32>
    %637 = arith.addf %635, %636 : vector<8x128xf32>
    %638 = math.tanh %637 : vector<8x128xf32>
    %639 = arith.mulf %634, %638 : vector<8x128xf32>
    %640 = arith.index_cast %c6_i32_232 : i32 to index
    %c0_269 = arith.constant 0 : index
    %c0_270 = arith.constant 0 : index
    %641 = vector.load %arg5[%640, %c0_269, %c0_270] : memref<8x8x128xf32, #tpu.memory_space<vmem>>, vector<1x8x128xf32>
    %642 = vector.shape_cast %641 : vector<1x8x128xf32> to vector<8x128xf32>
    %643 = vector.shape_cast %639 : vector<8x128xf32> to vector<1x8x128xf32>
    tpu.vector_store %arg5[%640, %c0_269, %c0_270], %643 {strides = array<i32>} : memref<8x8x128xf32, #tpu.memory_space<vmem>>, vector<1x8x128xf32>,
    %c7_i32_271 = arith.constant 7 : i32
    %c8_i32_272 = arith.constant 8 : i32
    %644 = arith.muli %arg1, %c8_i32_272 : i32
    %645 = arith.addi %644, %c7_i32_271 : i32
    %c8_i32_273 = arith.constant 8 : i32
    %646 = arith.muli %645, %c8_i32_273 : i32
    %647 = arith.addi %646, %4 : i32
    %c0_i32_274 = arith.constant 0 : i32
    %648 = arith.addi %647, %c0_i32_274 : i32
    %649 = arith.index_cast %648 : i32 to index
    %650 = memref.load %arg2[%649] : memref<64xi32, #tpu.memory_space<smem>>
    %651 = arith.index_cast %650 : i32 to index
    %c0_275 = arith.constant 0 : index
    %c0_276 = arith.constant 0 : index
    %652 = vector.load %arg3[%651, %c0_275, %c0_276] : memref<50x1x512xf32, #tpu.memory_space<vmem>>, vector<1x1x512xf32>
    %653 = vector.shape_cast %652 : vector<1x1x512xf32> to vector<1x512xf32>
    %c1_i32_277 = arith.constant 1 : i32
    %654 = arith.addi %647, %c1_i32_277 : i32
    %655 = arith.index_cast %654 : i32 to index
    %656 = memref.load %arg2[%655] : memref<64xi32, #tpu.memory_space<smem>>
    %657 = arith.index_cast %656 : i32 to index
    %c0_278 = arith.constant 0 : index
    %c0_279 = arith.constant 0 : index
    %658 = vector.load %arg3[%657, %c0_278, %c0_279] : memref<50x1x512xf32, #tpu.memory_space<vmem>>, vector<1x1x512xf32>
    %659 = vector.shape_cast %658 : vector<1x1x512xf32> to vector<1x512xf32>
    %c2_i32_280 = arith.constant 2 : i32
    %660 = arith.addi %647, %c2_i32_280 : i32
    %661 = arith.index_cast %660 : i32 to index
    %662 = memref.load %arg2[%661] : memref<64xi32, #tpu.memory_space<smem>>
    %663 = arith.index_cast %662 : i32 to index
    %c0_281 = arith.constant 0 : index
    %c0_282 = arith.constant 0 : index
    %664 = vector.load %arg3[%663, %c0_281, %c0_282] : memref<50x1x512xf32, #tpu.memory_space<vmem>>, vector<1x1x512xf32>
    %665 = vector.shape_cast %664 : vector<1x1x512xf32> to vector<1x512xf32>
    %c3_i32_283 = arith.constant 3 : i32
    %666 = arith.addi %647, %c3_i32_283 : i32
    %667 = arith.index_cast %666 : i32 to index
    %668 = memref.load %arg2[%667] : memref<64xi32, #tpu.memory_space<smem>>
    %669 = arith.index_cast %668 : i32 to index
    %c0_284 = arith.constant 0 : index
    %c0_285 = arith.constant 0 : index
    %670 = vector.load %arg3[%669, %c0_284, %c0_285] : memref<50x1x512xf32, #tpu.memory_space<vmem>>, vector<1x1x512xf32>
    %671 = vector.shape_cast %670 : vector<1x1x512xf32> to vector<1x512xf32>
    %c4_i32_286 = arith.constant 4 : i32
    %672 = arith.addi %647, %c4_i32_286 : i32
    %673 = arith.index_cast %672 : i32 to index
    %674 = memref.load %arg2[%673] : memref<64xi32, #tpu.memory_space<smem>>
    %675 = arith.index_cast %674 : i32 to index
    %c0_287 = arith.constant 0 : index
    %c0_288 = arith.constant 0 : index
    %676 = vector.load %arg3[%675, %c0_287, %c0_288] : memref<50x1x512xf32, #tpu.memory_space<vmem>>, vector<1x1x512xf32>
    %677 = vector.shape_cast %676 : vector<1x1x512xf32> to vector<1x512xf32>
    %c5_i32_289 = arith.constant 5 : i32
    %678 = arith.addi %647, %c5_i32_289 : i32
    %679 = arith.index_cast %678 : i32 to index
    %680 = memref.load %arg2[%679] : memref<64xi32, #tpu.memory_space<smem>>
    %681 = arith.index_cast %680 : i32 to index
    %c0_290 = arith.constant 0 : index
    %c0_291 = arith.constant 0 : index
    %682 = vector.load %arg3[%681, %c0_290, %c0_291] : memref<50x1x512xf32, #tpu.memory_space<vmem>>, vector<1x1x512xf32>
    %683 = vector.shape_cast %682 : vector<1x1x512xf32> to vector<1x512xf32>
    %c6_i32_292 = arith.constant 6 : i32
    %684 = arith.addi %647, %c6_i32_292 : i32
    %685 = arith.index_cast %684 : i32 to index
    %686 = memref.load %arg2[%685] : memref<64xi32, #tpu.memory_space<smem>>
    %687 = arith.index_cast %686 : i32 to index
    %c0_293 = arith.constant 0 : index
    %c0_294 = arith.constant 0 : index
    %688 = vector.load %arg3[%687, %c0_293, %c0_294] : memref<50x1x512xf32, #tpu.memory_space<vmem>>, vector<1x1x512xf32>
    %689 = vector.shape_cast %688 : vector<1x1x512xf32> to vector<1x512xf32>
    %c7_i32_295 = arith.constant 7 : i32
    %690 = arith.addi %647, %c7_i32_295 : i32
    %691 = arith.index_cast %690 : i32 to index
    %692 = memref.load %arg2[%691] : memref<64xi32, #tpu.memory_space<smem>>
    %693 = arith.index_cast %692 : i32 to index
    %c0_296 = arith.constant 0 : index
    %c0_297 = arith.constant 0 : index
    %694 = vector.load %arg3[%693, %c0_296, %c0_297] : memref<50x1x512xf32, #tpu.memory_space<vmem>>, vector<1x1x512xf32>
    %695 = vector.shape_cast %694 : vector<1x1x512xf32> to vector<1x512xf32>
    %696 = tpu.concatenate %653, %659, %665, %671, %677, %683, %689, %695 in 0 : vector<1x512xf32>, vector<1x512xf32>, vector<1x512xf32>, vector<1x512xf32>, vector<1x512xf32>, vector<1x512xf32>, vector<1x512xf32>, vector<1x512xf32> -> vector<8x512xf32>
    %697 = arith.truncf %639 : vector<8x128xf32> to vector<8x128xbf16>
    %cst_298 = arith.constant dense<0.000000e+00> : vector<8x512xf32>
    %698 = tpu.matmul %697, %3, %cst_298 {dimension_numbers = #tpu.dot_dimension_numbers<[1], [0], [0], [1], [0, 0, 1, 1], [], []>} : vector<8x128xbf16>, vector<128x512xbf16>, vector<8x512xf32> -> vector<8x512xf32>
    %699 = arith.addf %696, %698 : vector<8x512xf32>
    %700 = vector.extract_strided_slice %699 {offsets = [0, 0], sizes = [8, 128], strides = [1, 1]} : vector<8x512xf32> to vector<8x128xf32>
    %cst_299 = arith.constant 5.000000e-01 : f32
    %701 = vector.broadcast %cst_299 : f32 to vector<8x128xf32>
    %702 = arith.mulf %701, %700 : vector<8x128xf32>
    %703 = math.tanh %702 : vector<8x128xf32>
    %cst_300 = arith.constant 1.000000e+00 : f32
    %704 = vector.broadcast %cst_300 : f32 to vector<8x128xf32>
    %705 = arith.addf %703, %704 : vector<8x128xf32>
    %cst_301 = arith.constant 5.000000e-01 : f32
    %706 = vector.broadcast %cst_301 : f32 to vector<8x128xf32>
    %707 = arith.mulf %706, %705 : vector<8x128xf32>
    %708 = vector.extract_strided_slice %699 {offsets = [0, 128], sizes = [8, 128], strides = [1, 1]} : vector<8x512xf32> to vector<8x128xf32>
    %cst_302 = arith.constant 5.000000e-01 : f32
    %709 = vector.broadcast %cst_302 : f32 to vector<8x128xf32>
    %710 = arith.mulf %709, %708 : vector<8x128xf32>
    %711 = math.tanh %710 : vector<8x128xf32>
    %cst_303 = arith.constant 1.000000e+00 : f32
    %712 = vector.broadcast %cst_303 : f32 to vector<8x128xf32>
    %713 = arith.addf %711, %712 : vector<8x128xf32>
    %cst_304 = arith.constant 5.000000e-01 : f32
    %714 = vector.broadcast %cst_304 : f32 to vector<8x128xf32>
    %715 = arith.mulf %714, %713 : vector<8x128xf32>
    %716 = vector.extract_strided_slice %699 {offsets = [0, 256], sizes = [8, 128], strides = [1, 1]} : vector<8x512xf32> to vector<8x128xf32>
    %717 = math.tanh %716 : vector<8x128xf32>
    %718 = vector.extract_strided_slice %699 {offsets = [0, 384], sizes = [8, 128], strides = [1, 1]} : vector<8x512xf32> to vector<8x128xf32>
    %cst_305 = arith.constant 5.000000e-01 : f32
    %719 = vector.broadcast %cst_305 : f32 to vector<8x128xf32>
    %720 = arith.mulf %719, %718 : vector<8x128xf32>
    %721 = math.tanh %720 : vector<8x128xf32>
    %cst_306 = arith.constant 1.000000e+00 : f32
    %722 = vector.broadcast %cst_306 : f32 to vector<8x128xf32>
    %723 = arith.addf %721, %722 : vector<8x128xf32>
    %cst_307 = arith.constant 5.000000e-01 : f32
    %724 = vector.broadcast %cst_307 : f32 to vector<8x128xf32>
    %725 = arith.mulf %724, %723 : vector<8x128xf32>
    %726 = arith.mulf %715, %637 : vector<8x128xf32>
    %727 = arith.mulf %707, %717 : vector<8x128xf32>
    %728 = arith.addf %726, %727 : vector<8x128xf32>
    %729 = math.tanh %728 : vector<8x128xf32>
    %730 = arith.mulf %725, %729 : vector<8x128xf32>
    %731 = arith.index_cast %c7_i32_271 : i32 to index
    %c0_308 = arith.constant 0 : index
    %c0_309 = arith.constant 0 : index
    %732 = vector.load %arg5[%731, %c0_308, %c0_309] : memref<8x8x128xf32, #tpu.memory_space<vmem>>, vector<1x8x128xf32>
    %733 = vector.shape_cast %732 : vector<1x8x128xf32> to vector<8x128xf32>
    %734 = vector.shape_cast %730 : vector<8x128xf32> to vector<1x8x128xf32>
    tpu.vector_store %arg5[%731, %c0_308, %c0_309], %734 {strides = array<i32>} : memref<8x8x128xf32, #tpu.memory_space<vmem>>, vector<1x8x128xf32>,
    %c8_i32_310 = arith.constant 8 : i32
    %c0_311 = arith.constant 0 : index
    %c0_312 = arith.constant 0 : index
    %735 = vector.load %arg8[%c0_311, %c0_312] : memref<8x128xf32, #tpu.memory_space<vmem>>, vector<8x128xf32>
    tpu.vector_store %arg8[%c0_311, %c0_312], %730 {strides = array<i32>} : memref<8x128xf32, #tpu.memory_space<vmem>>, vector<8x128xf32>,
    %c0_313 = arith.constant 0 : index
    %c0_314 = arith.constant 0 : index
    %736 = vector.load %arg9[%c0_313, %c0_314] : memref<8x128xf32, #tpu.memory_space<vmem>>, vector<8x128xf32>
    tpu.vector_store %arg9[%c0_313, %c0_314], %728 {strides = array<i32>} : memref<8x128xf32, #tpu.memory_space<vmem>>, vector<8x128xf32>,
    %c0_i32_315 = arith.constant 0 : i32
    %737 = arith.cmpi eq, %arg1, %c0_i32_315 : i32
    %738 = arith.extui %737 : i1 to i32
    %c0_i32_316 = arith.constant 0 : i32
    %739 = arith.cmpi ne, %738, %c0_i32_316 : i32
    scf.if %739 {
      %c0_317 = arith.constant 0 : index
      %c0_318 = arith.constant 0 : index
      %c0_319 = arith.constant 0 : index
      %740 = vector.load %arg6[%c0_317, %c0_318, %c0_319] : memref<1x8x128xf32, #tpu.memory_space<vmem>>, vector<1x8x128xf32>
      %741 = vector.shape_cast %740 : vector<1x8x128xf32> to vector<8x128xf32>
      %742 = vector.shape_cast %730 : vector<8x128xf32> to vector<1x8x128xf32>
      tpu.vector_store %arg6[%c0_317, %c0_318, %c0_319], %742 {strides = array<i32>} : memref<1x8x128xf32, #tpu.memory_space<vmem>>, vector<1x8x128xf32>,
      %c0_320 = arith.constant 0 : index
      %c0_321 = arith.constant 0 : index
      %c0_322 = arith.constant 0 : index
      %743 = vector.load %arg7[%c0_320, %c0_321, %c0_322] : memref<1x8x128xf32, #tpu.memory_space<vmem>>, vector<1x8x128xf32>
      %744 = vector.shape_cast %743 : vector<1x8x128xf32> to vector<8x128xf32>
      %745 = vector.shape_cast %728 : vector<8x128xf32> to vector<1x8x128xf32>
      tpu.vector_store %arg7[%c0_320, %c0_321, %c0_322], %745 {strides = array<i32>} : memref<1x8x128xf32, #tpu.memory_space<vmem>>, vector<1x8x128xf32>,
    } else {
    }
    return
  }
  func.func @transform_0(%arg0: i32, %arg1: i32, %arg2: memref<64xi32, #tpu.memory_space<smem>>) -> (i32, i32, i32) {
    %c0_i32 = arith.constant 0 : i32
    %c0_i32_0 = arith.constant 0 : i32
    %c0_i32_1 = arith.constant 0 : i32
    %c0_i32_2 = arith.constant 0 : i32
    return %c0_i32, %c0_i32_0, %c0_i32_1 : i32, i32, i32
  }
  func.func @transform_1(%arg0: i32, %arg1: i32, %arg2: memref<64xi32, #tpu.memory_space<smem>>) -> (i32, i32) {
    %c0_i32 = arith.constant 0 : i32
    %c0_i32_0 = arith.constant 0 : i32
    %c0_i32_1 = arith.constant 0 : i32
    return %c0_i32, %c0_i32_0 : i32, i32
  }
  func.func @transform_2(%arg0: i32, %arg1: i32, %arg2: memref<64xi32, #tpu.memory_space<smem>>) -> (i32, i32, i32) {
    %c0_i32 = arith.constant 0 : i32
    %c0_i32_0 = arith.constant 0 : i32
    return %arg1, %arg0, %c0_i32 : i32, i32, i32
  }
  func.func @transform_3(%arg0: i32, %arg1: i32, %arg2: memref<64xi32, #tpu.memory_space<smem>>) -> (i32, i32, i32) {
    %c0_i32 = arith.constant 0 : i32
    %c0_i32_0 = arith.constant 0 : i32
    %c0_i32_1 = arith.constant 0 : i32
    return %c0_i32, %arg0, %c0_i32_0 : i32, i32, i32
  }
  func.func @transform_4(%arg0: i32, %arg1: i32, %arg2: memref<64xi32, #tpu.memory_space<smem>>) -> (i32, i32, i32) {
    %c0_i32 = arith.constant 0 : i32
    %c0_i32_0 = arith.constant 0 : i32
    %c0_i32_1 = arith.constant 0 : i32
    return %c0_i32, %arg0, %c0_i32_0 : i32, i32, i32
  }
}

</mosaic_0001>

<llo_original>
// kernel: a_call__.1
$region0: #{a_call__.1}
  #allocation0 [shape = 'u32[]', space=smem, size = 0x4, offset = 0x4, fixed_abs, tag = 'smem constant byte address 0x4 - core index']
  #allocation1 [shape = 'u32[72,128]{1,0:T(1,128)}', space=vmem, size = 0x9000, scoped, tag = 'internal scratch']
  #allocation2 [shape = 'f32[8,128]{1,0:T(8,128)}', space=vmem, size = 0x1000, scoped, tag = 'scratch operand']
  #allocation3 [shape = 'f32[8,128]{1,0:T(8,128)}', space=vmem, size = 0x1000, scoped, tag = 'scratch operand']
  #allocation4 [shape = 's32[1]{0}', space=sflag, size = 0x4, scoped, tag = 'scoped memory for a_call__.1']
  #allocation5 [shape = 'u8[512]{0}', space=smem, size = 0x200, scoped, tag = 'prefetched SMEM operand 0']
  %s0 = inlined_call_operand.vmem [shape: s32[64], index: 0, kind: input, shape index: {}]
  %s1 = inlined_call_operand.hbm [shape: f32[50,1,512], index: 1, kind: input, shape index: {}]
  %s2 = inlined_call_operand.hbm [shape: bf16[128,512], index: 2, kind: input, shape index: {}]
  %s3 = inlined_call_operand.vmem [shape: f32[8,8,128], index: 3, kind: output, shape index: {0}]
  %s4 = inlined_call_operand.vmem [shape: f32[1,8,128], index: 4, kind: output, shape index: {1}]
  %s5 = inlined_call_operand.vmem [shape: f32[1,8,128], index: 5, kind: output, shape index: {2}]
  %6 = xla_tuple %s3, %s4, %s5
  %s7 = sld [smem:[#allocation0]]
  $region50: #{a_call__.1} parent=0
    _
  %s9 = ssub.s32 1, %s7
  %s10 = scalar_select 0, %s9, %s7
  %s12 = sshll.u32 %s0, 4
  %s13 = int_to_ptr.vmem [resolvable:$true] %s12
  %15 = dma.vmem_to_smem %s13, 16, [#allocation5], [#allocation4]
  %17 = dma.done [#allocation4], 16
  %18 = sfence
  $region1: #{a_call__.1} parent=0
    #allocation6 [shape = 'u8[102400]{0}', space=vmem, size = 0x19000, scoped, tag = 'input window, operand 1, single buffered']
    #allocation7 [shape = 's32[1]{0}', space=sflag, size = 0x4, scoped, tag = 'scoped memory for a_call__.1']
    #allocation8 [shape = 'u8[131072]{0}', space=vmem, size = 0x20000, scoped, tag = 'input window, operand 2, single buffered']
    #allocation9 [shape = 's32[1]{0}', space=sflag, size = 0x4, scoped, tag = 'scoped memory for a_call__.1']
    %19 = vsyncpa [#allocation7], 0
    %20 = vsyncpa [#allocation9], 0
    // Predicated region
    $region2: #{a_call__.1} parent=1 // pred_check
      _
    $region3: #{a_call__.1} parent=1 // pred_check_branch
      %22 = sbr.rel (0) target = $region5
    $region4: #{a_call__.1} parent=1 // pred_region
      %24 = vsyncadd [#allocation7], 0
      %s25 = sshll.u32 %s1, 4
      %s26 = int_to_ptr.hbm [resolvable:$true] %s25
      %s27 = sshll.u32 [#allocation6], 4
      %s28 = int_to_ptr.vmem [resolvable:$true] %s27
      %33 = dma.hbm_to_vmem [thread:$0]  %s26, 3200, %s28, [#allocation7], 64, 64, 4
    $region5: #{a_call__.1} parent=1 // pred_fallthru
      _
    // Predicated region
    $region6: #{a_call__.1} parent=1 // pred_check
      _
    $region7: #{a_call__.1} parent=1 // pred_check_branch
      %35 = sbr.rel (0) target = $region9
    $region8: #{a_call__.1} parent=1 // pred_region
      %37 = vsyncadd [#allocation9], 0
      %s38 = sshll.u32 %s2, 4
      %s39 = int_to_ptr.hbm [resolvable:$true] %s38
      %s40 = sshll.u32 [#allocation8], 4
      %s41 = int_to_ptr.vmem [resolvable:$true] %s40
      %46 = dma.hbm_to_vmem [thread:$0]  %s39, 4096, %s41, [#allocation9], 256, 256, 16
    $region9: #{a_call__.1} parent=1 // pred_fallthru
      _
    // Predicated region
    $region10: #{a_call__.1} parent=1 // pred_check
      _
    $region11: #{a_call__.1} parent=1 // pred_check_branch
      %48 = sbr.rel (0) target = $region13
    $region12: #{a_call__.1} parent=1 // pred_region
      %50 = dma.done [#allocation7], 3200
    $region13: #{a_call__.1} parent=1 // pred_fallthru
      _
    // Predicated region
    $region14: #{a_call__.1} parent=1 // pred_check
      _
    $region15: #{a_call__.1} parent=1 // pred_check_branch
      %52 = sbr.rel (0) target = $region17
    $region16: #{a_call__.1} parent=1 // pred_region
      %54 = dma.done [#allocation9], 4096
    $region17: #{a_call__.1} parent=1 // pred_fallthru
      _
    %p55 = scmp.eq.s32.totalorder 0, 0
    // Predicated region
    $region18: #{a_call__.1} parent=1 // pred_check
      %p56 = pneg %p55
    $region19: #{a_call__.1} parent=1 // pred_check_branch
      %58 = sbr.rel (%p56) target = $region21
    $region20: #{a_call__.1} parent=1 // pred_region
      %59 = vst [vmem:[#allocation2] sm:$0xff] 0.0
      %60 = vst [vmem:[#allocation3] sm:$0xff] 0.0
    $region21: #{a_call__.1} parent=1 // pred_fallthru
      _
    %v61 = vld [vmem:[#allocation8] sm:$0xff]
    %v62 = vld [vmem:[#allocation8 + $0x8] sm:$0xff]
    %v63 = vld [vmem:[#allocation8 + $0x10] sm:$0xff]
    %v64 = vld [vmem:[#allocation8 + $0x18] sm:$0xff]
    %v65 = vld [vmem:[#allocation8 + $0x20] sm:$0xff]
    %v66 = vld [vmem:[#allocation8 + $0x28] sm:$0xff]
    %v67 = vld [vmem:[#allocation8 + $0x30] sm:$0xff]
    %v68 = vld [vmem:[#allocation8 + $0x38] sm:$0xff]
    %v69 = vld [vmem:[#allocation8 + $0x40] sm:$0xff]
    %v70 = vld [vmem:[#allocation8 + $0x48] sm:$0xff]
    %v71 = vld [vmem:[#allocation8 + $0x50] sm:$0xff]
    %v72 = vld [vmem:[#allocation8 + $0x58] sm:$0xff]
    %v73 = vld [vmem:[#allocation8 + $0x60] sm:$0xff]
    %v74 = vld [vmem:[#allocation8 + $0x68] sm:$0xff]
    %v75 = vld [vmem:[#allocation8 + $0x70] sm:$0xff]
    %v76 = vld [vmem:[#allocation8 + $0x78] sm:$0xff]
    %v77 = vld [vmem:[#allocation8 + $0x80] sm:$0xff]
    %v78 = vld [vmem:[#allocation8 + $0x88] sm:$0xff]
    %v79 = vld [vmem:[#allocation8 + $0x90] sm:$0xff]
    %v80 = vld [vmem:[#allocation8 + $0x98] sm:$0xff]
    %v81 = vld [vmem:[#allocation8 + $0xa0] sm:$0xff]
    %v82 = vld [vmem:[#allocation8 + $0xa8] sm:$0xff]
    %v83 = vld [vmem:[#allocation8 + $0xb0] sm:$0xff]
    %v84 = vld [vmem:[#allocation8 + $0xb8] sm:$0xff]
    %v85 = vld [vmem:[#allocation8 + $0xc0] sm:$0xff]
    %v86 = vld [vmem:[#allocation8 + $0xc8] sm:$0xff]
    %v87 = vld [vmem:[#allocation8 + $0xd0] sm:$0xff]
    %v88 = vld [vmem:[#allocation8 + $0xd8] sm:$0xff]
    %v89 = vld [vmem:[#allocation8 + $0xe0] sm:$0xff]
    %v90 = vld [vmem:[#allocation8 + $0xe8] sm:$0xff]
    %v91 = vld [vmem:[#allocation8 + $0xf0] sm:$0xff]
    %v92 = vld [vmem:[#allocation8 + $0xf8] sm:$0xff]
    %s93 = smul.u32 0, 8
    %v94 = vld [vmem:[#allocation2] sm:$0xff]
    %v95 = vld [vmem:[#allocation3] sm:$0xff]
    %s96 = smul.u32 0, 64
    %s97 = sadd.s32 %s96, %s93
    %s98 = sld [smem:[#allocation5 + %s97]]
    %s99 = smul.u32 %s98, 4
    %s100 = scalar_lea.vmem [#allocation6], %s99
    %v101 = vld [vmem:[%s100] sm:$0xf]
    %s102 = sadd.s32 %s97, 1
    %s103 = sld [smem:[#allocation5 + %s102]]
    %s104 = smul.u32 %s103, 4
    %s105 = scalar_lea.vmem [#allocation6], %s104
    %v106 = vld [vmem:[%s105] sm:$0xf]
    %s107 = sadd.s32 %s97, 2
    %s108 = sld [smem:[#allocation5 + %s107]]
    %s109 = smul.u32 %s108, 4
    %s110 = scalar_lea.vmem [#allocation6], %s109
    %v111 = vld [vmem:[%s110] sm:$0xf]
    %s112 = sadd.s32 %s97, 3
    %s113 = sld [smem:[#allocation5 + %s112]]
    %s114 = smul.u32 %s113, 4
    %s115 = scalar_lea.vmem [#allocation6], %s114
    %v116 = vld [vmem:[%s115] sm:$0xf]
    %s117 = sadd.s32 %s97, 4
    %s118 = sld [smem:[#allocation5 + %s117]]
    %s119 = smul.u32 %s118, 4
    %s120 = scalar_lea.vmem [#allocation6], %s119
    %v121 = vld [vmem:[%s120] sm:$0xf]
    %s122 = sadd.s32 %s97, 5
    %s123 = sld [smem:[#allocation5 + %s122]]
    %s124 = smul.u32 %s123, 4
    %s125 = scalar_lea.vmem [#allocation6], %s124
    %v126 = vld [vmem:[%s125] sm:$0xf]
    %s127 = sadd.s32 %s97, 6
    %s128 = sld [smem:[#allocation5 + %s127]]
    %s129 = smul.u32 %s128, 4
    %s130 = scalar_lea.vmem [#allocation6], %s129
    %v131 = vld [vmem:[%s130] sm:$0xf]
    %s132 = sadd.s32 %s97, 7
    %s133 = sld [smem:[#allocation5 + %s132]]
    %s134 = smul.u32 %s133, 4
    %s135 = scalar_lea.vmem [#allocation6], %s134
    %v136 = vld [vmem:[%s135] sm:$0xf]
    %v138 = vperm.slane %v101, 0
    %v139 = vperm.slane %v101, 1
    %v140 = vperm.slane %v101, 2
    %v141 = vperm.slane %v101, 3
    %v147 = vperm.slane %v106, 0
    %v148 = vperm.slane %v106, 1
    %v149 = vperm.slane %v106, 2
    %v150 = vperm.slane %v106, 3
    %v156 = vperm.slane %v111, 0
    %v157 = vperm.slane %v111, 1
    %v158 = vperm.slane %v111, 2
    %v159 = vperm.slane %v111, 3
    %v165 = vperm.slane %v116, 0
    %v166 = vperm.slane %v116, 1
    %v167 = vperm.slane %v116, 2
    %v168 = vperm.slane %v116, 3
    %v174 = vperm.slane %v121, 0
    %v175 = vperm.slane %v121, 1
    %v176 = vperm.slane %v121, 2
    %v177 = vperm.slane %v121, 3
    %v183 = vperm.slane %v126, 0
    %v184 = vperm.slane %v126, 1
    %v185 = vperm.slane %v126, 2
    %v186 = vperm.slane %v126, 3
    %v192 = vperm.slane %v131, 0
    %v193 = vperm.slane %v131, 1
    %v194 = vperm.slane %v131, 2
    %v195 = vperm.slane %v131, 3
    %v201 = vperm.slane %v136, 0
    %v202 = vperm.slane %v136, 1
    %v203 = vperm.slane %v136, 2
    %v204 = vperm.slane %v136, 3
    %vm209 = vcmask 1040384
    %v210 = vsel %vm209, %v138, %v147
    %v211 = vsel %vm209, %v139, %v148
    %v212 = vsel %vm209, %v140, %v149
    %v213 = vsel %vm209, %v141, %v150
    %vm214 = vcmask 1041408
    %v215 = vsel %vm214, %v210, %v156
    %v216 = vsel %vm214, %v211, %v157
    %v217 = vsel %vm214, %v212, %v158
    %v218 = vsel %vm214, %v213, %v159
    %vm219 = vcmask 1042432
    %v220 = vsel %vm219, %v215, %v165
    %v221 = vsel %vm219, %v216, %v166
    %v222 = vsel %vm219, %v217, %v167
    %v223 = vsel %vm219, %v218, %v168
    %vm224 = vcmask 1043456
    %v225 = vsel %vm224, %v220, %v174
    %v226 = vsel %vm224, %v221, %v175
    %v227 = vsel %vm224, %v222, %v176
    %v228 = vsel %vm224, %v223, %v177
    %vm229 = vcmask 1044480
    %v230 = vsel %vm229, %v225, %v183
    %v231 = vsel %vm229, %v226, %v184
    %v232 = vsel %vm229, %v227, %v185
    %v233 = vsel %vm229, %v228, %v186
    %vm234 = vcmask 1045504
    %v235 = vsel %vm234, %v230, %v192
    %v236 = vsel %vm234, %v231, %v193
    %v237 = vsel %vm234, %v232, %v194
    %v238 = vsel %vm234, %v233, %v195
    %vm239 = vcmask 1046528
    %v240 = vsel %vm239, %v235, %v201
    %v241 = vsel %vm239, %v236, %v202
    %v242 = vsel %vm239, %v237, %v203
    %v243 = vsel %vm239, %v238, %v204
    %v244 = vpack.c.bf16 %v94, %v94
    %v277 = vunpack.c.l.b16 %v61
    %v278 = vunpack.c.h.b16 %v61
    %v279 = vunpack.c.l.b16 %v62
    %v280 = vunpack.c.h.b16 %v62
    %v281 = vunpack.c.l.b16 %v63
    %v282 = vunpack.c.h.b16 %v63
    %v283 = vunpack.c.l.b16 %v64
    %v284 = vunpack.c.h.b16 %v64
    %v285 = vunpack.c.l.b16 %v65
    %v286 = vunpack.c.h.b16 %v65
    %v287 = vunpack.c.l.b16 %v66
    %v288 = vunpack.c.h.b16 %v66
    %v289 = vunpack.c.l.b16 %v67
    %v290 = vunpack.c.h.b16 %v67
    %v291 = vunpack.c.l.b16 %v68
    %v292 = vunpack.c.h.b16 %v68
    %v293 = vunpack.c.l.b16 %v69
    %v294 = vunpack.c.h.b16 %v69
    %v295 = vunpack.c.l.b16 %v70
    %v296 = vunpack.c.h.b16 %v70
    %v297 = vunpack.c.l.b16 %v71
    %v298 = vunpack.c.h.b16 %v71
    %v299 = vunpack.c.l.b16 %v72
    %v300 = vunpack.c.h.b16 %v72
    %v301 = vunpack.c.l.b16 %v73
    %v302 = vunpack.c.h.b16 %v73
    %v303 = vunpack.c.l.b16 %v74
    %v304 = vunpack.c.h.b16 %v74
    %v305 = vunpack.c.l.b16 %v75
    %v306 = vunpack.c.h.b16 %v75
    %v307 = vunpack.c.l.b16 %v76
    %v308 = vunpack.c.h.b16 %v76
    %v309 = vunpack.c.l.b16 %v77
    %v310 = vunpack.c.h.b16 %v77
    %v311 = vunpack.c.l.b16 %v78
    %v312 = vunpack.c.h.b16 %v78
    %v313 = vunpack.c.l.b16 %v79
    %v314 = vunpack.c.h.b16 %v79
    %v315 = vunpack.c.l.b16 %v80
    %v316 = vunpack.c.h.b16 %v80
    %v317 = vunpack.c.l.b16 %v81
    %v318 = vunpack.c.h.b16 %v81
    %v319 = vunpack.c.l.b16 %v82
    %v320 = vunpack.c.h.b16 %v82
    %v321 = vunpack.c.l.b16 %v83
    %v322 = vunpack.c.h.b16 %v83
    %v323 = vunpack.c.l.b16 %v84
    %v324 = vunpack.c.h.b16 %v84
    %v325 = vunpack.c.l.b16 %v85
    %v326 = vunpack.c.h.b16 %v85
    %v327 = vunpack.c.l.b16 %v86
    %v328 = vunpack.c.h.b16 %v86
    %v329 = vunpack.c.l.b16 %v87
    %v330 = vunpack.c.h.b16 %v87
    %v331 = vunpack.c.l.b16 %v88
    %v332 = vunpack.c.h.b16 %v88
    %v333 = vunpack.c.l.b16 %v89
    %v334 = vunpack.c.h.b16 %v89
    %v335 = vunpack.c.l.b16 %v90
    %v336 = vunpack.c.h.b16 %v90
    %v337 = vunpack.c.l.b16 %v91
    %v338 = vunpack.c.h.b16 %v91
    %v339 = vunpack.c.l.b16 %v92
    %v340 = vunpack.c.h.b16 %v92
    %v341 = vpack.c.b16 %v281, %v277
    %v342 = vpack.c.b16 %v282, %v278
    %v343 = vpack.c.b16 %v283, %v279
    %v344 = vpack.c.b16 %v284, %v280
    %v345 = vpack.c.b16 %v289, %v285
    %v346 = vpack.c.b16 %v290, %v286
    %v347 = vpack.c.b16 %v291, %v287
    %v348 = vpack.c.b16 %v292, %v288
    %v349 = vpack.c.b16 %v297, %v293
    %v350 = vpack.c.b16 %v298, %v294
    %v351 = vpack.c.b16 %v299, %v295
    %v352 = vpack.c.b16 %v300, %v296
    %v353 = vpack.c.b16 %v305, %v301
    %v354 = vpack.c.b16 %v306, %v302
    %v355 = vpack.c.b16 %v307, %v303
    %v356 = vpack.c.b16 %v308, %v304
    %v357 = vpack.c.b16 %v313, %v309
    %v358 = vpack.c.b16 %v314, %v310
    %v359 = vpack.c.b16 %v315, %v311
    %v360 = vpack.c.b16 %v316, %v312
    %v361 = vpack.c.b16 %v321, %v317
    %v362 = vpack.c.b16 %v322, %v318
    %v363 = vpack.c.b16 %v323, %v319
    %v364 = vpack.c.b16 %v324, %v320
    %v365 = vpack.c.b16 %v329, %v325
    %v366 = vpack.c.b16 %v330, %v326
    %v367 = vpack.c.b16 %v331, %v327
    %v368 = vpack.c.b16 %v332, %v328
    %v369 = vpack.c.b16 %v337, %v333
    %v370 = vpack.c.b16 %v338, %v334
    %v371 = vpack.c.b16 %v339, %v335
    %v372 = vpack.c.b16 %v340, %v336
    %405 = vmatpush.bf16.msra.mxu0 %v369
    %406 = vmatpush.bf16.msra.mxu0 %v365
    %407 = vmatpush.bf16.msra.mxu0 %v361
    %408 = vmatpush.bf16.msra.mxu0 %v357
    %409 = vmatpush.bf16.msra.mxu0 %v353
    %410 = vmatpush.bf16.msra.mxu0 %v349
    %411 = vmatpush.bf16.msra.mxu0 %v345
    %412 = vmatpush.bf16.msra.mxu0 %v341
    %413 = vmatmul.bf16.gmra.mxu0 %v244
    %v414 = vpop.f32.mrf.mxu0
    %v415 = vadd.f32 0.0, %v414
    %v416 = vpop.f32.mrf.mxu0
    %417 = vdwg.mxu0
    %418 = vmatpush.bf16.msra.mxu0 %v370
    %419 = vmatpush.bf16.msra.mxu0 %v366
    %420 = vmatpush.bf16.msra.mxu0 %v362
    %421 = vmatpush.bf16.msra.mxu0 %v358
    %422 = vmatpush.bf16.msra.mxu0 %v354
    %423 = vmatpush.bf16.msra.mxu0 %v350
    %424 = vmatpush.bf16.msra.mxu0 %v346
    %425 = vmatpush.bf16.msra.mxu0 %v342
    %426 = vmatmul.bf16.gmra.mxu0 %v244
    %v427 = vpop.f32.mrf.mxu0
    %v428 = vadd.f32 0.0, %v427
    %v429 = vpop.f32.mrf.mxu0
    %430 = vdwg.mxu0
    %431 = vmatpush.bf16.msra.mxu0 %v371
    %432 = vmatpush.bf16.msra.mxu0 %v367
    %433 = vmatpush.bf16.msra.mxu0 %v363
    %434 = vmatpush.bf16.msra.mxu0 %v359
    %435 = vmatpush.bf16.msra.mxu0 %v355
    %436 = vmatpush.bf16.msra.mxu0 %v351
    %437 = vmatpush.bf16.msra.mxu0 %v347
    %438 = vmatpush.bf16.msra.mxu0 %v343
    %439 = vmatmul.bf16.gmra.mxu0 %v244
    %v440 = vpop.f32.mrf.mxu0
    %v441 = vadd.f32 0.0, %v440
    %v442 = vpop.f32.mrf.mxu0
    %443 = vdwg.mxu0
    %444 = vmatpush.bf16.msra.mxu0 %v372
    %445 = vmatpush.bf16.msra.mxu0 %v368
    %446 = vmatpush.bf16.msra.mxu0 %v364
    %447 = vmatpush.bf16.msra.mxu0 %v360
    %448 = vmatpush.bf16.msra.mxu0 %v356
    %449 = vmatpush.bf16.msra.mxu0 %v352
    %450 = vmatpush.bf16.msra.mxu0 %v348
    %451 = vmatpush.bf16.msra.mxu0 %v344
    %452 = vmatmul.bf16.gmra.mxu0 %v244
    %v453 = vpop.f32.mrf.mxu0
    %v454 = vadd.f32 0.0, %v453
    %v455 = vpop.f32.mrf.mxu0
    %456 = vdwg.mxu0
    %v457 = vadd.f32 %v240, %v415
    %v458 = vadd.f32 %v241, %v428
    %v459 = vadd.f32 %v242, %v441
    %v460 = vadd.f32 %v243, %v454
    %v461 = vmul.f32 %v457, 0.5
    %v462 = vtanh.pop %v461
    %v463 = vadd.f32 %v462, 1.0
    %v464 = vmul.f32 %v463, 0.5
    %v465 = vmul.f32 %v458, 0.5
    %v466 = vtanh.pop %v465
    %v467 = vadd.f32 %v466, 1.0
    %v468 = vmul.f32 %v467, 0.5
    %v469 = vtanh.pop %v459
    %v470 = vmul.f32 %v460, 0.5
    %v471 = vtanh.pop %v470
    %v472 = vadd.f32 %v471, 1.0
    %v473 = vmul.f32 %v472, 0.5
    %v474 = vmul.f32 %v468, %v95
    %v475 = vmul.f32 %v464, %v469
    %v476 = vadd.f32 %v474, %v475
    %v477 = vtanh.pop %v476
    %v478 = vmul.f32 %v473, %v477
    %479 = vst [vmem:[%s3] sm:$0xff] %v478
    %s480 = smul.u32 0, 8
    %s481 = sadd.s32 %s480, 1
    %s482 = smul.u32 %s481, 8
    %s483 = sadd.s32 %s482, %s93
    %s484 = sld [smem:[#allocation5 + %s483]]
    %s485 = smul.u32 %s484, 4
    %s486 = scalar_lea.vmem [#allocation6], %s485
    %v487 = vld [vmem:[%s486] sm:$0xf]
    %s488 = sadd.s32 %s483, 1
    %s489 = sld [smem:[#allocation5 + %s488]]
    %s490 = smul.u32 %s489, 4
    %s491 = scalar_lea.vmem [#allocation6], %s490
    %v492 = vld [vmem:[%s491] sm:$0xf]
    %s493 = sadd.s32 %s483, 2
    %s494 = sld [smem:[#allocation5 + %s493]]
    %s495 = smul.u32 %s494, 4
    %s496 = scalar_lea.vmem [#allocation6], %s495
    %v497 = vld [vmem:[%s496] sm:$0xf]
    %s498 = sadd.s32 %s483, 3
    %s499 = sld [smem:[#allocation5 + %s498]]
    %s500 = smul.u32 %s499, 4
    %s501 = scalar_lea.vmem [#allocation6], %s500
    %v502 = vld [vmem:[%s501] sm:$0xf]
    %s503 = sadd.s32 %s483, 4
    %s504 = sld [smem:[#allocation5 + %s503]]
    %s505 = smul.u32 %s504, 4
    %s506 = scalar_lea.vmem [#allocation6], %s505
    %v507 = vld [vmem:[%s506] sm:$0xf]
    %s508 = sadd.s32 %s483, 5
    %s509 = sld [smem:[#allocation5 + %s508]]
    %s510 = smul.u32 %s509, 4
    %s511 = scalar_lea.vmem [#allocation6], %s510
    %v512 = vld [vmem:[%s511] sm:$0xf]
    %s513 = sadd.s32 %s483, 6
    %s514 = sld [smem:[#allocation5 + %s513]]
    %s515 = smul.u32 %s514, 4
    %s516 = scalar_lea.vmem [#allocation6], %s515
    %v517 = vld [vmem:[%s516] sm:$0xf]
    %s518 = sadd.s32 %s483, 7
    %s519 = sld [smem:[#allocation5 + %s518]]
    %s520 = smul.u32 %s519, 4
    %s521 = scalar_lea.vmem [#allocation6], %s520
    %v522 = vld [vmem:[%s521] sm:$0xf]
    %v524 = vperm.slane %v487, 0
    %v525 = vperm.slane %v487, 1
    %v526 = vperm.slane %v487, 2
    %v527 = vperm.slane %v487, 3
    %v533 = vperm.slane %v492, 0
    %v534 = vperm.slane %v492, 1
    %v535 = vperm.slane %v492, 2
    %v536 = vperm.slane %v492, 3
    %v542 = vperm.slane %v497, 0
    %v543 = vperm.slane %v497, 1
    %v544 = vperm.slane %v497, 2
    %v545 = vperm.slane %v497, 3
    %v551 = vperm.slane %v502, 0
    %v552 = vperm.slane %v502, 1
    %v553 = vperm.slane %v502, 2
    %v554 = vperm.slane %v502, 3
    %v560 = vperm.slane %v507, 0
    %v561 = vperm.slane %v507, 1
    %v562 = vperm.slane %v507, 2
    %v563 = vperm.slane %v507, 3
    %v569 = vperm.slane %v512, 0
    %v570 = vperm.slane %v512, 1
    %v571 = vperm.slane %v512, 2
    %v572 = vperm.slane %v512, 3
    %v578 = vperm.slane %v517, 0
    %v579 = vperm.slane %v517, 1
    %v580 = vperm.slane %v517, 2
    %v581 = vperm.slane %v517, 3
    %v587 = vperm.slane %v522, 0
    %v588 = vperm.slane %v522, 1
    %v589 = vperm.slane %v522, 2
    %v590 = vperm.slane %v522, 3
    %v595 = vsel %vm209, %v524, %v533
    %v596 = vsel %vm209, %v525, %v534
    %v597 = vsel %vm209, %v526, %v535
    %v598 = vsel %vm209, %v527, %v536
    %v599 = vsel %vm214, %v595, %v542
    %v600 = vsel %vm214, %v596, %v543
    %v601 = vsel %vm214, %v597, %v544
    %v602 = vsel %vm214, %v598, %v545
    %v603 = vsel %vm219, %v599, %v551
    %v604 = vsel %vm219, %v600, %v552
    %v605 = vsel %vm219, %v601, %v553
    %v606 = vsel %vm219, %v602, %v554
    %v607 = vsel %vm224, %v603, %v560
    %v608 = vsel %vm224, %v604, %v561
    %v609 = vsel %vm224, %v605, %v562
    %v610 = vsel %vm224, %v606, %v563
    %v611 = vsel %vm229, %v607, %v569
    %v612 = vsel %vm229, %v608, %v570
    %v613 = vsel %vm229, %v609, %v571
    %v614 = vsel %vm229, %v610, %v572
    %v615 = vsel %vm234, %v611, %v578
    %v616 = vsel %vm234, %v612, %v579
    %v617 = vsel %vm234, %v613, %v580
    %v618 = vsel %vm234, %v614, %v581
    %v619 = vsel %vm239, %v615, %v587
    %v620 = vsel %vm239, %v616, %v588
    %v621 = vsel %vm239, %v617, %v589
    %v622 = vsel %vm239, %v618, %v590
    %v623 = vpack.c.bf16 %v478, %v478
    %624 = vmatpush.bf16.msra.mxu0 %v369
    %625 = vmatpush.bf16.msra.mxu0 %v365
    %626 = vmatpush.bf16.msra.mxu0 %v361
    %627 = vmatpush.bf16.msra.mxu0 %v357
    %628 = vmatpush.bf16.msra.mxu0 %v353
    %629 = vmatpush.bf16.msra.mxu0 %v349
    %630 = vmatpush.bf16.msra.mxu0 %v345
    %631 = vmatpush.bf16.msra.mxu0 %v341
    %632 = vmatmul.bf16.gmra.mxu0 %v623
    %v633 = vpop.f32.mrf.mxu0
    %v634 = vadd.f32 0.0, %v633
    %v635 = vpop.f32.mrf.mxu0
    %636 = vdwg.mxu0
    %637 = vmatpush.bf16.msra.mxu0 %v370
    %638 = vmatpush.bf16.msra.mxu0 %v366
    %639 = vmatpush.bf16.msra.mxu0 %v362
    %640 = vmatpush.bf16.msra.mxu0 %v358
    %641 = vmatpush.bf16.msra.mxu0 %v354
    %642 = vmatpush.bf16.msra.mxu0 %v350
    %643 = vmatpush.bf16.msra.mxu0 %v346
    %644 = vmatpush.bf16.msra.mxu0 %v342
    %645 = vmatmul.bf16.gmra.mxu0 %v623
    %v646 = vpop.f32.mrf.mxu0
    %v647 = vadd.f32 0.0, %v646
    %v648 = vpop.f32.mrf.mxu0
    %649 = vdwg.mxu0
    %650 = vmatpush.bf16.msra.mxu0 %v371
    %651 = vmatpush.bf16.msra.mxu0 %v367
    %652 = vmatpush.bf16.msra.mxu0 %v363
    %653 = vmatpush.bf16.msra.mxu0 %v359
    %654 = vmatpush.bf16.msra.mxu0 %v355
    %655 = vmatpush.bf16.msra.mxu0 %v351
    %656 = vmatpush.bf16.msra.mxu0 %v347
    %657 = vmatpush.bf16.msra.mxu0 %v343
    %658 = vmatmul.bf16.gmra.mxu0 %v623
    %v659 = vpop.f32.mrf.mxu0
    %v660 = vadd.f32 0.0, %v659
    %v661 = vpop.f32.mrf.mxu0
    %662 = vdwg.mxu0
    %663 = vmatpush.bf16.msra.mxu0 %v372
    %664 = vmatpush.bf16.msra.mxu0 %v368
    %665 = vmatpush.bf16.msra.mxu0 %v364
    %666 = vmatpush.bf16.msra.mxu0 %v360
    %667 = vmatpush.bf16.msra.mxu0 %v356
    %668 = vmatpush.bf16.msra.mxu0 %v352
    %669 = vmatpush.bf16.msra.mxu0 %v348
    %670 = vmatpush.bf16.msra.mxu0 %v344
    %671 = vmatmul.bf16.gmra.mxu0 %v623
    %v672 = vpop.f32.mrf.mxu0
    %v673 = vadd.f32 0.0, %v672
    %v674 = vpop.f32.mrf.mxu0
    %675 = vdwg.mxu0
    %v676 = vadd.f32 %v619, %v634
    %v677 = vadd.f32 %v620, %v647
    %v678 = vadd.f32 %v621, %v660
    %v679 = vadd.f32 %v622, %v673
    %v680 = vmul.f32 %v676, 0.5
    %v681 = vtanh.pop %v680
    %v682 = vadd.f32 %v681, 1.0
    %v683 = vmul.f32 %v682, 0.5
    %v684 = vmul.f32 %v677, 0.5
    %v685 = vtanh.pop %v684
    %v686 = vadd.f32 %v685, 1.0
    %v687 = vmul.f32 %v686, 0.5
    %v688 = vtanh.pop %v678
    %v689 = vmul.f32 %v679, 0.5
    %v690 = vtanh.pop %v689
    %v691 = vadd.f32 %v690, 1.0
    %v692 = vmul.f32 %v691, 0.5
    %v693 = vmul.f32 %v687, %v476
    %v694 = vmul.f32 %v683, %v688
    %v695 = vadd.f32 %v693, %v694
    %v696 = vtanh.pop %v695
    %v697 = vmul.f32 %v692, %v696
    %s698 = scalar_lea.vmem %s3, 8
    %699 = vst [vmem:[%s698] sm:$0xff] %v697
    %s700 = sadd.s32 %s480, 2
    %s701 = smul.u32 %s700, 8
    %s702 = sadd.s32 %s701, %s93
    %s703 = sld [smem:[#allocation5 + %s702]]
    %s704 = smul.u32 %s703, 4
    %s705 = scalar_lea.vmem [#allocation6], %s704
    %v706 = vld [vmem:[%s705] sm:$0xf]
    %s707 = sadd.s32 %s702, 1
    %s708 = sld [smem:[#allocation5 + %s707]]
    %s709 = smul.u32 %s708, 4
    %s710 = scalar_lea.vmem [#allocation6], %s709
    %v711 = vld [vmem:[%s710] sm:$0xf]
    %s712 = sadd.s32 %s702, 2
    %s713 = sld [smem:[#allocation5 + %s712]]
    %s714 = smul.u32 %s713, 4
    %s715 = scalar_lea.vmem [#allocation6], %s714
    %v716 = vld [vmem:[%s715] sm:$0xf]
    %s717 = sadd.s32 %s702, 3
    %s718 = sld [smem:[#allocation5 + %s717]]
    %s719 = smul.u32 %s718, 4
    %s720 = scalar_lea.vmem [#allocation6], %s719
    %v721 = vld [vmem:[%s720] sm:$0xf]
    %s722 = sadd.s32 %s702, 4
    %s723 = sld [smem:[#allocation5 + %s722]]
    %s724 = smul.u32 %s723, 4
    %s725 = scalar_lea.vmem [#allocation6], %s724
    %v726 = vld [vmem:[%s725] sm:$0xf]
    %s727 = sadd.s32 %s702, 5
    %s728 = sld [smem:[#allocation5 + %s727]]
    %s729 = smul.u32 %s728, 4
    %s730 = scalar_lea.vmem [#allocation6], %s729
    %v731 = vld [vmem:[%s730] sm:$0xf]
    %s732 = sadd.s32 %s702, 6
    %s733 = sld [smem:[#allocation5 + %s732]]
    %s734 = smul.u32 %s733, 4
    %s735 = scalar_lea.vmem [#allocation6], %s734
    %v736 = vld [vmem:[%s735] sm:$0xf]
    %s737 = sadd.s32 %s702, 7
    %s738 = sld [smem:[#allocation5 + %s737]]
    %s739 = smul.u32 %s738, 4
    %s740 = scalar_lea.vmem [#allocation6], %s739
    %v741 = vld [vmem:[%s740] sm:$0xf]
    %v743 = vperm.slane %v706, 0
    %v744 = vperm.slane %v706, 1
    %v745 = vperm.slane %v706, 2
    %v746 = vperm.slane %v706, 3
    %v752 = vperm.slane %v711, 0
    %v753 = vperm.slane %v711, 1
    %v754 = vperm.slane %v711, 2
    %v755 = vperm.slane %v711, 3
    %v761 = vperm.slane %v716, 0
    %v762 = vperm.slane %v716, 1
    %v763 = vperm.slane %v716, 2
    %v764 = vperm.slane %v716, 3
    %v770 = vperm.slane %v721, 0
    %v771 = vperm.slane %v721, 1
    %v772 = vperm.slane %v721, 2
    %v773 = vperm.slane %v721, 3
    %v779 = vperm.slane %v726, 0
    %v780 = vperm.slane %v726, 1
    %v781 = vperm.slane %v726, 2
    %v782 = vperm.slane %v726, 3
    %v788 = vperm.slane %v731, 0
    %v789 = vperm.slane %v731, 1
    %v790 = vperm.slane %v731, 2
    %v791 = vperm.slane %v731, 3
    %v797 = vperm.slane %v736, 0
    %v798 = vperm.slane %v736, 1
    %v799 = vperm.slane %v736, 2
    %v800 = vperm.slane %v736, 3
    %v806 = vperm.slane %v741, 0
    %v807 = vperm.slane %v741, 1
    %v808 = vperm.slane %v741, 2
    %v809 = vperm.slane %v741, 3
    %v814 = vsel %vm209, %v743, %v752
    %v815 = vsel %vm209, %v744, %v753
    %v816 = vsel %vm209, %v745, %v754
    %v817 = vsel %vm209, %v746, %v755
    %v818 = vsel %vm214, %v814, %v761
    %v819 = vsel %vm214, %v815, %v762
    %v820 = vsel %vm214, %v816, %v763
    %v821 = vsel %vm214, %v817, %v764
    %v822 = vsel %vm219, %v818, %v770
    %v823 = vsel %vm219, %v819, %v771
    %v824 = vsel %vm219, %v820, %v772
    %v825 = vsel %vm219, %v821, %v773
    %v826 = vsel %vm224, %v822, %v779
    %v827 = vsel %vm224, %v823, %v780
    %v828 = vsel %vm224, %v824, %v781
    %v829 = vsel %vm224, %v825, %v782
    %v830 = vsel %vm229, %v826, %v788
    %v831 = vsel %vm229, %v827, %v789
    %v832 = vsel %vm229, %v828, %v790
    %v833 = vsel %vm229, %v829, %v791
    %v834 = vsel %vm234, %v830, %v797
    %v835 = vsel %vm234, %v831, %v798
    %v836 = vsel %vm234, %v832, %v799
    %v837 = vsel %vm234, %v833, %v800
    %v838 = vsel %vm239, %v834, %v806
    %v839 = vsel %vm239, %v835, %v807
    %v840 = vsel %vm239, %v836, %v808
    %v841 = vsel %vm239, %v837, %v809
    %v842 = vpack.c.bf16 %v697, %v697
    %843 = vmatpush.bf16.msra.mxu0 %v369
    %844 = vmatpush.bf16.msra.mxu0 %v365
    %845 = vmatpush.bf16.msra.mxu0 %v361
    %846 = vmatpush.bf16.msra.mxu0 %v357
    %847 = vmatpush.bf16.msra.mxu0 %v353
    %848 = vmatpush.bf16.msra.mxu0 %v349
    %849 = vmatpush.bf16.msra.mxu0 %v345
    %850 = vmatpush.bf16.msra.mxu0 %v341
    %851 = vmatmul.bf16.gmra.mxu0 %v842
    %v852 = vpop.f32.mrf.mxu0
    %v853 = vadd.f32 0.0, %v852
    %v854 = vpop.f32.mrf.mxu0
    %855 = vdwg.mxu0
    %856 = vmatpush.bf16.msra.mxu0 %v370
    %857 = vmatpush.bf16.msra.mxu0 %v366
    %858 = vmatpush.bf16.msra.mxu0 %v362
    %859 = vmatpush.bf16.msra.mxu0 %v358
    %860 = vmatpush.bf16.msra.mxu0 %v354
    %861 = vmatpush.bf16.msra.mxu0 %v350
    %862 = vmatpush.bf16.msra.mxu0 %v346
    %863 = vmatpush.bf16.msra.mxu0 %v342
    %864 = vmatmul.bf16.gmra.mxu0 %v842
    %v865 = vpop.f32.mrf.mxu0
    %v866 = vadd.f32 0.0, %v865
    %v867 = vpop.f32.mrf.mxu0
    %868 = vdwg.mxu0
    %869 = vmatpush.bf16.msra.mxu0 %v371
    %870 = vmatpush.bf16.msra.mxu0 %v367
    %871 = vmatpush.bf16.msra.mxu0 %v363
    %872 = vmatpush.bf16.msra.mxu0 %v359
    %873 = vmatpush.bf16.msra.mxu0 %v355
    %874 = vmatpush.bf16.msra.mxu0 %v351
    %875 = vmatpush.bf16.msra.mxu0 %v347
    %876 = vmatpush.bf16.msra.mxu0 %v343
    %877 = vmatmul.bf16.gmra.mxu0 %v842
    %v878 = vpop.f32.mrf.mxu0
    %v879 = vadd.f32 0.0, %v878
    %v880 = vpop.f32.mrf.mxu0
    %881 = vdwg.mxu0
    %882 = vmatpush.bf16.msra.mxu0 %v372
    %883 = vmatpush.bf16.msra.mxu0 %v368
    %884 = vmatpush.bf16.msra.mxu0 %v364
    %885 = vmatpush.bf16.msra.mxu0 %v360
    %886 = vmatpush.bf16.msra.mxu0 %v356
    %887 = vmatpush.bf16.msra.mxu0 %v352
    %888 = vmatpush.bf16.msra.mxu0 %v348
    %889 = vmatpush.bf16.msra.mxu0 %v344
    %890 = vmatmul.bf16.gmra.mxu0 %v842
    %v891 = vpop.f32.mrf.mxu0
    %v892 = vadd.f32 0.0, %v891
    %v893 = vpop.f32.mrf.mxu0
    %894 = vdwg.mxu0
    %v895 = vadd.f32 %v838, %v853
    %v896 = vadd.f32 %v839, %v866
    %v897 = vadd.f32 %v840, %v879
    %v898 = vadd.f32 %v841, %v892
    %v899 = vmul.f32 %v895, 0.5
    %v900 = vtanh.pop %v899
    %v901 = vadd.f32 %v900, 1.0
    %v902 = vmul.f32 %v901, 0.5
    %v903 = vmul.f32 %v896, 0.5
    %v904 = vtanh.pop %v903
    %v905 = vadd.f32 %v904, 1.0
    %v906 = vmul.f32 %v905, 0.5
    %v907 = vtanh.pop %v897
    %v908 = vmul.f32 %v898, 0.5
    %v909 = vtanh.pop %v908
    %v910 = vadd.f32 %v909, 1.0
    %v911 = vmul.f32 %v910, 0.5
    %v912 = vmul.f32 %v906, %v695
    %v913 = vmul.f32 %v902, %v907
    %v914 = vadd.f32 %v912, %v913
    %v915 = vtanh.pop %v914
    %v916 = vmul.f32 %v911, %v915
    %s917 = scalar_lea.vmem %s3, 16
    %918 = vst [vmem:[%s917] sm:$0xff] %v916
    %s919 = sadd.s32 %s480, 3
    %s920 = smul.u32 %s919, 8
    %s921 = sadd.s32 %s920, %s93
    %s922 = sld [smem:[#allocation5 + %s921]]
    %s923 = smul.u32 %s922, 4
    %s924 = scalar_lea.vmem [#allocation6], %s923
    %v925 = vld [vmem:[%s924] sm:$0xf]
    %s926 = sadd.s32 %s921, 1
    %s927 = sld [smem:[#allocation5 + %s926]]
    %s928 = smul.u32 %s927, 4
    %s929 = scalar_lea.vmem [#allocation6], %s928
    %v930 = vld [vmem:[%s929] sm:$0xf]
    %s931 = sadd.s32 %s921, 2
    %s932 = sld [smem:[#allocation5 + %s931]]
    %s933 = smul.u32 %s932, 4
    %s934 = scalar_lea.vmem [#allocation6], %s933
    %v935 = vld [vmem:[%s934] sm:$0xf]
    %s936 = sadd.s32 %s921, 3
    %s937 = sld [smem:[#allocation5 + %s936]]
    %s938 = smul.u32 %s937, 4
    %s939 = scalar_lea.vmem [#allocation6], %s938
    %v940 = vld [vmem:[%s939] sm:$0xf]
    %s941 = sadd.s32 %s921, 4
    %s942 = sld [smem:[#allocation5 + %s941]]
    %s943 = smul.u32 %s942, 4
    %s944 = scalar_lea.vmem [#allocation6], %s943
    %v945 = vld [vmem:[%s944] sm:$0xf]
    %s946 = sadd.s32 %s921, 5
    %s947 = sld [smem:[#allocation5 + %s946]]
    %s948 = smul.u32 %s947, 4
    %s949 = scalar_lea.vmem [#allocation6], %s948
    %v950 = vld [vmem:[%s949] sm:$0xf]
    %s951 = sadd.s32 %s921, 6
    %s952 = sld [smem:[#allocation5 + %s951]]
    %s953 = smul.u32 %s952, 4
    %s954 = scalar_lea.vmem [#allocation6], %s953
    %v955 = vld [vmem:[%s954] sm:$0xf]
    %s956 = sadd.s32 %s921, 7
    %s957 = sld [smem:[#allocation5 + %s956]]
    %s958 = smul.u32 %s957, 4
    %s959 = scalar_lea.vmem [#allocation6], %s958
    %v960 = vld [vmem:[%s959] sm:$0xf]
    %v962 = vperm.slane %v925, 0
    %v963 = vperm.slane %v925, 1
    %v964 = vperm.slane %v925, 2
    %v965 = vperm.slane %v925, 3
    %v971 = vperm.slane %v930, 0
    %v972 = vperm.slane %v930, 1
    %v973 = vperm.slane %v930, 2
    %v974 = vperm.slane %v930, 3
    %v980 = vperm.slane %v935, 0
    %v981 = vperm.slane %v935, 1
    %v982 = vperm.slane %v935, 2
    %v983 = vperm.slane %v935, 3
    %v989 = vperm.slane %v940, 0
    %v990 = vperm.slane %v940, 1
    %v991 = vperm.slane %v940, 2
    %v992 = vperm.slane %v940, 3
    %v998 = vperm.slane %v945, 0
    %v999 = vperm.slane %v945, 1
    %v1000 = vperm.slane %v945, 2
    %v1001 = vperm.slane %v945, 3
    %v1007 = vperm.slane %v950, 0
    %v1008 = vperm.slane %v950, 1
    %v1009 = vperm.slane %v950, 2
    %v1010 = vperm.slane %v950, 3
    %v1016 = vperm.slane %v955, 0
    %v1017 = vperm.slane %v955, 1
    %v1018 = vperm.slane %v955, 2
    %v1019 = vperm.slane %v955, 3
    %v1025 = vperm.slane %v960, 0
    %v1026 = vperm.slane %v960, 1
    %v1027 = vperm.slane %v960, 2
    %v1028 = vperm.slane %v960, 3
    %v1033 = vsel %vm209, %v962, %v971
    %v1034 = vsel %vm209, %v963, %v972
    %v1035 = vsel %vm209, %v964, %v973
    %v1036 = vsel %vm209, %v965, %v974
    %v1037 = vsel %vm214, %v1033, %v980
    %v1038 = vsel %vm214, %v1034, %v981
    %v1039 = vsel %vm214, %v1035, %v982
    %v1040 = vsel %vm214, %v1036, %v983
    %v1041 = vsel %vm219, %v1037, %v989
    %v1042 = vsel %vm219, %v1038, %v990
    %v1043 = vsel %vm219, %v1039, %v991
    %v1044 = vsel %vm219, %v1040, %v992
    %v1045 = vsel %vm224, %v1041, %v998
    %v1046 = vsel %vm224, %v1042, %v999
    %v1047 = vsel %vm224, %v1043, %v1000
    %v1048 = vsel %vm224, %v1044, %v1001
    %v1049 = vsel %vm229, %v1045, %v1007
    %v1050 = vsel %vm229, %v1046, %v1008
    %v1051 = vsel %vm229, %v1047, %v1009
    %v1052 = vsel %vm229, %v1048, %v1010
    %v1053 = vsel %vm234, %v1049, %v1016
    %v1054 = vsel %vm234, %v1050, %v1017
    %v1055 = vsel %vm234, %v1051, %v1018
    %v1056 = vsel %vm234, %v1052, %v1019
    %v1057 = vsel %vm239, %v1053, %v1025
    %v1058 = vsel %vm239, %v1054, %v1026
    %v1059 = vsel %vm239, %v1055, %v1027
    %v1060 = vsel %vm239, %v1056, %v1028
    %v1061 = vpack.c.bf16 %v916, %v916
    %1062 = vmatpush.bf16.msra.mxu0 %v369
    %1063 = vmatpush.bf16.msra.mxu0 %v365
    %1064 = vmatpush.bf16.msra.mxu0 %v361
    %1065 = vmatpush.bf16.msra.mxu0 %v357
    %1066 = vmatpush.bf16.msra.mxu0 %v353
    %1067 = vmatpush.bf16.msra.mxu0 %v349
    %1068 = vmatpush.bf16.msra.mxu0 %v345
    %1069 = vmatpush.bf16.msra.mxu0 %v341
    %1070 = vmatmul.bf16.gmra.mxu0 %v1061
    %v1071 = vpop.f32.mrf.mxu0
    %v1072 = vadd.f32 0.0, %v1071
    %v1073 = vpop.f32.mrf.mxu0
    %1074 = vdwg.mxu0
    %1075 = vmatpush.bf16.msra.mxu0 %v370
    %1076 = vmatpush.bf16.msra.mxu0 %v366
    %1077 = vmatpush.bf16.msra.mxu0 %v362
    %1078 = vmatpush.bf16.msra.mxu0 %v358
    %1079 = vmatpush.bf16.msra.mxu0 %v354
    %1080 = vmatpush.bf16.msra.mxu0 %v350
    %1081 = vmatpush.bf16.msra.mxu0 %v346
    %1082 = vmatpush.bf16.msra.mxu0 %v342
    %1083 = vmatmul.bf16.gmra.mxu0 %v1061
    %v1084 = vpop.f32.mrf.mxu0
    %v1085 = vadd.f32 0.0, %v1084
    %v1086 = vpop.f32.mrf.mxu0
    %1087 = vdwg.mxu0
    %1088 = vmatpush.bf16.msra.mxu0 %v371
    %1089 = vmatpush.bf16.msra.mxu0 %v367
    %1090 = vmatpush.bf16.msra.mxu0 %v363
    %1091 = vmatpush.bf16.msra.mxu0 %v359
    %1092 = vmatpush.bf16.msra.mxu0 %v355
    %1093 = vmatpush.bf16.msra.mxu0 %v351
    %1094 = vmatpush.bf16.msra.mxu0 %v347
    %1095 = vmatpush.bf16.msra.mxu0 %v343
    %1096 = vmatmul.bf16.gmra.mxu0 %v1061
    %v1097 = vpop.f32.mrf.mxu0
    %v1098 = vadd.f32 0.0, %v1097
    %v1099 = vpop.f32.mrf.mxu0
    %1100 = vdwg.mxu0
    %1101 = vmatpush.bf16.msra.mxu0 %v372
    %1102 = vmatpush.bf16.msra.mxu0 %v368
    %1103 = vmatpush.bf16.msra.mxu0 %v364
    %1104 = vmatpush.bf16.msra.mxu0 %v360
    %1105 = vmatpush.bf16.msra.mxu0 %v356
    %1106 = vmatpush.bf16.msra.mxu0 %v352
    %1107 = vmatpush.bf16.msra.mxu0 %v348
    %1108 = vmatpush.bf16.msra.mxu0 %v344
    %1109 = vmatmul.bf16.gmra.mxu0 %v1061
    %v1110 = vpop.f32.mrf.mxu0
    %v1111 = vadd.f32 0.0, %v1110
    %v1112 = vpop.f32.mrf.mxu0
    %1113 = vdwg.mxu0
    %v1114 = vadd.f32 %v1057, %v1072
    %v1115 = vadd.f32 %v1058, %v1085
    %v1116 = vadd.f32 %v1059, %v1098
    %v1117 = vadd.f32 %v1060, %v1111
    %v1118 = vmul.f32 %v1114, 0.5
    %v1119 = vtanh.pop %v1118
    %v1120 = vadd.f32 %v1119, 1.0
    %v1121 = vmul.f32 %v1120, 0.5
    %v1122 = vmul.f32 %v1115, 0.5
    %v1123 = vtanh.pop %v1122
    %v1124 = vadd.f32 %v1123, 1.0
    %v1125 = vmul.f32 %v1124, 0.5
    %v1126 = vtanh.pop %v1116
    %v1127 = vmul.f32 %v1117, 0.5
    %v1128 = vtanh.pop %v1127
    %v1129 = vadd.f32 %v1128, 1.0
    %v1130 = vmul.f32 %v1129, 0.5
    %v1131 = vmul.f32 %v1125, %v914
    %v1132 = vmul.f32 %v1121, %v1126
    %v1133 = vadd.f32 %v1131, %v1132
    %v1134 = vtanh.pop %v1133
    %v1135 = vmul.f32 %v1130, %v1134
    %s1136 = scalar_lea.vmem %s3, 24
    %1137 = vst [vmem:[%s1136] sm:$0xff] %v1135
    %s1138 = sadd.s32 %s480, 4
    %s1139 = smul.u32 %s1138, 8
    %s1140 = sadd.s32 %s1139, %s93
    %s1141 = sld [smem:[#allocation5 + %s1140]]
    %s1142 = smul.u32 %s1141, 4
    %s1143 = scalar_lea.vmem [#allocation6], %s1142
    %v1144 = vld [vmem:[%s1143] sm:$0xf]
    %s1145 = sadd.s32 %s1140, 1
    %s1146 = sld [smem:[#allocation5 + %s1145]]
    %s1147 = smul.u32 %s1146, 4
    %s1148 = scalar_lea.vmem [#allocation6], %s1147
    %v1149 = vld [vmem:[%s1148] sm:$0xf]
    %s1150 = sadd.s32 %s1140, 2
    %s1151 = sld [smem:[#allocation5 + %s1150]]
    %s1152 = smul.u32 %s1151, 4
    %s1153 = scalar_lea.vmem [#allocation6], %s1152
    %v1154 = vld [vmem:[%s1153] sm:$0xf]
    %s1155 = sadd.s32 %s1140, 3
    %s1156 = sld [smem:[#allocation5 + %s1155]]
    %s1157 = smul.u32 %s1156, 4
    %s1158 = scalar_lea.vmem [#allocation6], %s1157
    %v1159 = vld [vmem:[%s1158] sm:$0xf]
    %s1160 = sadd.s32 %s1140, 4
    %s1161 = sld [smem:[#allocation5 + %s1160]]
    %s1162 = smul.u32 %s1161, 4
    %s1163 = scalar_lea.vmem [#allocation6], %s1162
    %v1164 = vld [vmem:[%s1163] sm:$0xf]
    %s1165 = sadd.s32 %s1140, 5
    %s1166 = sld [smem:[#allocation5 + %s1165]]
    %s1167 = smul.u32 %s1166, 4
    %s1168 = scalar_lea.vmem [#allocation6], %s1167
    %v1169 = vld [vmem:[%s1168] sm:$0xf]
    %s1170 = sadd.s32 %s1140, 6
    %s1171 = sld [smem:[#allocation5 + %s1170]]
    %s1172 = smul.u32 %s1171, 4
    %s1173 = scalar_lea.vmem [#allocation6], %s1172
    %v1174 = vld [vmem:[%s1173] sm:$0xf]
    %s1175 = sadd.s32 %s1140, 7
    %s1176 = sld [smem:[#allocation5 + %s1175]]
    %s1177 = smul.u32 %s1176, 4
    %s1178 = scalar_lea.vmem [#allocation6], %s1177
    %v1179 = vld [vmem:[%s1178] sm:$0xf]
    %v1181 = vperm.slane %v1144, 0
    %v1182 = vperm.slane %v1144, 1
    %v1183 = vperm.slane %v1144, 2
    %v1184 = vperm.slane %v1144, 3
    %v1190 = vperm.slane %v1149, 0
    %v1191 = vperm.slane %v1149, 1
    %v1192 = vperm.slane %v1149, 2
    %v1193 = vperm.slane %v1149, 3
    %v1199 = vperm.slane %v1154, 0
    %v1200 = vperm.slane %v1154, 1
    %v1201 = vperm.slane %v1154, 2
    %v1202 = vperm.slane %v1154, 3
    %v1208 = vperm.slane %v1159, 0
    %v1209 = vperm.slane %v1159, 1
    %v1210 = vperm.slane %v1159, 2
    %v1211 = vperm.slane %v1159, 3
    %v1217 = vperm.slane %v1164, 0
    %v1218 = vperm.slane %v1164, 1
    %v1219 = vperm.slane %v1164, 2
    %v1220 = vperm.slane %v1164, 3
    %v1226 = vperm.slane %v1169, 0
    %v1227 = vperm.slane %v1169, 1
    %v1228 = vperm.slane %v1169, 2
    %v1229 = vperm.slane %v1169, 3
    %v1235 = vperm.slane %v1174, 0
    %v1236 = vperm.slane %v1174, 1
    %v1237 = vperm.slane %v1174, 2
    %v1238 = vperm.slane %v1174, 3
    %v1244 = vperm.slane %v1179, 0
    %v1245 = vperm.slane %v1179, 1
    %v1246 = vperm.slane %v1179, 2
    %v1247 = vperm.slane %v1179, 3
    %v1252 = vsel %vm209, %v1181, %v1190
    %v1253 = vsel %vm209, %v1182, %v1191
    %v1254 = vsel %vm209, %v1183, %v1192
    %v1255 = vsel %vm209, %v1184, %v1193
    %v1256 = vsel %vm214, %v1252, %v1199
    %v1257 = vsel %vm214, %v1253, %v1200
    %v1258 = vsel %vm214, %v1254, %v1201
    %v1259 = vsel %vm214, %v1255, %v1202
    %v1260 = vsel %vm219, %v1256, %v1208
    %v1261 = vsel %vm219, %v1257, %v1209
    %v1262 = vsel %vm219, %v1258, %v1210
    %v1263 = vsel %vm219, %v1259, %v1211
    %v1264 = vsel %vm224, %v1260, %v1217
    %v1265 = vsel %vm224, %v1261, %v1218
    %v1266 = vsel %vm224, %v1262, %v1219
    %v1267 = vsel %vm224, %v1263, %v1220
    %v1268 = vsel %vm229, %v1264, %v1226
    %v1269 = vsel %vm229, %v1265, %v1227
    %v1270 = vsel %vm229, %v1266, %v1228
    %v1271 = vsel %vm229, %v1267, %v1229
    %v1272 = vsel %vm234, %v1268, %v1235
    %v1273 = vsel %vm234, %v1269, %v1236
    %v1274 = vsel %vm234, %v1270, %v1237
    %v1275 = vsel %vm234, %v1271, %v1238
    %v1276 = vsel %vm239, %v1272, %v1244
    %v1277 = vsel %vm239, %v1273, %v1245
    %v1278 = vsel %vm239, %v1274, %v1246
    %v1279 = vsel %vm239, %v1275, %v1247
    %v1280 = vpack.c.bf16 %v1135, %v1135
    %1281 = vmatpush.bf16.msra.mxu0 %v369
    %1282 = vmatpush.bf16.msra.mxu0 %v365
    %1283 = vmatpush.bf16.msra.mxu0 %v361
    %1284 = vmatpush.bf16.msra.mxu0 %v357
    %1285 = vmatpush.bf16.msra.mxu0 %v353
    %1286 = vmatpush.bf16.msra.mxu0 %v349
    %1287 = vmatpush.bf16.msra.mxu0 %v345
    %1288 = vmatpush.bf16.msra.mxu0 %v341
    %1289 = vmatmul.bf16.gmra.mxu0 %v1280
    %v1290 = vpop.f32.mrf.mxu0
    %v1291 = vadd.f32 0.0, %v1290
    %v1292 = vpop.f32.mrf.mxu0
    %1293 = vdwg.mxu0
    %1294 = vmatpush.bf16.msra.mxu0 %v370
    %1295 = vmatpush.bf16.msra.mxu0 %v366
    %1296 = vmatpush.bf16.msra.mxu0 %v362
    %1297 = vmatpush.bf16.msra.mxu0 %v358
    %1298 = vmatpush.bf16.msra.mxu0 %v354
    %1299 = vmatpush.bf16.msra.mxu0 %v350
    %1300 = vmatpush.bf16.msra.mxu0 %v346
    %1301 = vmatpush.bf16.msra.mxu0 %v342
    %1302 = vmatmul.bf16.gmra.mxu0 %v1280
    %v1303 = vpop.f32.mrf.mxu0
    %v1304 = vadd.f32 0.0, %v1303
    %v1305 = vpop.f32.mrf.mxu0
    %1306 = vdwg.mxu0
    %1307 = vmatpush.bf16.msra.mxu0 %v371
    %1308 = vmatpush.bf16.msra.mxu0 %v367
    %1309 = vmatpush.bf16.msra.mxu0 %v363
    %1310 = vmatpush.bf16.msra.mxu0 %v359
    %1311 = vmatpush.bf16.msra.mxu0 %v355
    %1312 = vmatpush.bf16.msra.mxu0 %v351
    %1313 = vmatpush.bf16.msra.mxu0 %v347
    %1314 = vmatpush.bf16.msra.mxu0 %v343
    %1315 = vmatmul.bf16.gmra.mxu0 %v1280
    %v1316 = vpop.f32.mrf.mxu0
    %v1317 = vadd.f32 0.0, %v1316
    %v1318 = vpop.f32.mrf.mxu0
    %1319 = vdwg.mxu0
    %1320 = vmatpush.bf16.msra.mxu0 %v372
    %1321 = vmatpush.bf16.msra.mxu0 %v368
    %1322 = vmatpush.bf16.msra.mxu0 %v364
    %1323 = vmatpush.bf16.msra.mxu0 %v360
    %1324 = vmatpush.bf16.msra.mxu0 %v356
    %1325 = vmatpush.bf16.msra.mxu0 %v352
    %1326 = vmatpush.bf16.msra.mxu0 %v348
    %1327 = vmatpush.bf16.msra.mxu0 %v344
    %1328 = vmatmul.bf16.gmra.mxu0 %v1280
    %v1329 = vpop.f32.mrf.mxu0
    %v1330 = vadd.f32 0.0, %v1329
    %v1331 = vpop.f32.mrf.mxu0
    %1332 = vdwg.mxu0
    %v1333 = vadd.f32 %v1276, %v1291
    %v1334 = vadd.f32 %v1277, %v1304
    %v1335 = vadd.f32 %v1278, %v1317
    %v1336 = vadd.f32 %v1279, %v1330
    %v1337 = vmul.f32 %v1333, 0.5
    %v1338 = vtanh.pop %v1337
    %v1339 = vadd.f32 %v1338, 1.0
    %v1340 = vmul.f32 %v1339, 0.5
    %v1341 = vmul.f32 %v1334, 0.5
    %v1342 = vtanh.pop %v1341
    %v1343 = vadd.f32 %v1342, 1.0
    %v1344 = vmul.f32 %v1343, 0.5
    %v1345 = vtanh.pop %v1335
    %v1346 = vmul.f32 %v1336, 0.5
    %v1347 = vtanh.pop %v1346
    %v1348 = vadd.f32 %v1347, 1.0
    %v1349 = vmul.f32 %v1348, 0.5
    %v1350 = vmul.f32 %v1344, %v1133
    %v1351 = vmul.f32 %v1340, %v1345
    %v1352 = vadd.f32 %v1350, %v1351
    %v1353 = vtanh.pop %v1352
    %v1354 = vmul.f32 %v1349, %v1353
    %s1355 = scalar_lea.vmem %s3, 32
    %1356 = vst [vmem:[%s1355] sm:$0xff] %v1354
    %s1357 = sadd.s32 %s480, 5
    %s1358 = smul.u32 %s1357, 8
    %s1359 = sadd.s32 %s1358, %s93
    %s1360 = sld [smem:[#allocation5 + %s1359]]
    %s1361 = smul.u32 %s1360, 4
    %s1362 = scalar_lea.vmem [#allocation6], %s1361
    %v1363 = vld [vmem:[%s1362] sm:$0xf]
    %s1364 = sadd.s32 %s1359, 1
    %s1365 = sld [smem:[#allocation5 + %s1364]]
    %s1366 = smul.u32 %s1365, 4
    %s1367 = scalar_lea.vmem [#allocation6], %s1366
    %v1368 = vld [vmem:[%s1367] sm:$0xf]
    %s1369 = sadd.s32 %s1359, 2
    %s1370 = sld [smem:[#allocation5 + %s1369]]
    %s1371 = smul.u32 %s1370, 4
    %s1372 = scalar_lea.vmem [#allocation6], %s1371
    %v1373 = vld [vmem:[%s1372] sm:$0xf]
    %s1374 = sadd.s32 %s1359, 3
    %s1375 = sld [smem:[#allocation5 + %s1374]]
    %s1376 = smul.u32 %s1375, 4
    %s1377 = scalar_lea.vmem [#allocation6], %s1376
    %v1378 = vld [vmem:[%s1377] sm:$0xf]
    %s1379 = sadd.s32 %s1359, 4
    %s1380 = sld [smem:[#allocation5 + %s1379]]
    %s1381 = smul.u32 %s1380, 4
    %s1382 = scalar_lea.vmem [#allocation6], %s1381
    %v1383 = vld [vmem:[%s1382] sm:$0xf]
    %s1384 = sadd.s32 %s1359, 5
    %s1385 = sld [smem:[#allocation5 + %s1384]]
    %s1386 = smul.u32 %s1385, 4
    %s1387 = scalar_lea.vmem [#allocation6], %s1386
    %v1388 = vld [vmem:[%s1387] sm:$0xf]
    %s1389 = sadd.s32 %s1359, 6
    %s1390 = sld [smem:[#allocation5 + %s1389]]
    %s1391 = smul.u32 %s1390, 4
    %s1392 = scalar_lea.vmem [#allocation6], %s1391
    %v1393 = vld [vmem:[%s1392] sm:$0xf]
    %s1394 = sadd.s32 %s1359, 7
    %s1395 = sld [smem:[#allocation5 + %s1394]]
    %s1396 = smul.u32 %s1395, 4
    %s1397 = scalar_lea.vmem [#allocation6], %s1396
    %v1398 = vld [vmem:[%s1397] sm:$0xf]
    %v1400 = vperm.slane %v1363, 0
    %v1401 = vperm.slane %v1363, 1
    %v1402 = vperm.slane %v1363, 2
    %v1403 = vperm.slane %v1363, 3
    %v1409 = vperm.slane %v1368, 0
    %v1410 = vperm.slane %v1368, 1
    %v1411 = vperm.slane %v1368, 2
    %v1412 = vperm.slane %v1368, 3
    %v1418 = vperm.slane %v1373, 0
    %v1419 = vperm.slane %v1373, 1
    %v1420 = vperm.slane %v1373, 2
    %v1421 = vperm.slane %v1373, 3
    %v1427 = vperm.slane %v1378, 0
    %v1428 = vperm.slane %v1378, 1
    %v1429 = vperm.slane %v1378, 2
    %v1430 = vperm.slane %v1378, 3
    %v1436 = vperm.slane %v1383, 0
    %v1437 = vperm.slane %v1383, 1
    %v1438 = vperm.slane %v1383, 2
    %v1439 = vperm.slane %v1383, 3
    %v1445 = vperm.slane %v1388, 0
    %v1446 = vperm.slane %v1388, 1
    %v1447 = vperm.slane %v1388, 2
    %v1448 = vperm.slane %v1388, 3
    %v1454 = vperm.slane %v1393, 0
    %v1455 = vperm.slane %v1393, 1
    %v1456 = vperm.slane %v1393, 2
    %v1457 = vperm.slane %v1393, 3
    %v1463 = vperm.slane %v1398, 0
    %v1464 = vperm.slane %v1398, 1
    %v1465 = vperm.slane %v1398, 2
    %v1466 = vperm.slane %v1398, 3
    %v1471 = vsel %vm209, %v1400, %v1409
    %v1472 = vsel %vm209, %v1401, %v1410
    %v1473 = vsel %vm209, %v1402, %v1411
    %v1474 = vsel %vm209, %v1403, %v1412
    %v1475 = vsel %vm214, %v1471, %v1418
    %v1476 = vsel %vm214, %v1472, %v1419
    %v1477 = vsel %vm214, %v1473, %v1420
    %v1478 = vsel %vm214, %v1474, %v1421
    %v1479 = vsel %vm219, %v1475, %v1427
    %v1480 = vsel %vm219, %v1476, %v1428
    %v1481 = vsel %vm219, %v1477, %v1429
    %v1482 = vsel %vm219, %v1478, %v1430
    %v1483 = vsel %vm224, %v1479, %v1436
    %v1484 = vsel %vm224, %v1480, %v1437
    %v1485 = vsel %vm224, %v1481, %v1438
    %v1486 = vsel %vm224, %v1482, %v1439
    %v1487 = vsel %vm229, %v1483, %v1445
    %v1488 = vsel %vm229, %v1484, %v1446
    %v1489 = vsel %vm229, %v1485, %v1447
    %v1490 = vsel %vm229, %v1486, %v1448
    %v1491 = vsel %vm234, %v1487, %v1454
    %v1492 = vsel %vm234, %v1488, %v1455
    %v1493 = vsel %vm234, %v1489, %v1456
    %v1494 = vsel %vm234, %v1490, %v1457
    %v1495 = vsel %vm239, %v1491, %v1463
    %v1496 = vsel %vm239, %v1492, %v1464
    %v1497 = vsel %vm239, %v1493, %v1465
    %v1498 = vsel %vm239, %v1494, %v1466
    %v1499 = vpack.c.bf16 %v1354, %v1354
    %1500 = vmatpush.bf16.msra.mxu0 %v369
    %1501 = vmatpush.bf16.msra.mxu0 %v365
    %1502 = vmatpush.bf16.msra.mxu0 %v361
    %1503 = vmatpush.bf16.msra.mxu0 %v357
    %1504 = vmatpush.bf16.msra.mxu0 %v353
    %1505 = vmatpush.bf16.msra.mxu0 %v349
    %1506 = vmatpush.bf16.msra.mxu0 %v345
    %1507 = vmatpush.bf16.msra.mxu0 %v341
    %1508 = vmatmul.bf16.gmra.mxu0 %v1499
    %v1509 = vpop.f32.mrf.mxu0
    %v1510 = vadd.f32 0.0, %v1509
    %v1511 = vpop.f32.mrf.mxu0
    %1512 = vdwg.mxu0
    %1513 = vmatpush.bf16.msra.mxu0 %v370
    %1514 = vmatpush.bf16.msra.mxu0 %v366
    %1515 = vmatpush.bf16.msra.mxu0 %v362
    %1516 = vmatpush.bf16.msra.mxu0 %v358
    %1517 = vmatpush.bf16.msra.mxu0 %v354
    %1518 = vmatpush.bf16.msra.mxu0 %v350
    %1519 = vmatpush.bf16.msra.mxu0 %v346
    %1520 = vmatpush.bf16.msra.mxu0 %v342
    %1521 = vmatmul.bf16.gmra.mxu0 %v1499
    %v1522 = vpop.f32.mrf.mxu0
    %v1523 = vadd.f32 0.0, %v1522
    %v1524 = vpop.f32.mrf.mxu0
    %1525 = vdwg.mxu0
    %1526 = vmatpush.bf16.msra.mxu0 %v371
    %1527 = vmatpush.bf16.msra.mxu0 %v367
    %1528 = vmatpush.bf16.msra.mxu0 %v363
    %1529 = vmatpush.bf16.msra.mxu0 %v359
    %1530 = vmatpush.bf16.msra.mxu0 %v355
    %1531 = vmatpush.bf16.msra.mxu0 %v351
    %1532 = vmatpush.bf16.msra.mxu0 %v347
    %1533 = vmatpush.bf16.msra.mxu0 %v343
    %1534 = vmatmul.bf16.gmra.mxu0 %v1499
    %v1535 = vpop.f32.mrf.mxu0
    %v1536 = vadd.f32 0.0, %v1535
    %v1537 = vpop.f32.mrf.mxu0
    %1538 = vdwg.mxu0
    %1539 = vmatpush.bf16.msra.mxu0 %v372
    %1540 = vmatpush.bf16.msra.mxu0 %v368
    %1541 = vmatpush.bf16.msra.mxu0 %v364
    %1542 = vmatpush.bf16.msra.mxu0 %v360
    %1543 = vmatpush.bf16.msra.mxu0 %v356
    %1544 = vmatpush.bf16.msra.mxu0 %v352
    %1545 = vmatpush.bf16.msra.mxu0 %v348
    %1546 = vmatpush.bf16.msra.mxu0 %v344
    %1547 = vmatmul.bf16.gmra.mxu0 %v1499
    %v1548 = vpop.f32.mrf.mxu0
    %v1549 = vadd.f32 0.0, %v1548
    %v1550 = vpop.f32.mrf.mxu0
    %1551 = vdwg.mxu0
    %v1552 = vadd.f32 %v1495, %v1510
    %v1553 = vadd.f32 %v1496, %v1523
    %v1554 = vadd.f32 %v1497, %v1536
    %v1555 = vadd.f32 %v1498, %v1549
    %v1556 = vmul.f32 %v1552, 0.5
    %v1557 = vtanh.pop %v1556
    %v1558 = vadd.f32 %v1557, 1.0
    %v1559 = vmul.f32 %v1558, 0.5
    %v1560 = vmul.f32 %v1553, 0.5
    %v1561 = vtanh.pop %v1560
    %v1562 = vadd.f32 %v1561, 1.0
    %v1563 = vmul.f32 %v1562, 0.5
    %v1564 = vtanh.pop %v1554
    %v1565 = vmul.f32 %v1555, 0.5
    %v1566 = vtanh.pop %v1565
    %v1567 = vadd.f32 %v1566, 1.0
    %v1568 = vmul.f32 %v1567, 0.5
    %v1569 = vmul.f32 %v1563, %v1352
    %v1570 = vmul.f32 %v1559, %v1564
    %v1571 = vadd.f32 %v1569, %v1570
    %v1572 = vtanh.pop %v1571
    %v1573 = vmul.f32 %v1568, %v1572
    %s1574 = scalar_lea.vmem %s3, 40
    %1575 = vst [vmem:[%s1574] sm:$0xff] %v1573
    %s1576 = sadd.s32 %s480, 6
    %s1577 = smul.u32 %s1576, 8
    %s1578 = sadd.s32 %s1577, %s93
    %s1579 = sld [smem:[#allocation5 + %s1578]]
    %s1580 = smul.u32 %s1579, 4
    %s1581 = scalar_lea.vmem [#allocation6], %s1580
    %v1582 = vld [vmem:[%s1581] sm:$0xf]
    %s1583 = sadd.s32 %s1578, 1
    %s1584 = sld [smem:[#allocation5 + %s1583]]
    %s1585 = smul.u32 %s1584, 4
    %s1586 = scalar_lea.vmem [#allocation6], %s1585
    %v1587 = vld [vmem:[%s1586] sm:$0xf]
    %s1588 = sadd.s32 %s1578, 2
    %s1589 = sld [smem:[#allocation5 + %s1588]]
    %s1590 = smul.u32 %s1589, 4
    %s1591 = scalar_lea.vmem [#allocation6], %s1590
    %v1592 = vld [vmem:[%s1591] sm:$0xf]
    %s1593 = sadd.s32 %s1578, 3
    %s1594 = sld [smem:[#allocation5 + %s1593]]
    %s1595 = smul.u32 %s1594, 4
    %s1596 = scalar_lea.vmem [#allocation6], %s1595
    %v1597 = vld [vmem:[%s1596] sm:$0xf]
    %s1598 = sadd.s32 %s1578, 4
    %s1599 = sld [smem:[#allocation5 + %s1598]]
    %s1600 = smul.u32 %s1599, 4
    %s1601 = scalar_lea.vmem [#allocation6], %s1600
    %v1602 = vld [vmem:[%s1601] sm:$0xf]
    %s1603 = sadd.s32 %s1578, 5
    %s1604 = sld [smem:[#allocation5 + %s1603]]
    %s1605 = smul.u32 %s1604, 4
    %s1606 = scalar_lea.vmem [#allocation6], %s1605
    %v1607 = vld [vmem:[%s1606] sm:$0xf]
    %s1608 = sadd.s32 %s1578, 6
    %s1609 = sld [smem:[#allocation5 + %s1608]]
    %s1610 = smul.u32 %s1609, 4
    %s1611 = scalar_lea.vmem [#allocation6], %s1610
    %v1612 = vld [vmem:[%s1611] sm:$0xf]
    %s1613 = sadd.s32 %s1578, 7
    %s1614 = sld [smem:[#allocation5 + %s1613]]
    %s1615 = smul.u32 %s1614, 4
    %s1616 = scalar_lea.vmem [#allocation6], %s1615
    %v1617 = vld [vmem:[%s1616] sm:$0xf]
    %v1619 = vperm.slane %v1582, 0
    %v1620 = vperm.slane %v1582, 1
    %v1621 = vperm.slane %v1582, 2
    %v1622 = vperm.slane %v1582, 3
    %v1628 = vperm.slane %v1587, 0
    %v1629 = vperm.slane %v1587, 1
    %v1630 = vperm.slane %v1587, 2
    %v1631 = vperm.slane %v1587, 3
    %v1637 = vperm.slane %v1592, 0
    %v1638 = vperm.slane %v1592, 1
    %v1639 = vperm.slane %v1592, 2
    %v1640 = vperm.slane %v1592, 3
    %v1646 = vperm.slane %v1597, 0
    %v1647 = vperm.slane %v1597, 1
    %v1648 = vperm.slane %v1597, 2
    %v1649 = vperm.slane %v1597, 3
    %v1655 = vperm.slane %v1602, 0
    %v1656 = vperm.slane %v1602, 1
    %v1657 = vperm.slane %v1602, 2
    %v1658 = vperm.slane %v1602, 3
    %v1664 = vperm.slane %v1607, 0
    %v1665 = vperm.slane %v1607, 1
    %v1666 = vperm.slane %v1607, 2
    %v1667 = vperm.slane %v1607, 3
    %v1673 = vperm.slane %v1612, 0
    %v1674 = vperm.slane %v1612, 1
    %v1675 = vperm.slane %v1612, 2
    %v1676 = vperm.slane %v1612, 3
    %v1682 = vperm.slane %v1617, 0
    %v1683 = vperm.slane %v1617, 1
    %v1684 = vperm.slane %v1617, 2
    %v1685 = vperm.slane %v1617, 3
    %v1690 = vsel %vm209, %v1619, %v1628
    %v1691 = vsel %vm209, %v1620, %v1629
    %v1692 = vsel %vm209, %v1621, %v1630
    %v1693 = vsel %vm209, %v1622, %v1631
    %v1694 = vsel %vm214, %v1690, %v1637
    %v1695 = vsel %vm214, %v1691, %v1638
    %v1696 = vsel %vm214, %v1692, %v1639
    %v1697 = vsel %vm214, %v1693, %v1640
    %v1698 = vsel %vm219, %v1694, %v1646
    %v1699 = vsel %vm219, %v1695, %v1647
    %v1700 = vsel %vm219, %v1696, %v1648
    %v1701 = vsel %vm219, %v1697, %v1649
    %v1702 = vsel %vm224, %v1698, %v1655
    %v1703 = vsel %vm224, %v1699, %v1656
    %v1704 = vsel %vm224, %v1700, %v1657
    %v1705 = vsel %vm224, %v1701, %v1658
    %v1706 = vsel %vm229, %v1702, %v1664
    %v1707 = vsel %vm229, %v1703, %v1665
    %v1708 = vsel %vm229, %v1704, %v1666
    %v1709 = vsel %vm229, %v1705, %v1667
    %v1710 = vsel %vm234, %v1706, %v1673
    %v1711 = vsel %vm234, %v1707, %v1674
    %v1712 = vsel %vm234, %v1708, %v1675
    %v1713 = vsel %vm234, %v1709, %v1676
    %v1714 = vsel %vm239, %v1710, %v1682
    %v1715 = vsel %vm239, %v1711, %v1683
    %v1716 = vsel %vm239, %v1712, %v1684
    %v1717 = vsel %vm239, %v1713, %v1685
    %v1718 = vpack.c.bf16 %v1573, %v1573
    %1719 = vmatpush.bf16.msra.mxu0 %v369
    %1720 = vmatpush.bf16.msra.mxu0 %v365
    %1721 = vmatpush.bf16.msra.mxu0 %v361
    %1722 = vmatpush.bf16.msra.mxu0 %v357
    %1723 = vmatpush.bf16.msra.mxu0 %v353
    %1724 = vmatpush.bf16.msra.mxu0 %v349
    %1725 = vmatpush.bf16.msra.mxu0 %v345
    %1726 = vmatpush.bf16.msra.mxu0 %v341
    %1727 = vmatmul.bf16.gmra.mxu0 %v1718
    %v1728 = vpop.f32.mrf.mxu0
    %v1729 = vadd.f32 0.0, %v1728
    %v1730 = vpop.f32.mrf.mxu0
    %1731 = vdwg.mxu0
    %1732 = vmatpush.bf16.msra.mxu0 %v370
    %1733 = vmatpush.bf16.msra.mxu0 %v366
    %1734 = vmatpush.bf16.msra.mxu0 %v362
    %1735 = vmatpush.bf16.msra.mxu0 %v358
    %1736 = vmatpush.bf16.msra.mxu0 %v354
    %1737 = vmatpush.bf16.msra.mxu0 %v350
    %1738 = vmatpush.bf16.msra.mxu0 %v346
    %1739 = vmatpush.bf16.msra.mxu0 %v342
    %1740 = vmatmul.bf16.gmra.mxu0 %v1718
    %v1741 = vpop.f32.mrf.mxu0
    %v1742 = vadd.f32 0.0, %v1741
    %v1743 = vpop.f32.mrf.mxu0
    %1744 = vdwg.mxu0
    %1745 = vmatpush.bf16.msra.mxu0 %v371
    %1746 = vmatpush.bf16.msra.mxu0 %v367
    %1747 = vmatpush.bf16.msra.mxu0 %v363
    %1748 = vmatpush.bf16.msra.mxu0 %v359
    %1749 = vmatpush.bf16.msra.mxu0 %v355
    %1750 = vmatpush.bf16.msra.mxu0 %v351
    %1751 = vmatpush.bf16.msra.mxu0 %v347
    %1752 = vmatpush.bf16.msra.mxu0 %v343
    %1753 = vmatmul.bf16.gmra.mxu0 %v1718
    %v1754 = vpop.f32.mrf.mxu0
    %v1755 = vadd.f32 0.0, %v1754
    %v1756 = vpop.f32.mrf.mxu0
    %1757 = vdwg.mxu0
    %1758 = vmatpush.bf16.msra.mxu0 %v372
    %1759 = vmatpush.bf16.msra.mxu0 %v368
    %1760 = vmatpush.bf16.msra.mxu0 %v364
    %1761 = vmatpush.bf16.msra.mxu0 %v360
    %1762 = vmatpush.bf16.msra.mxu0 %v356
    %1763 = vmatpush.bf16.msra.mxu0 %v352
    %1764 = vmatpush.bf16.msra.mxu0 %v348
    %1765 = vmatpush.bf16.msra.mxu0 %v344
    %1766 = vmatmul.bf16.gmra.mxu0 %v1718
    %v1767 = vpop.f32.mrf.mxu0
    %v1768 = vadd.f32 0.0, %v1767
    %v1769 = vpop.f32.mrf.mxu0
    %1770 = vdwg.mxu0
    %v1771 = vadd.f32 %v1714, %v1729
    %v1772 = vadd.f32 %v1715, %v1742
    %v1773 = vadd.f32 %v1716, %v1755
    %v1774 = vadd.f32 %v1717, %v1768
    %v1775 = vmul.f32 %v1771, 0.5
    %v1776 = vtanh.pop %v1775
    %v1777 = vadd.f32 %v1776, 1.0
    %v1778 = vmul.f32 %v1777, 0.5
    %v1779 = vmul.f32 %v1772, 0.5
    %v1780 = vtanh.pop %v1779
    %v1781 = vadd.f32 %v1780, 1.0
    %v1782 = vmul.f32 %v1781, 0.5
    %v1783 = vtanh.pop %v1773
    %v1784 = vmul.f32 %v1774, 0.5
    %v1785 = vtanh.pop %v1784
    %v1786 = vadd.f32 %v1785, 1.0
    %v1787 = vmul.f32 %v1786, 0.5
    %v1788 = vmul.f32 %v1782, %v1571
    %v1789 = vmul.f32 %v1778, %v1783
    %v1790 = vadd.f32 %v1788, %v1789
    %v1791 = vtanh.pop %v1790
    %v1792 = vmul.f32 %v1787, %v1791
    %s1793 = scalar_lea.vmem %s3, 48
    %1794 = vst [vmem:[%s1793] sm:$0xff] %v1792
    %s1795 = sadd.s32 %s480, 7
    %s1796 = smul.u32 %s1795, 8
    %s1797 = sadd.s32 %s1796, %s93
    %s1798 = sld [smem:[#allocation5 + %s1797]]
    %s1799 = smul.u32 %s1798, 4
    %s1800 = scalar_lea.vmem [#allocation6], %s1799
    %v1801 = vld [vmem:[%s1800] sm:$0xf]
    %s1802 = sadd.s32 %s1797, 1
    %s1803 = sld [smem:[#allocation5 + %s1802]]
    %s1804 = smul.u32 %s1803, 4
    %s1805 = scalar_lea.vmem [#allocation6], %s1804
    %v1806 = vld [vmem:[%s1805] sm:$0xf]
    %s1807 = sadd.s32 %s1797, 2
    %s1808 = sld [smem:[#allocation5 + %s1807]]
    %s1809 = smul.u32 %s1808, 4
    %s1810 = scalar_lea.vmem [#allocation6], %s1809
    %v1811 = vld [vmem:[%s1810] sm:$0xf]
    %s1812 = sadd.s32 %s1797, 3
    %s1813 = sld [smem:[#allocation5 + %s1812]]
    %s1814 = smul.u32 %s1813, 4
    %s1815 = scalar_lea.vmem [#allocation6], %s1814
    %v1816 = vld [vmem:[%s1815] sm:$0xf]
    %s1817 = sadd.s32 %s1797, 4
    %s1818 = sld [smem:[#allocation5 + %s1817]]
    %s1819 = smul.u32 %s1818, 4
    %s1820 = scalar_lea.vmem [#allocation6], %s1819
    %v1821 = vld [vmem:[%s1820] sm:$0xf]
    %s1822 = sadd.s32 %s1797, 5
    %s1823 = sld [smem:[#allocation5 + %s1822]]
    %s1824 = smul.u32 %s1823, 4
    %s1825 = scalar_lea.vmem [#allocation6], %s1824
    %v1826 = vld [vmem:[%s1825] sm:$0xf]
    %s1827 = sadd.s32 %s1797, 6
    %s1828 = sld [smem:[#allocation5 + %s1827]]
    %s1829 = smul.u32 %s1828, 4
    %s1830 = scalar_lea.vmem [#allocation6], %s1829
    %v1831 = vld [vmem:[%s1830] sm:$0xf]
    %s1832 = sadd.s32 %s1797, 7
    %s1833 = sld [smem:[#allocation5 + %s1832]]
    %s1834 = smul.u32 %s1833, 4
    %s1835 = scalar_lea.vmem [#allocation6], %s1834
    %v1836 = vld [vmem:[%s1835] sm:$0xf]
    %v1838 = vperm.slane %v1801, 0
    %v1839 = vperm.slane %v1801, 1
    %v1840 = vperm.slane %v1801, 2
    %v1841 = vperm.slane %v1801, 3
    %v1847 = vperm.slane %v1806, 0
    %v1848 = vperm.slane %v1806, 1
    %v1849 = vperm.slane %v1806, 2
    %v1850 = vperm.slane %v1806, 3
    %v1856 = vperm.slane %v1811, 0
    %v1857 = vperm.slane %v1811, 1
    %v1858 = vperm.slane %v1811, 2
    %v1859 = vperm.slane %v1811, 3
    %v1865 = vperm.slane %v1816, 0
    %v1866 = vperm.slane %v1816, 1
    %v1867 = vperm.slane %v1816, 2
    %v1868 = vperm.slane %v1816, 3
    %v1874 = vperm.slane %v1821, 0
    %v1875 = vperm.slane %v1821, 1
    %v1876 = vperm.slane %v1821, 2
    %v1877 = vperm.slane %v1821, 3
    %v1883 = vperm.slane %v1826, 0
    %v1884 = vperm.slane %v1826, 1
    %v1885 = vperm.slane %v1826, 2
    %v1886 = vperm.slane %v1826, 3
    %v1892 = vperm.slane %v1831, 0
    %v1893 = vperm.slane %v1831, 1
    %v1894 = vperm.slane %v1831, 2
    %v1895 = vperm.slane %v1831, 3
    %v1901 = vperm.slane %v1836, 0
    %v1902 = vperm.slane %v1836, 1
    %v1903 = vperm.slane %v1836, 2
    %v1904 = vperm.slane %v1836, 3
    %v1909 = vsel %vm209, %v1838, %v1847
    %v1910 = vsel %vm209, %v1839, %v1848
    %v1911 = vsel %vm209, %v1840, %v1849
    %v1912 = vsel %vm209, %v1841, %v1850
    %v1913 = vsel %vm214, %v1909, %v1856
    %v1914 = vsel %vm214, %v1910, %v1857
    %v1915 = vsel %vm214, %v1911, %v1858
    %v1916 = vsel %vm214, %v1912, %v1859
    %v1917 = vsel %vm219, %v1913, %v1865
    %v1918 = vsel %vm219, %v1914, %v1866
    %v1919 = vsel %vm219, %v1915, %v1867
    %v1920 = vsel %vm219, %v1916, %v1868
    %v1921 = vsel %vm224, %v1917, %v1874
    %v1922 = vsel %vm224, %v1918, %v1875
    %v1923 = vsel %vm224, %v1919, %v1876
    %v1924 = vsel %vm224, %v1920, %v1877
    %v1925 = vsel %vm229, %v1921, %v1883
    %v1926 = vsel %vm229, %v1922, %v1884
    %v1927 = vsel %vm229, %v1923, %v1885
    %v1928 = vsel %vm229, %v1924, %v1886
    %v1929 = vsel %vm234, %v1925, %v1892
    %v1930 = vsel %vm234, %v1926, %v1893
    %v1931 = vsel %vm234, %v1927, %v1894
    %v1932 = vsel %vm234, %v1928, %v1895
    %v1933 = vsel %vm239, %v1929, %v1901
    %v1934 = vsel %vm239, %v1930, %v1902
    %v1935 = vsel %vm239, %v1931, %v1903
    %v1936 = vsel %vm239, %v1932, %v1904
    %v1937 = vpack.c.bf16 %v1792, %v1792
    %1938 = vmatpush.bf16.msra.mxu0 %v369
    %1939 = vmatpush.bf16.msra.mxu0 %v365
    %1940 = vmatpush.bf16.msra.mxu0 %v361
    %1941 = vmatpush.bf16.msra.mxu0 %v357
    %1942 = vmatpush.bf16.msra.mxu0 %v353
    %1943 = vmatpush.bf16.msra.mxu0 %v349
    %1944 = vmatpush.bf16.msra.mxu0 %v345
    %1945 = vmatpush.bf16.msra.mxu0 %v341
    %1946 = vmatmul.bf16.gmra.mxu0 %v1937
    %v1947 = vpop.f32.mrf.mxu0
    %v1948 = vadd.f32 0.0, %v1947
    %v1949 = vpop.f32.mrf.mxu0
    %1950 = vdwg.mxu0
    %1951 = vmatpush.bf16.msra.mxu0 %v370
    %1952 = vmatpush.bf16.msra.mxu0 %v366
    %1953 = vmatpush.bf16.msra.mxu0 %v362
    %1954 = vmatpush.bf16.msra.mxu0 %v358
    %1955 = vmatpush.bf16.msra.mxu0 %v354
    %1956 = vmatpush.bf16.msra.mxu0 %v350
    %1957 = vmatpush.bf16.msra.mxu0 %v346
    %1958 = vmatpush.bf16.msra.mxu0 %v342
    %1959 = vmatmul.bf16.gmra.mxu0 %v1937
    %v1960 = vpop.f32.mrf.mxu0
    %v1961 = vadd.f32 0.0, %v1960
    %v1962 = vpop.f32.mrf.mxu0
    %1963 = vdwg.mxu0
    %1964 = vmatpush.bf16.msra.mxu0 %v371
    %1965 = vmatpush.bf16.msra.mxu0 %v367
    %1966 = vmatpush.bf16.msra.mxu0 %v363
    %1967 = vmatpush.bf16.msra.mxu0 %v359
    %1968 = vmatpush.bf16.msra.mxu0 %v355
    %1969 = vmatpush.bf16.msra.mxu0 %v351
    %1970 = vmatpush.bf16.msra.mxu0 %v347
    %1971 = vmatpush.bf16.msra.mxu0 %v343
    %1972 = vmatmul.bf16.gmra.mxu0 %v1937
    %v1973 = vpop.f32.mrf.mxu0
    %v1974 = vadd.f32 0.0, %v1973
    %v1975 = vpop.f32.mrf.mxu0
    %1976 = vdwg.mxu0
    %1977 = vmatpush.bf16.msra.mxu0 %v372
    %1978 = vmatpush.bf16.msra.mxu0 %v368
    %1979 = vmatpush.bf16.msra.mxu0 %v364
    %1980 = vmatpush.bf16.msra.mxu0 %v360
    %1981 = vmatpush.bf16.msra.mxu0 %v356
    %1982 = vmatpush.bf16.msra.mxu0 %v352
    %1983 = vmatpush.bf16.msra.mxu0 %v348
    %1984 = vmatpush.bf16.msra.mxu0 %v344
    %1985 = vmatmul.bf16.gmra.mxu0 %v1937
    %v1986 = vpop.f32.mrf.mxu0
    %v1987 = vadd.f32 0.0, %v1986
    %v1988 = vpop.f32.mrf.mxu0
    %1989 = vdwg.mxu0
    %v1990 = vadd.f32 %v1933, %v1948
    %v1991 = vadd.f32 %v1934, %v1961
    %v1992 = vadd.f32 %v1935, %v1974
    %v1993 = vadd.f32 %v1936, %v1987
    %v1994 = vmul.f32 %v1990, 0.5
    %v1995 = vtanh.pop %v1994
    %v1996 = vadd.f32 %v1995, 1.0
    %v1997 = vmul.f32 %v1996, 0.5
    %v1998 = vmul.f32 %v1991, 0.5
    %v1999 = vtanh.pop %v1998
    %v2000 = vadd.f32 %v1999, 1.0
    %v2001 = vmul.f32 %v2000, 0.5
    %v2002 = vtanh.pop %v1992
    %v2003 = vmul.f32 %v1993, 0.5
    %v2004 = vtanh.pop %v2003
    %v2005 = vadd.f32 %v2004, 1.0
    %v2006 = vmul.f32 %v2005, 0.5
    %v2007 = vmul.f32 %v2001, %v1790
    %v2008 = vmul.f32 %v1997, %v2002
    %v2009 = vadd.f32 %v2007, %v2008
    %v2010 = vtanh.pop %v2009
    %v2011 = vmul.f32 %v2006, %v2010
    %s2012 = scalar_lea.vmem %s3, 56
    %2013 = vst [vmem:[%s2012] sm:$0xff] %v2011
    %2014 = vst [vmem:[#allocation2] sm:$0xff] %v2011
    %2015 = vst [vmem:[#allocation3] sm:$0xff] %v2009
    // Predicated region
    $region22: #{a_call__.1} parent=1 // pred_check
      %p2016 = pneg %p55
    $region23: #{a_call__.1} parent=1 // pred_check_branch
      %2018 = sbr.rel (%p2016) target = $region25
    $region24: #{a_call__.1} parent=1 // pred_region
      %2019 = vst [vmem:[%s4] sm:$0xff] %v2011
      %2020 = vst [vmem:[%s5] sm:$0xff] %v2009
    $region25: #{a_call__.1} parent=1 // pred_fallthru
      _
    // Predicated region
    $region26: #{a_call__.1} parent=1 // pred_check
      _
    $region27: #{a_call__.1} parent=1 // pred_check_branch
      %2022 = sbr.rel (0) target = $region29
    $region28: #{a_call__.1} parent=1 // pred_region
      _
    $region29: #{a_call__.1} parent=1 // pred_fallthru
      _
    // Predicated region
    $region30: #{a_call__.1} parent=1 // pred_check
      _
    $region31: #{a_call__.1} parent=1 // pred_check_branch
      %2024 = sbr.rel (0) target = $region33
    $region32: #{a_call__.1} parent=1 // pred_region
      _
    $region33: #{a_call__.1} parent=1 // pred_fallthru
      _
    // Predicated region
    $region34: #{a_call__.1} parent=1 // pred_check
      _
    $region35: #{a_call__.1} parent=1 // pred_check_branch
      %2026 = sbr.rel (0) target = $region37
    $region36: #{a_call__.1} parent=1 // pred_region
      _
    $region37: #{a_call__.1} parent=1 // pred_fallthru
      _
    // Predicated region
    $region38: #{a_call__.1} parent=1 // pred_check
      _
    $region39: #{a_call__.1} parent=1 // pred_check_branch
      %2028 = sbr.rel (0) target = $region41
    $region40: #{a_call__.1} parent=1 // pred_region
      _
    $region41: #{a_call__.1} parent=1 // pred_fallthru
      _
    // Predicated region
    $region42: #{a_call__.1} parent=1 // pred_check
      _
    $region43: #{a_call__.1} parent=1 // pred_check_branch
      %2030 = sbr.rel (0) target = $region45
    $region44: #{a_call__.1} parent=1 // pred_region
      _
    $region45: #{a_call__.1} parent=1 // pred_fallthru
      _
    // Predicated region
    $region46: #{a_call__.1} parent=1 // pred_check
      _
    $region47: #{a_call__.1} parent=1 // pred_check_branch
      %2032 = sbr.rel (0) target = $region49
    $region48: #{a_call__.1} parent=1 // pred_region
      _
    $region49: #{a_call__.1} parent=1 // pred_fallthru
      _
    %2033 = vsyncpa [#allocation7], 1
    %2034 = vsyncpa [#allocation9], 1

</llo_original>
